<compile_context>
chip_gen: v5e
topology: v5e:2x2
jax: 0.10.0
libtpu: 0.0.40
codegen_flags: <defaults>
</compile_context>

<pallas_src>
import functools

import jax
import jax.numpy as jnp
from jax.experimental import pallas as pl
from jax.experimental.pallas import tpu as pltpu


def _conv3x3_s2_kernel(xm_ref, xh_ref, w_ref, b_ref, o_ref, *, th, wout, cin, cout):
    """Computes `th` output rows of a 3x3 / stride-2 / pad-1 conv for one image.

    xm_ref: (2*th, Wout+1, 2*Cin)  padded rows [2*th*i, 2*th*(i+1)); W axis is
            pre-grouped into column pairs (lane dim = 2*Cin).
    xh_ref: (2,    Wout+1, 2*Cin)  halo rows [2*th*(i+1), 2*th*(i+1)+2); only row 0
            is used (bottom tap of the tile's last output row).
    w_ref:  (9*Cin, Cout)          row index = (kh*3 + kw)*Cin + ci.
    b_ref:  (1, Cout)              bias.
    o_ref:  (th, Wout, Cout)       output rows of this tile.
    """
    # Bias folded into the accumulator init; broadcast hoisted out of the loop.
    bias_tile = jnp.broadcast_to(b_ref[...].astype(jnp.float32), (wout, cout))

    for r in range(th):                      # static unroll over the row tile
        acc = bias_tile
        for kh in range(3):
            row = 2 * r + kh                 # block-local padded row index
            for kw in range(3):
                cp0 = kw // 2                # column-pair start (kw==2 -> next pair)
                lo = (kw % 2) * cin          # lane offset inside the pair
                if row < 2 * th:
                    tap = xm_ref[row, cp0:cp0 + wout, lo:lo + cin]   # (Wout, Cin)
                else:                        # only r == th-1, kh == 2 lands here
                    tap = xh_ref[0, cp0:cp0 + wout, lo:lo + cin]
                wk = w_ref[pl.ds((kh * 3 + kw) * cin, cin), :]        # (Cin, Cout)
                acc = acc + jnp.dot(tap, wk, preferred_element_type=jnp.float32)
        o_ref[r] = acc.astype(o_ref.dtype)


def conv_downsample(x, weight, bias, *, row_tile=8):
    """x: (N, H, W, Cin) float32. weight: (Cout, Cin, 3, 3) PyTorch Conv2d layout.
    bias: (Cout,). Returns (N, Hout, Wout, Cout), Hout = (H+2-3)//2 + 1 (same W)."""
    N, H, W, Cin = x.shape
    Cout = weight.shape[0]
    Hout = (H - 1) // 2 + 1
    Wout = (W - 1) // 2 + 1

    # Pad so the halo block (2 rows at padded row 2*th*(i+1)) and the column-pair
    # grouping are always in bounds: Hp = 2*Hout + 2, Wp = 2*Wout + 2. The extra
    # bottom/right zero row/col (only present for odd H/W) is never read by taps.
    Hp = 2 * Hout + 2
    Wp = 2 * Wout + 2
    xp = jnp.pad(x, ((0, 0), (1, Hp - H - 1), (1, Wp - W - 1), (0, 0)))
    # Free row-major reshape: group W into column pairs -> taps are contiguous.
    xpr = xp.reshape(N, Hp, Wp // 2, 2 * Cin)

    # (Cout, Cin, kh, kw) -> (kh, kw, Cin, Cout) -> (9*Cin, Cout); matches kernel's
    # (kh*3 + kw)*Cin + ci tap order.
    w2d = jnp.transpose(weight, (2, 3, 1, 0)).reshape(9 * Cin, Cout)
    b2d = bias.reshape(1, Cout).astype(jnp.float32)

    # Row tile: largest divisor of Hout that is <= row_tile (no partial tiles).
    th = max(1, min(row_tile, Hout))
    while Hout % th:
        th -= 1
    n_tiles = Hout // th

    kernel = functools.partial(_conv3x3_s2_kernel,
                               th=th, wout=Wout, cin=Cin, cout=Cout)

    # TODO(synk): on v6e/v7x optionally cast xpr/w2d to bf16 (keep f32 accumulation)
    # to halve HBM traffic when the accuracy budget allows.
    out = pl.pallas_call(
        kernel,
        out_shape=jax.ShapeDtypeStruct((N, Hout, Wout, Cout), x.dtype),
        grid=(N, n_tiles),
        in_specs=[
            # Main rows of tile i: padded rows [2*th*i, 2*th*(i+1)).
            pl.BlockSpec((None, 2 * th, Wp // 2, 2 * Cin),
                         lambda n, i: (n, i, 0, 0)),
            # 2-row halo starting at padded row 2*th*(i+1).
            pl.BlockSpec((None, 2, Wp // 2, 2 * Cin),
                         lambda n, i: (n, th * (i + 1), 0, 0)),
            # Weights / bias: constant index_map -> resident, DMA'd once.
            pl.BlockSpec((9 * Cin, Cout), lambda n, i: (0, 0)),
            pl.BlockSpec((1, Cout), lambda n, i: (0, 0)),
        ],
        out_specs=pl.BlockSpec((None, th, Wout, Cout), lambda n, i: (n, i, 0, 0)),
        compiler_params=pltpu.CompilerParams(
            dimension_semantics=("parallel", "parallel"),
            vmem_limit_bytes=64 * 1024 * 1024,
        ),
    )(xpr, xpr, w2d, b2d)
    return out


if __name__ == "__main__":
    key = jax.random.PRNGKey(0)
    kx, kw_, kb = jax.random.split(key, 3)

    # Small shapes consistent with the module: NHWC input, Cin=4, Cout=8.
    N, H, W, Cin, Cout = 2, 16, 16, 4, 8
    x = jax.random.normal(kx, (N, H, W, Cin), dtype=jnp.float32)
    weight = 0.1 * jax.random.normal(kw_, (Cout, Cin, 3, 3), dtype=jnp.float32)
    bias = 0.1 * jax.random.normal(kb, (Cout,), dtype=jnp.float32)

    y = conv_downsample(x, weight, bias)
    y = jax.block_until_ready(y)

    # Reference check against XLA's conv (NHWC / HWIO), stride 2, padding 1.
    w_hwio = jnp.transpose(weight, (2, 3, 1, 0))
    y_ref = jax.lax.conv_general_dilated(
        x, w_hwio, window_strides=(2, 2), padding=((1, 1), (1, 1)),
        dimension_numbers=("NHWC", "HWIO", "NHWC"),
    ) + bias.reshape(1, 1, 1, Cout)

    assert y.shape == (N, (H - 1) // 2 + 1, (W - 1) // 2 + 1, Cout)
    assert jnp.allclose(y, y_ref, atol=1e-4, rtol=1e-4), "mismatch vs reference conv"
    print("KERNEL_OK")
</pallas_src>

<mosaic_0001>
module attributes {stable_mosaic.version = 11 : i64} {
  func.func @_conv3x3_s2_kernel(%arg0: i32, %arg1: i32, %arg2: memref<1x16x9x8xf32, #tpu.memory_space<vmem>>, %arg3: memref<1x2x9x8xf32, #tpu.memory_space<vmem>>, %arg4: memref<36x8xf32, #tpu.memory_space<vmem>>, %arg5: memref<1x8xf32, #tpu.memory_space<vmem>>, %arg6: memref<1x8x8x8xf32, #tpu.memory_space<vmem>>) attributes {dimension_semantics = [#tpu.dimension_semantics<parallel>, #tpu.dimension_semantics<parallel>], iteration_bounds = array<i64: 2, 1>, scalar_prefetch = 0 : i64, scratch_operands = 0 : i64, tpu.core_type = #tpu.core_type<tc>, window_params = [{transform_indices = @transform_0, window_bounds = array<i64: 1, 16, 9, 8>}, {transform_indices = @transform_1, window_bounds = array<i64: 1, 2, 9, 8>}, {pipeline_mode = #tpu.pipeline_mode<synchronous>, transform_indices = @transform_2, window_bounds = array<i64: 36, 8>}, {pipeline_mode = #tpu.pipeline_mode<synchronous>, transform_indices = @transform_3, window_bounds = array<i64: 1, 8>}, {transform_indices = @transform_4, window_bounds = array<i64: 1, 8, 8, 8>}]} {
    %c0 = arith.constant 0 : index
    %c0_0 = arith.constant 0 : index
    %0 = vector.load %arg5[%c0, %c0_0] : memref<1x8xf32, #tpu.memory_space<vmem>>, vector<1x8xf32>
    %1 = vector.shape_cast %0 : vector<1x8xf32> to vector<1x8xf32>
    %2 = vector.broadcast %1 : vector<1x8xf32> to vector<8x8xf32>
    %c0_1 = arith.constant 0 : index
    %c0_2 = arith.constant 0 : index
    %c0_3 = arith.constant 0 : index
    %c0_4 = arith.constant 0 : index
    %3 = vector.load %arg2[%c0_1, %c0_2, %c0_3, %c0_4] : memref<1x16x9x8xf32, #tpu.memory_space<vmem>>, vector<1x1x8x4xf32>
    %4 = vector.shape_cast %3 : vector<1x1x8x4xf32> to vector<8x4xf32>
    %c0_5 = arith.constant 0 : index
    %c0_6 = arith.constant 0 : index
    %5 = vector.load %arg4[%c0_5, %c0_6] : memref<36x8xf32, #tpu.memory_space<vmem>>, vector<4x8xf32>
    %cst = arith.constant dense<0.000000e+00> : vector<8x8xf32>
    %6 = tpu.matmul %4, %5, %cst {dimension_numbers = #tpu.dot_dimension_numbers<[1], [0], [0], [1], [0, 0, 1, 1], [], []>} : vector<8x4xf32>, vector<4x8xf32>, vector<8x8xf32> -> vector<8x8xf32>
    %7 = arith.addf %2, %6 : vector<8x8xf32>
    %c0_7 = arith.constant 0 : index
    %c0_8 = arith.constant 0 : index
    %c0_9 = arith.constant 0 : index
    %c4 = arith.constant 4 : index
    %8 = vector.load %arg2[%c0_7, %c0_8, %c0_9, %c4] : memref<1x16x9x8xf32, #tpu.memory_space<vmem>>, vector<1x1x8x4xf32>
    %9 = vector.shape_cast %8 : vector<1x1x8x4xf32> to vector<8x4xf32>
    %c4_10 = arith.constant 4 : index
    %c0_11 = arith.constant 0 : index
    %10 = vector.load %arg4[%c4_10, %c0_11] : memref<36x8xf32, #tpu.memory_space<vmem>>, vector<4x8xf32>
    %cst_12 = arith.constant dense<0.000000e+00> : vector<8x8xf32>
    %11 = tpu.matmul %9, %10, %cst_12 {dimension_numbers = #tpu.dot_dimension_numbers<[1], [0], [0], [1], [0, 0, 1, 1], [], []>} : vector<8x4xf32>, vector<4x8xf32>, vector<8x8xf32> -> vector<8x8xf32>
    %12 = arith.addf %7, %11 : vector<8x8xf32>
    %c0_13 = arith.constant 0 : index
    %c0_14 = arith.constant 0 : index
    %c1 = arith.constant 1 : index
    %c0_15 = arith.constant 0 : index
    %13 = vector.load %arg2[%c0_13, %c0_14, %c1, %c0_15] : memref<1x16x9x8xf32, #tpu.memory_space<vmem>>, vector<1x1x8x4xf32>
    %14 = vector.shape_cast %13 : vector<1x1x8x4xf32> to vector<8x4xf32>
    %c8 = arith.constant 8 : index
    %c0_16 = arith.constant 0 : index
    %15 = vector.load %arg4[%c8, %c0_16] : memref<36x8xf32, #tpu.memory_space<vmem>>, vector<4x8xf32>
    %cst_17 = arith.constant dense<0.000000e+00> : vector<8x8xf32>
    %16 = tpu.matmul %14, %15, %cst_17 {dimension_numbers = #tpu.dot_dimension_numbers<[1], [0], [0], [1], [0, 0, 1, 1], [], []>} : vector<8x4xf32>, vector<4x8xf32>, vector<8x8xf32> -> vector<8x8xf32>
    %17 = arith.addf %12, %16 : vector<8x8xf32>
    %c0_18 = arith.constant 0 : index
    %c1_19 = arith.constant 1 : index
    %c0_20 = arith.constant 0 : index
    %c0_21 = arith.constant 0 : index
    %18 = vector.load %arg2[%c0_18, %c1_19, %c0_20, %c0_21] : memref<1x16x9x8xf32, #tpu.memory_space<vmem>>, vector<1x1x8x4xf32>
    %19 = vector.shape_cast %18 : vector<1x1x8x4xf32> to vector<8x4xf32>
    %c12 = arith.constant 12 : index
    %c0_22 = arith.constant 0 : index
    %20 = vector.load %arg4[%c12, %c0_22] : memref<36x8xf32, #tpu.memory_space<vmem>>, vector<4x8xf32>
    %cst_23 = arith.constant dense<0.000000e+00> : vector<8x8xf32>
    %21 = tpu.matmul %19, %20, %cst_23 {dimension_numbers = #tpu.dot_dimension_numbers<[1], [0], [0], [1], [0, 0, 1, 1], [], []>} : vector<8x4xf32>, vector<4x8xf32>, vector<8x8xf32> -> vector<8x8xf32>
    %22 = arith.addf %17, %21 : vector<8x8xf32>
    %c0_24 = arith.constant 0 : index
    %c1_25 = arith.constant 1 : index
    %c0_26 = arith.constant 0 : index
    %c4_27 = arith.constant 4 : index
    %23 = vector.load %arg2[%c0_24, %c1_25, %c0_26, %c4_27] : memref<1x16x9x8xf32, #tpu.memory_space<vmem>>, vector<1x1x8x4xf32>
    %24 = vector.shape_cast %23 : vector<1x1x8x4xf32> to vector<8x4xf32>
    %c16 = arith.constant 16 : index
    %c0_28 = arith.constant 0 : index
    %25 = vector.load %arg4[%c16, %c0_28] : memref<36x8xf32, #tpu.memory_space<vmem>>, vector<4x8xf32>
    %cst_29 = arith.constant dense<0.000000e+00> : vector<8x8xf32>
    %26 = tpu.matmul %24, %25, %cst_29 {dimension_numbers = #tpu.dot_dimension_numbers<[1], [0], [0], [1], [0, 0, 1, 1], [], []>} : vector<8x4xf32>, vector<4x8xf32>, vector<8x8xf32> -> vector<8x8xf32>
    %27 = arith.addf %22, %26 : vector<8x8xf32>
    %c0_30 = arith.constant 0 : index
    %c1_31 = arith.constant 1 : index
    %c1_32 = arith.constant 1 : index
    %c0_33 = arith.constant 0 : index
    %28 = vector.load %arg2[%c0_30, %c1_31, %c1_32, %c0_33] : memref<1x16x9x8xf32, #tpu.memory_space<vmem>>, vector<1x1x8x4xf32>
    %29 = vector.shape_cast %28 : vector<1x1x8x4xf32> to vector<8x4xf32>
    %c20 = arith.constant 20 : index
    %c0_34 = arith.constant 0 : index
    %30 = vector.load %arg4[%c20, %c0_34] : memref<36x8xf32, #tpu.memory_space<vmem>>, vector<4x8xf32>
    %cst_35 = arith.constant dense<0.000000e+00> : vector<8x8xf32>
    %31 = tpu.matmul %29, %30, %cst_35 {dimension_numbers = #tpu.dot_dimension_numbers<[1], [0], [0], [1], [0, 0, 1, 1], [], []>} : vector<8x4xf32>, vector<4x8xf32>, vector<8x8xf32> -> vector<8x8xf32>
    %32 = arith.addf %27, %31 : vector<8x8xf32>
    %c0_36 = arith.constant 0 : index
    %c2 = arith.constant 2 : index
    %c0_37 = arith.constant 0 : index
    %c0_38 = arith.constant 0 : index
    %33 = vector.load %arg2[%c0_36, %c2, %c0_37, %c0_38] : memref<1x16x9x8xf32, #tpu.memory_space<vmem>>, vector<1x1x8x4xf32>
    %34 = vector.shape_cast %33 : vector<1x1x8x4xf32> to vector<8x4xf32>
    %c24 = arith.constant 24 : index
    %c0_39 = arith.constant 0 : index
    %35 = vector.load %arg4[%c24, %c0_39] : memref<36x8xf32, #tpu.memory_space<vmem>>, vector<4x8xf32>
    %cst_40 = arith.constant dense<0.000000e+00> : vector<8x8xf32>
    %36 = tpu.matmul %34, %35, %cst_40 {dimension_numbers = #tpu.dot_dimension_numbers<[1], [0], [0], [1], [0, 0, 1, 1], [], []>} : vector<8x4xf32>, vector<4x8xf32>, vector<8x8xf32> -> vector<8x8xf32>
    %37 = arith.addf %32, %36 : vector<8x8xf32>
    %c0_41 = arith.constant 0 : index
    %c2_42 = arith.constant 2 : index
    %c0_43 = arith.constant 0 : index
    %c4_44 = arith.constant 4 : index
    %38 = vector.load %arg2[%c0_41, %c2_42, %c0_43, %c4_44] : memref<1x16x9x8xf32, #tpu.memory_space<vmem>>, vector<1x1x8x4xf32>
    %39 = vector.shape_cast %38 : vector<1x1x8x4xf32> to vector<8x4xf32>
    %c28 = arith.constant 28 : index
    %c0_45 = arith.constant 0 : index
    %40 = vector.load %arg4[%c28, %c0_45] : memref<36x8xf32, #tpu.memory_space<vmem>>, vector<4x8xf32>
    %cst_46 = arith.constant dense<0.000000e+00> : vector<8x8xf32>
    %41 = tpu.matmul %39, %40, %cst_46 {dimension_numbers = #tpu.dot_dimension_numbers<[1], [0], [0], [1], [0, 0, 1, 1], [], []>} : vector<8x4xf32>, vector<4x8xf32>, vector<8x8xf32> -> vector<8x8xf32>
    %42 = arith.addf %37, %41 : vector<8x8xf32>
    %c0_47 = arith.constant 0 : index
    %c2_48 = arith.constant 2 : index
    %c1_49 = arith.constant 1 : index
    %c0_50 = arith.constant 0 : index
    %43 = vector.load %arg2[%c0_47, %c2_48, %c1_49, %c0_50] : memref<1x16x9x8xf32, #tpu.memory_space<vmem>>, vector<1x1x8x4xf32>
    %44 = vector.shape_cast %43 : vector<1x1x8x4xf32> to vector<8x4xf32>
    %c32 = arith.constant 32 : index
    %c0_51 = arith.constant 0 : index
    %45 = vector.load %arg4[%c32, %c0_51] : memref<36x8xf32, #tpu.memory_space<vmem>>, vector<4x8xf32>
    %cst_52 = arith.constant dense<0.000000e+00> : vector<8x8xf32>
    %46 = tpu.matmul %44, %45, %cst_52 {dimension_numbers = #tpu.dot_dimension_numbers<[1], [0], [0], [1], [0, 0, 1, 1], [], []>} : vector<8x4xf32>, vector<4x8xf32>, vector<8x8xf32> -> vector<8x8xf32>
    %47 = arith.addf %42, %46 : vector<8x8xf32>
    %c0_53 = arith.constant 0 : index
    %c0_54 = arith.constant 0 : index
    %c0_55 = arith.constant 0 : index
    %c0_56 = arith.constant 0 : index
    %48 = vector.load %arg6[%c0_53, %c0_54, %c0_55, %c0_56] : memref<1x8x8x8xf32, #tpu.memory_space<vmem>>, vector<1x1x8x8xf32>
    %49 = vector.shape_cast %48 : vector<1x1x8x8xf32> to vector<8x8xf32>
    %50 = vector.shape_cast %47 : vector<8x8xf32> to vector<1x1x8x8xf32>
    tpu.vector_store %arg6[%c0_53, %c0_54, %c0_55, %c0_56], %50 {strides = array<i32>} : memref<1x8x8x8xf32, #tpu.memory_space<vmem>>, vector<1x1x8x8xf32>,
    %c0_57 = arith.constant 0 : index
    %c2_58 = arith.constant 2 : index
    %c0_59 = arith.constant 0 : index
    %c0_60 = arith.constant 0 : index
    %51 = vector.load %arg2[%c0_57, %c2_58, %c0_59, %c0_60] : memref<1x16x9x8xf32, #tpu.memory_space<vmem>>, vector<1x1x8x4xf32>
    %52 = vector.shape_cast %51 : vector<1x1x8x4xf32> to vector<8x4xf32>
    %c0_61 = arith.constant 0 : index
    %c0_62 = arith.constant 0 : index
    %53 = vector.load %arg4[%c0_61, %c0_62] : memref<36x8xf32, #tpu.memory_space<vmem>>, vector<4x8xf32>
    %cst_63 = arith.constant dense<0.000000e+00> : vector<8x8xf32>
    %54 = tpu.matmul %52, %53, %cst_63 {dimension_numbers = #tpu.dot_dimension_numbers<[1], [0], [0], [1], [0, 0, 1, 1], [], []>} : vector<8x4xf32>, vector<4x8xf32>, vector<8x8xf32> -> vector<8x8xf32>
    %55 = arith.addf %2, %54 : vector<8x8xf32>
    %c0_64 = arith.constant 0 : index
    %c2_65 = arith.constant 2 : index
    %c0_66 = arith.constant 0 : index
    %c4_67 = arith.constant 4 : index
    %56 = vector.load %arg2[%c0_64, %c2_65, %c0_66, %c4_67] : memref<1x16x9x8xf32, #tpu.memory_space<vmem>>, vector<1x1x8x4xf32>
    %57 = vector.shape_cast %56 : vector<1x1x8x4xf32> to vector<8x4xf32>
    %c4_68 = arith.constant 4 : index
    %c0_69 = arith.constant 0 : index
    %58 = vector.load %arg4[%c4_68, %c0_69] : memref<36x8xf32, #tpu.memory_space<vmem>>, vector<4x8xf32>
    %cst_70 = arith.constant dense<0.000000e+00> : vector<8x8xf32>
    %59 = tpu.matmul %57, %58, %cst_70 {dimension_numbers = #tpu.dot_dimension_numbers<[1], [0], [0], [1], [0, 0, 1, 1], [], []>} : vector<8x4xf32>, vector<4x8xf32>, vector<8x8xf32> -> vector<8x8xf32>
    %60 = arith.addf %55, %59 : vector<8x8xf32>
    %c0_71 = arith.constant 0 : index
    %c2_72 = arith.constant 2 : index
    %c1_73 = arith.constant 1 : index
    %c0_74 = arith.constant 0 : index
    %61 = vector.load %arg2[%c0_71, %c2_72, %c1_73, %c0_74] : memref<1x16x9x8xf32, #tpu.memory_space<vmem>>, vector<1x1x8x4xf32>
    %62 = vector.shape_cast %61 : vector<1x1x8x4xf32> to vector<8x4xf32>
    %c8_75 = arith.constant 8 : index
    %c0_76 = arith.constant 0 : index
    %63 = vector.load %arg4[%c8_75, %c0_76] : memref<36x8xf32, #tpu.memory_space<vmem>>, vector<4x8xf32>
    %cst_77 = arith.constant dense<0.000000e+00> : vector<8x8xf32>
    %64 = tpu.matmul %62, %63, %cst_77 {dimension_numbers = #tpu.dot_dimension_numbers<[1], [0], [0], [1], [0, 0, 1, 1], [], []>} : vector<8x4xf32>, vector<4x8xf32>, vector<8x8xf32> -> vector<8x8xf32>
    %65 = arith.addf %60, %64 : vector<8x8xf32>
    %c0_78 = arith.constant 0 : index
    %c3 = arith.constant 3 : index
    %c0_79 = arith.constant 0 : index
    %c0_80 = arith.constant 0 : index
    %66 = vector.load %arg2[%c0_78, %c3, %c0_79, %c0_80] : memref<1x16x9x8xf32, #tpu.memory_space<vmem>>, vector<1x1x8x4xf32>
    %67 = vector.shape_cast %66 : vector<1x1x8x4xf32> to vector<8x4xf32>
    %c12_81 = arith.constant 12 : index
    %c0_82 = arith.constant 0 : index
    %68 = vector.load %arg4[%c12_81, %c0_82] : memref<36x8xf32, #tpu.memory_space<vmem>>, vector<4x8xf32>
    %cst_83 = arith.constant dense<0.000000e+00> : vector<8x8xf32>
    %69 = tpu.matmul %67, %68, %cst_83 {dimension_numbers = #tpu.dot_dimension_numbers<[1], [0], [0], [1], [0, 0, 1, 1], [], []>} : vector<8x4xf32>, vector<4x8xf32>, vector<8x8xf32> -> vector<8x8xf32>
    %70 = arith.addf %65, %69 : vector<8x8xf32>
    %c0_84 = arith.constant 0 : index
    %c3_85 = arith.constant 3 : index
    %c0_86 = arith.constant 0 : index
    %c4_87 = arith.constant 4 : index
    %71 = vector.load %arg2[%c0_84, %c3_85, %c0_86, %c4_87] : memref<1x16x9x8xf32, #tpu.memory_space<vmem>>, vector<1x1x8x4xf32>
    %72 = vector.shape_cast %71 : vector<1x1x8x4xf32> to vector<8x4xf32>
    %c16_88 = arith.constant 16 : index
    %c0_89 = arith.constant 0 : index
    %73 = vector.load %arg4[%c16_88, %c0_89] : memref<36x8xf32, #tpu.memory_space<vmem>>, vector<4x8xf32>
    %cst_90 = arith.constant dense<0.000000e+00> : vector<8x8xf32>
    %74 = tpu.matmul %72, %73, %cst_90 {dimension_numbers = #tpu.dot_dimension_numbers<[1], [0], [0], [1], [0, 0, 1, 1], [], []>} : vector<8x4xf32>, vector<4x8xf32>, vector<8x8xf32> -> vector<8x8xf32>
    %75 = arith.addf %70, %74 : vector<8x8xf32>
    %c0_91 = arith.constant 0 : index
    %c3_92 = arith.constant 3 : index
    %c1_93 = arith.constant 1 : index
    %c0_94 = arith.constant 0 : index
    %76 = vector.load %arg2[%c0_91, %c3_92, %c1_93, %c0_94] : memref<1x16x9x8xf32, #tpu.memory_space<vmem>>, vector<1x1x8x4xf32>
    %77 = vector.shape_cast %76 : vector<1x1x8x4xf32> to vector<8x4xf32>
    %c20_95 = arith.constant 20 : index
    %c0_96 = arith.constant 0 : index
    %78 = vector.load %arg4[%c20_95, %c0_96] : memref<36x8xf32, #tpu.memory_space<vmem>>, vector<4x8xf32>
    %cst_97 = arith.constant dense<0.000000e+00> : vector<8x8xf32>
    %79 = tpu.matmul %77, %78, %cst_97 {dimension_numbers = #tpu.dot_dimension_numbers<[1], [0], [0], [1], [0, 0, 1, 1], [], []>} : vector<8x4xf32>, vector<4x8xf32>, vector<8x8xf32> -> vector<8x8xf32>
    %80 = arith.addf %75, %79 : vector<8x8xf32>
    %c0_98 = arith.constant 0 : index
    %c4_99 = arith.constant 4 : index
    %c0_100 = arith.constant 0 : index
    %c0_101 = arith.constant 0 : index
    %81 = vector.load %arg2[%c0_98, %c4_99, %c0_100, %c0_101] : memref<1x16x9x8xf32, #tpu.memory_space<vmem>>, vector<1x1x8x4xf32>
    %82 = vector.shape_cast %81 : vector<1x1x8x4xf32> to vector<8x4xf32>
    %c24_102 = arith.constant 24 : index
    %c0_103 = arith.constant 0 : index
    %83 = vector.load %arg4[%c24_102, %c0_103] : memref<36x8xf32, #tpu.memory_space<vmem>>, vector<4x8xf32>
    %cst_104 = arith.constant dense<0.000000e+00> : vector<8x8xf32>
    %84 = tpu.matmul %82, %83, %cst_104 {dimension_numbers = #tpu.dot_dimension_numbers<[1], [0], [0], [1], [0, 0, 1, 1], [], []>} : vector<8x4xf32>, vector<4x8xf32>, vector<8x8xf32> -> vector<8x8xf32>
    %85 = arith.addf %80, %84 : vector<8x8xf32>
    %c0_105 = arith.constant 0 : index
    %c4_106 = arith.constant 4 : index
    %c0_107 = arith.constant 0 : index
    %c4_108 = arith.constant 4 : index
    %86 = vector.load %arg2[%c0_105, %c4_106, %c0_107, %c4_108] : memref<1x16x9x8xf32, #tpu.memory_space<vmem>>, vector<1x1x8x4xf32>
    %87 = vector.shape_cast %86 : vector<1x1x8x4xf32> to vector<8x4xf32>
    %c28_109 = arith.constant 28 : index
    %c0_110 = arith.constant 0 : index
    %88 = vector.load %arg4[%c28_109, %c0_110] : memref<36x8xf32, #tpu.memory_space<vmem>>, vector<4x8xf32>
    %cst_111 = arith.constant dense<0.000000e+00> : vector<8x8xf32>
    %89 = tpu.matmul %87, %88, %cst_111 {dimension_numbers = #tpu.dot_dimension_numbers<[1], [0], [0], [1], [0, 0, 1, 1], [], []>} : vector<8x4xf32>, vector<4x8xf32>, vector<8x8xf32> -> vector<8x8xf32>
    %90 = arith.addf %85, %89 : vector<8x8xf32>
    %c0_112 = arith.constant 0 : index
    %c4_113 = arith.constant 4 : index
    %c1_114 = arith.constant 1 : index
    %c0_115 = arith.constant 0 : index
    %91 = vector.load %arg2[%c0_112, %c4_113, %c1_114, %c0_115] : memref<1x16x9x8xf32, #tpu.memory_space<vmem>>, vector<1x1x8x4xf32>
    %92 = vector.shape_cast %91 : vector<1x1x8x4xf32> to vector<8x4xf32>
    %c32_116 = arith.constant 32 : index
    %c0_117 = arith.constant 0 : index
    %93 = vector.load %arg4[%c32_116, %c0_117] : memref<36x8xf32, #tpu.memory_space<vmem>>, vector<4x8xf32>
    %cst_118 = arith.constant dense<0.000000e+00> : vector<8x8xf32>
    %94 = tpu.matmul %92, %93, %cst_118 {dimension_numbers = #tpu.dot_dimension_numbers<[1], [0], [0], [1], [0, 0, 1, 1], [], []>} : vector<8x4xf32>, vector<4x8xf32>, vector<8x8xf32> -> vector<8x8xf32>
    %95 = arith.addf %90, %94 : vector<8x8xf32>
    %c0_119 = arith.constant 0 : index
    %c1_120 = arith.constant 1 : index
    %c0_121 = arith.constant 0 : index
    %c0_122 = arith.constant 0 : index
    %96 = vector.load %arg6[%c0_119, %c1_120, %c0_121, %c0_122] : memref<1x8x8x8xf32, #tpu.memory_space<vmem>>, vector<1x1x8x8xf32>
    %97 = vector.shape_cast %96 : vector<1x1x8x8xf32> to vector<8x8xf32>
    %98 = vector.shape_cast %95 : vector<8x8xf32> to vector<1x1x8x8xf32>
    tpu.vector_store %arg6[%c0_119, %c1_120, %c0_121, %c0_122], %98 {strides = array<i32>} : memref<1x8x8x8xf32, #tpu.memory_space<vmem>>, vector<1x1x8x8xf32>,
    %c0_123 = arith.constant 0 : index
    %c4_124 = arith.constant 4 : index
    %c0_125 = arith.constant 0 : index
    %c0_126 = arith.constant 0 : index
    %99 = vector.load %arg2[%c0_123, %c4_124, %c0_125, %c0_126] : memref<1x16x9x8xf32, #tpu.memory_space<vmem>>, vector<1x1x8x4xf32>
    %100 = vector.shape_cast %99 : vector<1x1x8x4xf32> to vector<8x4xf32>
    %c0_127 = arith.constant 0 : index
    %c0_128 = arith.constant 0 : index
    %101 = vector.load %arg4[%c0_127, %c0_128] : memref<36x8xf32, #tpu.memory_space<vmem>>, vector<4x8xf32>
    %cst_129 = arith.constant dense<0.000000e+00> : vector<8x8xf32>
    %102 = tpu.matmul %100, %101, %cst_129 {dimension_numbers = #tpu.dot_dimension_numbers<[1], [0], [0], [1], [0, 0, 1, 1], [], []>} : vector<8x4xf32>, vector<4x8xf32>, vector<8x8xf32> -> vector<8x8xf32>
    %103 = arith.addf %2, %102 : vector<8x8xf32>
    %c0_130 = arith.constant 0 : index
    %c4_131 = arith.constant 4 : index
    %c0_132 = arith.constant 0 : index
    %c4_133 = arith.constant 4 : index
    %104 = vector.load %arg2[%c0_130, %c4_131, %c0_132, %c4_133] : memref<1x16x9x8xf32, #tpu.memory_space<vmem>>, vector<1x1x8x4xf32>
    %105 = vector.shape_cast %104 : vector<1x1x8x4xf32> to vector<8x4xf32>
    %c4_134 = arith.constant 4 : index
    %c0_135 = arith.constant 0 : index
    %106 = vector.load %arg4[%c4_134, %c0_135] : memref<36x8xf32, #tpu.memory_space<vmem>>, vector<4x8xf32>
    %cst_136 = arith.constant dense<0.000000e+00> : vector<8x8xf32>
    %107 = tpu.matmul %105, %106, %cst_136 {dimension_numbers = #tpu.dot_dimension_numbers<[1], [0], [0], [1], [0, 0, 1, 1], [], []>} : vector<8x4xf32>, vector<4x8xf32>, vector<8x8xf32> -> vector<8x8xf32>
    %108 = arith.addf %103, %107 : vector<8x8xf32>
    %c0_137 = arith.constant 0 : index
    %c4_138 = arith.constant 4 : index
    %c1_139 = arith.constant 1 : index
    %c0_140 = arith.constant 0 : index
    %109 = vector.load %arg2[%c0_137, %c4_138, %c1_139, %c0_140] : memref<1x16x9x8xf32, #tpu.memory_space<vmem>>, vector<1x1x8x4xf32>
    %110 = vector.shape_cast %109 : vector<1x1x8x4xf32> to vector<8x4xf32>
    %c8_141 = arith.constant 8 : index
    %c0_142 = arith.constant 0 : index
    %111 = vector.load %arg4[%c8_141, %c0_142] : memref<36x8xf32, #tpu.memory_space<vmem>>, vector<4x8xf32>
    %cst_143 = arith.constant dense<0.000000e+00> : vector<8x8xf32>
    %112 = tpu.matmul %110, %111, %cst_143 {dimension_numbers = #tpu.dot_dimension_numbers<[1], [0], [0], [1], [0, 0, 1, 1], [], []>} : vector<8x4xf32>, vector<4x8xf32>, vector<8x8xf32> -> vector<8x8xf32>
    %113 = arith.addf %108, %112 : vector<8x8xf32>
    %c0_144 = arith.constant 0 : index
    %c5 = arith.constant 5 : index
    %c0_145 = arith.constant 0 : index
    %c0_146 = arith.constant 0 : index
    %114 = vector.load %arg2[%c0_144, %c5, %c0_145, %c0_146] : memref<1x16x9x8xf32, #tpu.memory_space<vmem>>, vector<1x1x8x4xf32>
    %115 = vector.shape_cast %114 : vector<1x1x8x4xf32> to vector<8x4xf32>
    %c12_147 = arith.constant 12 : index
    %c0_148 = arith.constant 0 : index
    %116 = vector.load %arg4[%c12_147, %c0_148] : memref<36x8xf32, #tpu.memory_space<vmem>>, vector<4x8xf32>
    %cst_149 = arith.constant dense<0.000000e+00> : vector<8x8xf32>
    %117 = tpu.matmul %115, %116, %cst_149 {dimension_numbers = #tpu.dot_dimension_numbers<[1], [0], [0], [1], [0, 0, 1, 1], [], []>} : vector<8x4xf32>, vector<4x8xf32>, vector<8x8xf32> -> vector<8x8xf32>
    %118 = arith.addf %113, %117 : vector<8x8xf32>
    %c0_150 = arith.constant 0 : index
    %c5_151 = arith.constant 5 : index
    %c0_152 = arith.constant 0 : index
    %c4_153 = arith.constant 4 : index
    %119 = vector.load %arg2[%c0_150, %c5_151, %c0_152, %c4_153] : memref<1x16x9x8xf32, #tpu.memory_space<vmem>>, vector<1x1x8x4xf32>
    %120 = vector.shape_cast %119 : vector<1x1x8x4xf32> to vector<8x4xf32>
    %c16_154 = arith.constant 16 : index
    %c0_155 = arith.constant 0 : index
    %121 = vector.load %arg4[%c16_154, %c0_155] : memref<36x8xf32, #tpu.memory_space<vmem>>, vector<4x8xf32>
    %cst_156 = arith.constant dense<0.000000e+00> : vector<8x8xf32>
    %122 = tpu.matmul %120, %121, %cst_156 {dimension_numbers = #tpu.dot_dimension_numbers<[1], [0], [0], [1], [0, 0, 1, 1], [], []>} : vector<8x4xf32>, vector<4x8xf32>, vector<8x8xf32> -> vector<8x8xf32>
    %123 = arith.addf %118, %122 : vector<8x8xf32>
    %c0_157 = arith.constant 0 : index
    %c5_158 = arith.constant 5 : index
    %c1_159 = arith.constant 1 : index
    %c0_160 = arith.constant 0 : index
    %124 = vector.load %arg2[%c0_157, %c5_158, %c1_159, %c0_160] : memref<1x16x9x8xf32, #tpu.memory_space<vmem>>, vector<1x1x8x4xf32>
    %125 = vector.shape_cast %124 : vector<1x1x8x4xf32> to vector<8x4xf32>
    %c20_161 = arith.constant 20 : index
    %c0_162 = arith.constant 0 : index
    %126 = vector.load %arg4[%c20_161, %c0_162] : memref<36x8xf32, #tpu.memory_space<vmem>>, vector<4x8xf32>
    %cst_163 = arith.constant dense<0.000000e+00> : vector<8x8xf32>
    %127 = tpu.matmul %125, %126, %cst_163 {dimension_numbers = #tpu.dot_dimension_numbers<[1], [0], [0], [1], [0, 0, 1, 1], [], []>} : vector<8x4xf32>, vector<4x8xf32>, vector<8x8xf32> -> vector<8x8xf32>
    %128 = arith.addf %123, %127 : vector<8x8xf32>
    %c0_164 = arith.constant 0 : index
    %c6 = arith.constant 6 : index
    %c0_165 = arith.constant 0 : index
    %c0_166 = arith.constant 0 : index
    %129 = vector.load %arg2[%c0_164, %c6, %c0_165, %c0_166] : memref<1x16x9x8xf32, #tpu.memory_space<vmem>>, vector<1x1x8x4xf32>
    %130 = vector.shape_cast %129 : vector<1x1x8x4xf32> to vector<8x4xf32>
    %c24_167 = arith.constant 24 : index
    %c0_168 = arith.constant 0 : index
    %131 = vector.load %arg4[%c24_167, %c0_168] : memref<36x8xf32, #tpu.memory_space<vmem>>, vector<4x8xf32>
    %cst_169 = arith.constant dense<0.000000e+00> : vector<8x8xf32>
    %132 = tpu.matmul %130, %131, %cst_169 {dimension_numbers = #tpu.dot_dimension_numbers<[1], [0], [0], [1], [0, 0, 1, 1], [], []>} : vector<8x4xf32>, vector<4x8xf32>, vector<8x8xf32> -> vector<8x8xf32>
    %133 = arith.addf %128, %132 : vector<8x8xf32>
    %c0_170 = arith.constant 0 : index
    %c6_171 = arith.constant 6 : index
    %c0_172 = arith.constant 0 : index
    %c4_173 = arith.constant 4 : index
    %134 = vector.load %arg2[%c0_170, %c6_171, %c0_172, %c4_173] : memref<1x16x9x8xf32, #tpu.memory_space<vmem>>, vector<1x1x8x4xf32>
    %135 = vector.shape_cast %134 : vector<1x1x8x4xf32> to vector<8x4xf32>
    %c28_174 = arith.constant 28 : index
    %c0_175 = arith.constant 0 : index
    %136 = vector.load %arg4[%c28_174, %c0_175] : memref<36x8xf32, #tpu.memory_space<vmem>>, vector<4x8xf32>
    %cst_176 = arith.constant dense<0.000000e+00> : vector<8x8xf32>
    %137 = tpu.matmul %135, %136, %cst_176 {dimension_numbers = #tpu.dot_dimension_numbers<[1], [0], [0], [1], [0, 0, 1, 1], [], []>} : vector<8x4xf32>, vector<4x8xf32>, vector<8x8xf32> -> vector<8x8xf32>
    %138 = arith.addf %133, %137 : vector<8x8xf32>
    %c0_177 = arith.constant 0 : index
    %c6_178 = arith.constant 6 : index
    %c1_179 = arith.constant 1 : index
    %c0_180 = arith.constant 0 : index
    %139 = vector.load %arg2[%c0_177, %c6_178, %c1_179, %c0_180] : memref<1x16x9x8xf32, #tpu.memory_space<vmem>>, vector<1x1x8x4xf32>
    %140 = vector.shape_cast %139 : vector<1x1x8x4xf32> to vector<8x4xf32>
    %c32_181 = arith.constant 32 : index
    %c0_182 = arith.constant 0 : index
    %141 = vector.load %arg4[%c32_181, %c0_182] : memref<36x8xf32, #tpu.memory_space<vmem>>, vector<4x8xf32>
    %cst_183 = arith.constant dense<0.000000e+00> : vector<8x8xf32>
    %142 = tpu.matmul %140, %141, %cst_183 {dimension_numbers = #tpu.dot_dimension_numbers<[1], [0], [0], [1], [0, 0, 1, 1], [], []>} : vector<8x4xf32>, vector<4x8xf32>, vector<8x8xf32> -> vector<8x8xf32>
    %143 = arith.addf %138, %142 : vector<8x8xf32>
    %c0_184 = arith.constant 0 : index
    %c2_185 = arith.constant 2 : index
    %c0_186 = arith.constant 0 : index
    %c0_187 = arith.constant 0 : index
    %144 = vector.load %arg6[%c0_184, %c2_185, %c0_186, %c0_187] : memref<1x8x8x8xf32, #tpu.memory_space<vmem>>, vector<1x1x8x8xf32>
    %145 = vector.shape_cast %144 : vector<1x1x8x8xf32> to vector<8x8xf32>
    %146 = vector.shape_cast %143 : vector<8x8xf32> to vector<1x1x8x8xf32>
    tpu.vector_store %arg6[%c0_184, %c2_185, %c0_186, %c0_187], %146 {strides = array<i32>} : memref<1x8x8x8xf32, #tpu.memory_space<vmem>>, vector<1x1x8x8xf32>,
    %c0_188 = arith.constant 0 : index
    %c6_189 = arith.constant 6 : index
    %c0_190 = arith.constant 0 : index
    %c0_191 = arith.constant 0 : index
    %147 = vector.load %arg2[%c0_188, %c6_189, %c0_190, %c0_191] : memref<1x16x9x8xf32, #tpu.memory_space<vmem>>, vector<1x1x8x4xf32>
    %148 = vector.shape_cast %147 : vector<1x1x8x4xf32> to vector<8x4xf32>
    %c0_192 = arith.constant 0 : index
    %c0_193 = arith.constant 0 : index
    %149 = vector.load %arg4[%c0_192, %c0_193] : memref<36x8xf32, #tpu.memory_space<vmem>>, vector<4x8xf32>
    %cst_194 = arith.constant dense<0.000000e+00> : vector<8x8xf32>
    %150 = tpu.matmul %148, %149, %cst_194 {dimension_numbers = #tpu.dot_dimension_numbers<[1], [0], [0], [1], [0, 0, 1, 1], [], []>} : vector<8x4xf32>, vector<4x8xf32>, vector<8x8xf32> -> vector<8x8xf32>
    %151 = arith.addf %2, %150 : vector<8x8xf32>
    %c0_195 = arith.constant 0 : index
    %c6_196 = arith.constant 6 : index
    %c0_197 = arith.constant 0 : index
    %c4_198 = arith.constant 4 : index
    %152 = vector.load %arg2[%c0_195, %c6_196, %c0_197, %c4_198] : memref<1x16x9x8xf32, #tpu.memory_space<vmem>>, vector<1x1x8x4xf32>
    %153 = vector.shape_cast %152 : vector<1x1x8x4xf32> to vector<8x4xf32>
    %c4_199 = arith.constant 4 : index
    %c0_200 = arith.constant 0 : index
    %154 = vector.load %arg4[%c4_199, %c0_200] : memref<36x8xf32, #tpu.memory_space<vmem>>, vector<4x8xf32>
    %cst_201 = arith.constant dense<0.000000e+00> : vector<8x8xf32>
    %155 = tpu.matmul %153, %154, %cst_201 {dimension_numbers = #tpu.dot_dimension_numbers<[1], [0], [0], [1], [0, 0, 1, 1], [], []>} : vector<8x4xf32>, vector<4x8xf32>, vector<8x8xf32> -> vector<8x8xf32>
    %156 = arith.addf %151, %155 : vector<8x8xf32>
    %c0_202 = arith.constant 0 : index
    %c6_203 = arith.constant 6 : index
    %c1_204 = arith.constant 1 : index
    %c0_205 = arith.constant 0 : index
    %157 = vector.load %arg2[%c0_202, %c6_203, %c1_204, %c0_205] : memref<1x16x9x8xf32, #tpu.memory_space<vmem>>, vector<1x1x8x4xf32>
    %158 = vector.shape_cast %157 : vector<1x1x8x4xf32> to vector<8x4xf32>
    %c8_206 = arith.constant 8 : index
    %c0_207 = arith.constant 0 : index
    %159 = vector.load %arg4[%c8_206, %c0_207] : memref<36x8xf32, #tpu.memory_space<vmem>>, vector<4x8xf32>
    %cst_208 = arith.constant dense<0.000000e+00> : vector<8x8xf32>
    %160 = tpu.matmul %158, %159, %cst_208 {dimension_numbers = #tpu.dot_dimension_numbers<[1], [0], [0], [1], [0, 0, 1, 1], [], []>} : vector<8x4xf32>, vector<4x8xf32>, vector<8x8xf32> -> vector<8x8xf32>
    %161 = arith.addf %156, %160 : vector<8x8xf32>
    %c0_209 = arith.constant 0 : index
    %c7 = arith.constant 7 : index
    %c0_210 = arith.constant 0 : index
    %c0_211 = arith.constant 0 : index
    %162 = vector.load %arg2[%c0_209, %c7, %c0_210, %c0_211] : memref<1x16x9x8xf32, #tpu.memory_space<vmem>>, vector<1x1x8x4xf32>
    %163 = vector.shape_cast %162 : vector<1x1x8x4xf32> to vector<8x4xf32>
    %c12_212 = arith.constant 12 : index
    %c0_213 = arith.constant 0 : index
    %164 = vector.load %arg4[%c12_212, %c0_213] : memref<36x8xf32, #tpu.memory_space<vmem>>, vector<4x8xf32>
    %cst_214 = arith.constant dense<0.000000e+00> : vector<8x8xf32>
    %165 = tpu.matmul %163, %164, %cst_214 {dimension_numbers = #tpu.dot_dimension_numbers<[1], [0], [0], [1], [0, 0, 1, 1], [], []>} : vector<8x4xf32>, vector<4x8xf32>, vector<8x8xf32> -> vector<8x8xf32>
    %166 = arith.addf %161, %165 : vector<8x8xf32>
    %c0_215 = arith.constant 0 : index
    %c7_216 = arith.constant 7 : index
    %c0_217 = arith.constant 0 : index
    %c4_218 = arith.constant 4 : index
    %167 = vector.load %arg2[%c0_215, %c7_216, %c0_217, %c4_218] : memref<1x16x9x8xf32, #tpu.memory_space<vmem>>, vector<1x1x8x4xf32>
    %168 = vector.shape_cast %167 : vector<1x1x8x4xf32> to vector<8x4xf32>
    %c16_219 = arith.constant 16 : index
    %c0_220 = arith.constant 0 : index
    %169 = vector.load %arg4[%c16_219, %c0_220] : memref<36x8xf32, #tpu.memory_space<vmem>>, vector<4x8xf32>
    %cst_221 = arith.constant dense<0.000000e+00> : vector<8x8xf32>
    %170 = tpu.matmul %168, %169, %cst_221 {dimension_numbers = #tpu.dot_dimension_numbers<[1], [0], [0], [1], [0, 0, 1, 1], [], []>} : vector<8x4xf32>, vector<4x8xf32>, vector<8x8xf32> -> vector<8x8xf32>
    %171 = arith.addf %166, %170 : vector<8x8xf32>
    %c0_222 = arith.constant 0 : index
    %c7_223 = arith.constant 7 : index
    %c1_224 = arith.constant 1 : index
    %c0_225 = arith.constant 0 : index
    %172 = vector.load %arg2[%c0_222, %c7_223, %c1_224, %c0_225] : memref<1x16x9x8xf32, #tpu.memory_space<vmem>>, vector<1x1x8x4xf32>
    %173 = vector.shape_cast %172 : vector<1x1x8x4xf32> to vector<8x4xf32>
    %c20_226 = arith.constant 20 : index
    %c0_227 = arith.constant 0 : index
    %174 = vector.load %arg4[%c20_226, %c0_227] : memref<36x8xf32, #tpu.memory_space<vmem>>, vector<4x8xf32>
    %cst_228 = arith.constant dense<0.000000e+00> : vector<8x8xf32>
    %175 = tpu.matmul %173, %174, %cst_228 {dimension_numbers = #tpu.dot_dimension_numbers<[1], [0], [0], [1], [0, 0, 1, 1], [], []>} : vector<8x4xf32>, vector<4x8xf32>, vector<8x8xf32> -> vector<8x8xf32>
    %176 = arith.addf %171, %175 : vector<8x8xf32>
    %c0_229 = arith.constant 0 : index
    %c8_230 = arith.constant 8 : index
    %c0_231 = arith.constant 0 : index
    %c0_232 = arith.constant 0 : index
    %177 = vector.load %arg2[%c0_229, %c8_230, %c0_231, %c0_232] : memref<1x16x9x8xf32, #tpu.memory_space<vmem>>, vector<1x1x8x4xf32>
    %178 = vector.shape_cast %177 : vector<1x1x8x4xf32> to vector<8x4xf32>
    %c24_233 = arith.constant 24 : index
    %c0_234 = arith.constant 0 : index
    %179 = vector.load %arg4[%c24_233, %c0_234] : memref<36x8xf32, #tpu.memory_space<vmem>>, vector<4x8xf32>
    %cst_235 = arith.constant dense<0.000000e+00> : vector<8x8xf32>
    %180 = tpu.matmul %178, %179, %cst_235 {dimension_numbers = #tpu.dot_dimension_numbers<[1], [0], [0], [1], [0, 0, 1, 1], [], []>} : vector<8x4xf32>, vector<4x8xf32>, vector<8x8xf32> -> vector<8x8xf32>
    %181 = arith.addf %176, %180 : vector<8x8xf32>
    %c0_236 = arith.constant 0 : index
    %c8_237 = arith.constant 8 : index
    %c0_238 = arith.constant 0 : index
    %c4_239 = arith.constant 4 : index
    %182 = vector.load %arg2[%c0_236, %c8_237, %c0_238, %c4_239] : memref<1x16x9x8xf32, #tpu.memory_space<vmem>>, vector<1x1x8x4xf32>
    %183 = vector.shape_cast %182 : vector<1x1x8x4xf32> to vector<8x4xf32>
    %c28_240 = arith.constant 28 : index
    %c0_241 = arith.constant 0 : index
    %184 = vector.load %arg4[%c28_240, %c0_241] : memref<36x8xf32, #tpu.memory_space<vmem>>, vector<4x8xf32>
    %cst_242 = arith.constant dense<0.000000e+00> : vector<8x8xf32>
    %185 = tpu.matmul %183, %184, %cst_242 {dimension_numbers = #tpu.dot_dimension_numbers<[1], [0], [0], [1], [0, 0, 1, 1], [], []>} : vector<8x4xf32>, vector<4x8xf32>, vector<8x8xf32> -> vector<8x8xf32>
    %186 = arith.addf %181, %185 : vector<8x8xf32>
    %c0_243 = arith.constant 0 : index
    %c8_244 = arith.constant 8 : index
    %c1_245 = arith.constant 1 : index
    %c0_246 = arith.constant 0 : index
    %187 = vector.load %arg2[%c0_243, %c8_244, %c1_245, %c0_246] : memref<1x16x9x8xf32, #tpu.memory_space<vmem>>, vector<1x1x8x4xf32>
    %188 = vector.shape_cast %187 : vector<1x1x8x4xf32> to vector<8x4xf32>
    %c32_247 = arith.constant 32 : index
    %c0_248 = arith.constant 0 : index
    %189 = vector.load %arg4[%c32_247, %c0_248] : memref<36x8xf32, #tpu.memory_space<vmem>>, vector<4x8xf32>
    %cst_249 = arith.constant dense<0.000000e+00> : vector<8x8xf32>
    %190 = tpu.matmul %188, %189, %cst_249 {dimension_numbers = #tpu.dot_dimension_numbers<[1], [0], [0], [1], [0, 0, 1, 1], [], []>} : vector<8x4xf32>, vector<4x8xf32>, vector<8x8xf32> -> vector<8x8xf32>
    %191 = arith.addf %186, %190 : vector<8x8xf32>
    %c0_250 = arith.constant 0 : index
    %c3_251 = arith.constant 3 : index
    %c0_252 = arith.constant 0 : index
    %c0_253 = arith.constant 0 : index
    %192 = vector.load %arg6[%c0_250, %c3_251, %c0_252, %c0_253] : memref<1x8x8x8xf32, #tpu.memory_space<vmem>>, vector<1x1x8x8xf32>
    %193 = vector.shape_cast %192 : vector<1x1x8x8xf32> to vector<8x8xf32>
    %194 = vector.shape_cast %191 : vector<8x8xf32> to vector<1x1x8x8xf32>
    tpu.vector_store %arg6[%c0_250, %c3_251, %c0_252, %c0_253], %194 {strides = array<i32>} : memref<1x8x8x8xf32, #tpu.memory_space<vmem>>, vector<1x1x8x8xf32>,
    %c0_254 = arith.constant 0 : index
    %c8_255 = arith.constant 8 : index
    %c0_256 = arith.constant 0 : index
    %c0_257 = arith.constant 0 : index
    %195 = vector.load %arg2[%c0_254, %c8_255, %c0_256, %c0_257] : memref<1x16x9x8xf32, #tpu.memory_space<vmem>>, vector<1x1x8x4xf32>
    %196 = vector.shape_cast %195 : vector<1x1x8x4xf32> to vector<8x4xf32>
    %c0_258 = arith.constant 0 : index
    %c0_259 = arith.constant 0 : index
    %197 = vector.load %arg4[%c0_258, %c0_259] : memref<36x8xf32, #tpu.memory_space<vmem>>, vector<4x8xf32>
    %cst_260 = arith.constant dense<0.000000e+00> : vector<8x8xf32>
    %198 = tpu.matmul %196, %197, %cst_260 {dimension_numbers = #tpu.dot_dimension_numbers<[1], [0], [0], [1], [0, 0, 1, 1], [], []>} : vector<8x4xf32>, vector<4x8xf32>, vector<8x8xf32> -> vector<8x8xf32>
    %199 = arith.addf %2, %198 : vector<8x8xf32>
    %c0_261 = arith.constant 0 : index
    %c8_262 = arith.constant 8 : index
    %c0_263 = arith.constant 0 : index
    %c4_264 = arith.constant 4 : index
    %200 = vector.load %arg2[%c0_261, %c8_262, %c0_263, %c4_264] : memref<1x16x9x8xf32, #tpu.memory_space<vmem>>, vector<1x1x8x4xf32>
    %201 = vector.shape_cast %200 : vector<1x1x8x4xf32> to vector<8x4xf32>
    %c4_265 = arith.constant 4 : index
    %c0_266 = arith.constant 0 : index
    %202 = vector.load %arg4[%c4_265, %c0_266] : memref<36x8xf32, #tpu.memory_space<vmem>>, vector<4x8xf32>
    %cst_267 = arith.constant dense<0.000000e+00> : vector<8x8xf32>
    %203 = tpu.matmul %201, %202, %cst_267 {dimension_numbers = #tpu.dot_dimension_numbers<[1], [0], [0], [1], [0, 0, 1, 1], [], []>} : vector<8x4xf32>, vector<4x8xf32>, vector<8x8xf32> -> vector<8x8xf32>
    %204 = arith.addf %199, %203 : vector<8x8xf32>
    %c0_268 = arith.constant 0 : index
    %c8_269 = arith.constant 8 : index
    %c1_270 = arith.constant 1 : index
    %c0_271 = arith.constant 0 : index
    %205 = vector.load %arg2[%c0_268, %c8_269, %c1_270, %c0_271] : memref<1x16x9x8xf32, #tpu.memory_space<vmem>>, vector<1x1x8x4xf32>
    %206 = vector.shape_cast %205 : vector<1x1x8x4xf32> to vector<8x4xf32>
    %c8_272 = arith.constant 8 : index
    %c0_273 = arith.constant 0 : index
    %207 = vector.load %arg4[%c8_272, %c0_273] : memref<36x8xf32, #tpu.memory_space<vmem>>, vector<4x8xf32>
    %cst_274 = arith.constant dense<0.000000e+00> : vector<8x8xf32>
    %208 = tpu.matmul %206, %207, %cst_274 {dimension_numbers = #tpu.dot_dimension_numbers<[1], [0], [0], [1], [0, 0, 1, 1], [], []>} : vector<8x4xf32>, vector<4x8xf32>, vector<8x8xf32> -> vector<8x8xf32>
    %209 = arith.addf %204, %208 : vector<8x8xf32>
    %c0_275 = arith.constant 0 : index
    %c9 = arith.constant 9 : index
    %c0_276 = arith.constant 0 : index
    %c0_277 = arith.constant 0 : index
    %210 = vector.load %arg2[%c0_275, %c9, %c0_276, %c0_277] : memref<1x16x9x8xf32, #tpu.memory_space<vmem>>, vector<1x1x8x4xf32>
    %211 = vector.shape_cast %210 : vector<1x1x8x4xf32> to vector<8x4xf32>
    %c12_278 = arith.constant 12 : index
    %c0_279 = arith.constant 0 : index
    %212 = vector.load %arg4[%c12_278, %c0_279] : memref<36x8xf32, #tpu.memory_space<vmem>>, vector<4x8xf32>
    %cst_280 = arith.constant dense<0.000000e+00> : vector<8x8xf32>
    %213 = tpu.matmul %211, %212, %cst_280 {dimension_numbers = #tpu.dot_dimension_numbers<[1], [0], [0], [1], [0, 0, 1, 1], [], []>} : vector<8x4xf32>, vector<4x8xf32>, vector<8x8xf32> -> vector<8x8xf32>
    %214 = arith.addf %209, %213 : vector<8x8xf32>
    %c0_281 = arith.constant 0 : index
    %c9_282 = arith.constant 9 : index
    %c0_283 = arith.constant 0 : index
    %c4_284 = arith.constant 4 : index
    %215 = vector.load %arg2[%c0_281, %c9_282, %c0_283, %c4_284] : memref<1x16x9x8xf32, #tpu.memory_space<vmem>>, vector<1x1x8x4xf32>
    %216 = vector.shape_cast %215 : vector<1x1x8x4xf32> to vector<8x4xf32>
    %c16_285 = arith.constant 16 : index
    %c0_286 = arith.constant 0 : index
    %217 = vector.load %arg4[%c16_285, %c0_286] : memref<36x8xf32, #tpu.memory_space<vmem>>, vector<4x8xf32>
    %cst_287 = arith.constant dense<0.000000e+00> : vector<8x8xf32>
    %218 = tpu.matmul %216, %217, %cst_287 {dimension_numbers = #tpu.dot_dimension_numbers<[1], [0], [0], [1], [0, 0, 1, 1], [], []>} : vector<8x4xf32>, vector<4x8xf32>, vector<8x8xf32> -> vector<8x8xf32>
    %219 = arith.addf %214, %218 : vector<8x8xf32>
    %c0_288 = arith.constant 0 : index
    %c9_289 = arith.constant 9 : index
    %c1_290 = arith.constant 1 : index
    %c0_291 = arith.constant 0 : index
    %220 = vector.load %arg2[%c0_288, %c9_289, %c1_290, %c0_291] : memref<1x16x9x8xf32, #tpu.memory_space<vmem>>, vector<1x1x8x4xf32>
    %221 = vector.shape_cast %220 : vector<1x1x8x4xf32> to vector<8x4xf32>
    %c20_292 = arith.constant 20 : index
    %c0_293 = arith.constant 0 : index
    %222 = vector.load %arg4[%c20_292, %c0_293] : memref<36x8xf32, #tpu.memory_space<vmem>>, vector<4x8xf32>
    %cst_294 = arith.constant dense<0.000000e+00> : vector<8x8xf32>
    %223 = tpu.matmul %221, %222, %cst_294 {dimension_numbers = #tpu.dot_dimension_numbers<[1], [0], [0], [1], [0, 0, 1, 1], [], []>} : vector<8x4xf32>, vector<4x8xf32>, vector<8x8xf32> -> vector<8x8xf32>
    %224 = arith.addf %219, %223 : vector<8x8xf32>
    %c0_295 = arith.constant 0 : index
    %c10 = arith.constant 10 : index
    %c0_296 = arith.constant 0 : index
    %c0_297 = arith.constant 0 : index
    %225 = vector.load %arg2[%c0_295, %c10, %c0_296, %c0_297] : memref<1x16x9x8xf32, #tpu.memory_space<vmem>>, vector<1x1x8x4xf32>
    %226 = vector.shape_cast %225 : vector<1x1x8x4xf32> to vector<8x4xf32>
    %c24_298 = arith.constant 24 : index
    %c0_299 = arith.constant 0 : index
    %227 = vector.load %arg4[%c24_298, %c0_299] : memref<36x8xf32, #tpu.memory_space<vmem>>, vector<4x8xf32>
    %cst_300 = arith.constant dense<0.000000e+00> : vector<8x8xf32>
    %228 = tpu.matmul %226, %227, %cst_300 {dimension_numbers = #tpu.dot_dimension_numbers<[1], [0], [0], [1], [0, 0, 1, 1], [], []>} : vector<8x4xf32>, vector<4x8xf32>, vector<8x8xf32> -> vector<8x8xf32>
    %229 = arith.addf %224, %228 : vector<8x8xf32>
    %c0_301 = arith.constant 0 : index
    %c10_302 = arith.constant 10 : index
    %c0_303 = arith.constant 0 : index
    %c4_304 = arith.constant 4 : index
    %230 = vector.load %arg2[%c0_301, %c10_302, %c0_303, %c4_304] : memref<1x16x9x8xf32, #tpu.memory_space<vmem>>, vector<1x1x8x4xf32>
    %231 = vector.shape_cast %230 : vector<1x1x8x4xf32> to vector<8x4xf32>
    %c28_305 = arith.constant 28 : index
    %c0_306 = arith.constant 0 : index
    %232 = vector.load %arg4[%c28_305, %c0_306] : memref<36x8xf32, #tpu.memory_space<vmem>>, vector<4x8xf32>
    %cst_307 = arith.constant dense<0.000000e+00> : vector<8x8xf32>
    %233 = tpu.matmul %231, %232, %cst_307 {dimension_numbers = #tpu.dot_dimension_numbers<[1], [0], [0], [1], [0, 0, 1, 1], [], []>} : vector<8x4xf32>, vector<4x8xf32>, vector<8x8xf32> -> vector<8x8xf32>
    %234 = arith.addf %229, %233 : vector<8x8xf32>
    %c0_308 = arith.constant 0 : index
    %c10_309 = arith.constant 10 : index
    %c1_310 = arith.constant 1 : index
    %c0_311 = arith.constant 0 : index
    %235 = vector.load %arg2[%c0_308, %c10_309, %c1_310, %c0_311] : memref<1x16x9x8xf32, #tpu.memory_space<vmem>>, vector<1x1x8x4xf32>
    %236 = vector.shape_cast %235 : vector<1x1x8x4xf32> to vector<8x4xf32>
    %c32_312 = arith.constant 32 : index
    %c0_313 = arith.constant 0 : index
    %237 = vector.load %arg4[%c32_312, %c0_313] : memref<36x8xf32, #tpu.memory_space<vmem>>, vector<4x8xf32>
    %cst_314 = arith.constant dense<0.000000e+00> : vector<8x8xf32>
    %238 = tpu.matmul %236, %237, %cst_314 {dimension_numbers = #tpu.dot_dimension_numbers<[1], [0], [0], [1], [0, 0, 1, 1], [], []>} : vector<8x4xf32>, vector<4x8xf32>, vector<8x8xf32> -> vector<8x8xf32>
    %239 = arith.addf %234, %238 : vector<8x8xf32>
    %c0_315 = arith.constant 0 : index
    %c4_316 = arith.constant 4 : index
    %c0_317 = arith.constant 0 : index
    %c0_318 = arith.constant 0 : index
    %240 = vector.load %arg6[%c0_315, %c4_316, %c0_317, %c0_318] : memref<1x8x8x8xf32, #tpu.memory_space<vmem>>, vector<1x1x8x8xf32>
    %241 = vector.shape_cast %240 : vector<1x1x8x8xf32> to vector<8x8xf32>
    %242 = vector.shape_cast %239 : vector<8x8xf32> to vector<1x1x8x8xf32>
    tpu.vector_store %arg6[%c0_315, %c4_316, %c0_317, %c0_318], %242 {strides = array<i32>} : memref<1x8x8x8xf32, #tpu.memory_space<vmem>>, vector<1x1x8x8xf32>,
    %c0_319 = arith.constant 0 : index
    %c10_320 = arith.constant 10 : index
    %c0_321 = arith.constant 0 : index
    %c0_322 = arith.constant 0 : index
    %243 = vector.load %arg2[%c0_319, %c10_320, %c0_321, %c0_322] : memref<1x16x9x8xf32, #tpu.memory_space<vmem>>, vector<1x1x8x4xf32>
    %244 = vector.shape_cast %243 : vector<1x1x8x4xf32> to vector<8x4xf32>
    %c0_323 = arith.constant 0 : index
    %c0_324 = arith.constant 0 : index
    %245 = vector.load %arg4[%c0_323, %c0_324] : memref<36x8xf32, #tpu.memory_space<vmem>>, vector<4x8xf32>
    %cst_325 = arith.constant dense<0.000000e+00> : vector<8x8xf32>
    %246 = tpu.matmul %244, %245, %cst_325 {dimension_numbers = #tpu.dot_dimension_numbers<[1], [0], [0], [1], [0, 0, 1, 1], [], []>} : vector<8x4xf32>, vector<4x8xf32>, vector<8x8xf32> -> vector<8x8xf32>
    %247 = arith.addf %2, %246 : vector<8x8xf32>
    %c0_326 = arith.constant 0 : index
    %c10_327 = arith.constant 10 : index
    %c0_328 = arith.constant 0 : index
    %c4_329 = arith.constant 4 : index
    %248 = vector.load %arg2[%c0_326, %c10_327, %c0_328, %c4_329] : memref<1x16x9x8xf32, #tpu.memory_space<vmem>>, vector<1x1x8x4xf32>
    %249 = vector.shape_cast %248 : vector<1x1x8x4xf32> to vector<8x4xf32>
    %c4_330 = arith.constant 4 : index
    %c0_331 = arith.constant 0 : index
    %250 = vector.load %arg4[%c4_330, %c0_331] : memref<36x8xf32, #tpu.memory_space<vmem>>, vector<4x8xf32>
    %cst_332 = arith.constant dense<0.000000e+00> : vector<8x8xf32>
    %251 = tpu.matmul %249, %250, %cst_332 {dimension_numbers = #tpu.dot_dimension_numbers<[1], [0], [0], [1], [0, 0, 1, 1], [], []>} : vector<8x4xf32>, vector<4x8xf32>, vector<8x8xf32> -> vector<8x8xf32>
    %252 = arith.addf %247, %251 : vector<8x8xf32>
    %c0_333 = arith.constant 0 : index
    %c10_334 = arith.constant 10 : index
    %c1_335 = arith.constant 1 : index
    %c0_336 = arith.constant 0 : index
    %253 = vector.load %arg2[%c0_333, %c10_334, %c1_335, %c0_336] : memref<1x16x9x8xf32, #tpu.memory_space<vmem>>, vector<1x1x8x4xf32>
    %254 = vector.shape_cast %253 : vector<1x1x8x4xf32> to vector<8x4xf32>
    %c8_337 = arith.constant 8 : index
    %c0_338 = arith.constant 0 : index
    %255 = vector.load %arg4[%c8_337, %c0_338] : memref<36x8xf32, #tpu.memory_space<vmem>>, vector<4x8xf32>
    %cst_339 = arith.constant dense<0.000000e+00> : vector<8x8xf32>
    %256 = tpu.matmul %254, %255, %cst_339 {dimension_numbers = #tpu.dot_dimension_numbers<[1], [0], [0], [1], [0, 0, 1, 1], [], []>} : vector<8x4xf32>, vector<4x8xf32>, vector<8x8xf32> -> vector<8x8xf32>
    %257 = arith.addf %252, %256 : vector<8x8xf32>
    %c0_340 = arith.constant 0 : index
    %c11 = arith.constant 11 : index
    %c0_341 = arith.constant 0 : index
    %c0_342 = arith.constant 0 : index
    %258 = vector.load %arg2[%c0_340, %c11, %c0_341, %c0_342] : memref<1x16x9x8xf32, #tpu.memory_space<vmem>>, vector<1x1x8x4xf32>
    %259 = vector.shape_cast %258 : vector<1x1x8x4xf32> to vector<8x4xf32>
    %c12_343 = arith.constant 12 : index
    %c0_344 = arith.constant 0 : index
    %260 = vector.load %arg4[%c12_343, %c0_344] : memref<36x8xf32, #tpu.memory_space<vmem>>, vector<4x8xf32>
    %cst_345 = arith.constant dense<0.000000e+00> : vector<8x8xf32>
    %261 = tpu.matmul %259, %260, %cst_345 {dimension_numbers = #tpu.dot_dimension_numbers<[1], [0], [0], [1], [0, 0, 1, 1], [], []>} : vector<8x4xf32>, vector<4x8xf32>, vector<8x8xf32> -> vector<8x8xf32>
    %262 = arith.addf %257, %261 : vector<8x8xf32>
    %c0_346 = arith.constant 0 : index
    %c11_347 = arith.constant 11 : index
    %c0_348 = arith.constant 0 : index
    %c4_349 = arith.constant 4 : index
    %263 = vector.load %arg2[%c0_346, %c11_347, %c0_348, %c4_349] : memref<1x16x9x8xf32, #tpu.memory_space<vmem>>, vector<1x1x8x4xf32>
    %264 = vector.shape_cast %263 : vector<1x1x8x4xf32> to vector<8x4xf32>
    %c16_350 = arith.constant 16 : index
    %c0_351 = arith.constant 0 : index
    %265 = vector.load %arg4[%c16_350, %c0_351] : memref<36x8xf32, #tpu.memory_space<vmem>>, vector<4x8xf32>
    %cst_352 = arith.constant dense<0.000000e+00> : vector<8x8xf32>
    %266 = tpu.matmul %264, %265, %cst_352 {dimension_numbers = #tpu.dot_dimension_numbers<[1], [0], [0], [1], [0, 0, 1, 1], [], []>} : vector<8x4xf32>, vector<4x8xf32>, vector<8x8xf32> -> vector<8x8xf32>
    %267 = arith.addf %262, %266 : vector<8x8xf32>
    %c0_353 = arith.constant 0 : index
    %c11_354 = arith.constant 11 : index
    %c1_355 = arith.constant 1 : index
    %c0_356 = arith.constant 0 : index
    %268 = vector.load %arg2[%c0_353, %c11_354, %c1_355, %c0_356] : memref<1x16x9x8xf32, #tpu.memory_space<vmem>>, vector<1x1x8x4xf32>
    %269 = vector.shape_cast %268 : vector<1x1x8x4xf32> to vector<8x4xf32>
    %c20_357 = arith.constant 20 : index
    %c0_358 = arith.constant 0 : index
    %270 = vector.load %arg4[%c20_357, %c0_358] : memref<36x8xf32, #tpu.memory_space<vmem>>, vector<4x8xf32>
    %cst_359 = arith.constant dense<0.000000e+00> : vector<8x8xf32>
    %271 = tpu.matmul %269, %270, %cst_359 {dimension_numbers = #tpu.dot_dimension_numbers<[1], [0], [0], [1], [0, 0, 1, 1], [], []>} : vector<8x4xf32>, vector<4x8xf32>, vector<8x8xf32> -> vector<8x8xf32>
    %272 = arith.addf %267, %271 : vector<8x8xf32>
    %c0_360 = arith.constant 0 : index
    %c12_361 = arith.constant 12 : index
    %c0_362 = arith.constant 0 : index
    %c0_363 = arith.constant 0 : index
    %273 = vector.load %arg2[%c0_360, %c12_361, %c0_362, %c0_363] : memref<1x16x9x8xf32, #tpu.memory_space<vmem>>, vector<1x1x8x4xf32>
    %274 = vector.shape_cast %273 : vector<1x1x8x4xf32> to vector<8x4xf32>
    %c24_364 = arith.constant 24 : index
    %c0_365 = arith.constant 0 : index
    %275 = vector.load %arg4[%c24_364, %c0_365] : memref<36x8xf32, #tpu.memory_space<vmem>>, vector<4x8xf32>
    %cst_366 = arith.constant dense<0.000000e+00> : vector<8x8xf32>
    %276 = tpu.matmul %274, %275, %cst_366 {dimension_numbers = #tpu.dot_dimension_numbers<[1], [0], [0], [1], [0, 0, 1, 1], [], []>} : vector<8x4xf32>, vector<4x8xf32>, vector<8x8xf32> -> vector<8x8xf32>
    %277 = arith.addf %272, %276 : vector<8x8xf32>
    %c0_367 = arith.constant 0 : index
    %c12_368 = arith.constant 12 : index
    %c0_369 = arith.constant 0 : index
    %c4_370 = arith.constant 4 : index
    %278 = vector.load %arg2[%c0_367, %c12_368, %c0_369, %c4_370] : memref<1x16x9x8xf32, #tpu.memory_space<vmem>>, vector<1x1x8x4xf32>
    %279 = vector.shape_cast %278 : vector<1x1x8x4xf32> to vector<8x4xf32>
    %c28_371 = arith.constant 28 : index
    %c0_372 = arith.constant 0 : index
    %280 = vector.load %arg4[%c28_371, %c0_372] : memref<36x8xf32, #tpu.memory_space<vmem>>, vector<4x8xf32>
    %cst_373 = arith.constant dense<0.000000e+00> : vector<8x8xf32>
    %281 = tpu.matmul %279, %280, %cst_373 {dimension_numbers = #tpu.dot_dimension_numbers<[1], [0], [0], [1], [0, 0, 1, 1], [], []>} : vector<8x4xf32>, vector<4x8xf32>, vector<8x8xf32> -> vector<8x8xf32>
    %282 = arith.addf %277, %281 : vector<8x8xf32>
    %c0_374 = arith.constant 0 : index
    %c12_375 = arith.constant 12 : index
    %c1_376 = arith.constant 1 : index
    %c0_377 = arith.constant 0 : index
    %283 = vector.load %arg2[%c0_374, %c12_375, %c1_376, %c0_377] : memref<1x16x9x8xf32, #tpu.memory_space<vmem>>, vector<1x1x8x4xf32>
    %284 = vector.shape_cast %283 : vector<1x1x8x4xf32> to vector<8x4xf32>
    %c32_378 = arith.constant 32 : index
    %c0_379 = arith.constant 0 : index
    %285 = vector.load %arg4[%c32_378, %c0_379] : memref<36x8xf32, #tpu.memory_space<vmem>>, vector<4x8xf32>
    %cst_380 = arith.constant dense<0.000000e+00> : vector<8x8xf32>
    %286 = tpu.matmul %284, %285, %cst_380 {dimension_numbers = #tpu.dot_dimension_numbers<[1], [0], [0], [1], [0, 0, 1, 1], [], []>} : vector<8x4xf32>, vector<4x8xf32>, vector<8x8xf32> -> vector<8x8xf32>
    %287 = arith.addf %282, %286 : vector<8x8xf32>
    %c0_381 = arith.constant 0 : index
    %c5_382 = arith.constant 5 : index
    %c0_383 = arith.constant 0 : index
    %c0_384 = arith.constant 0 : index
    %288 = vector.load %arg6[%c0_381, %c5_382, %c0_383, %c0_384] : memref<1x8x8x8xf32, #tpu.memory_space<vmem>>, vector<1x1x8x8xf32>
    %289 = vector.shape_cast %288 : vector<1x1x8x8xf32> to vector<8x8xf32>
    %290 = vector.shape_cast %287 : vector<8x8xf32> to vector<1x1x8x8xf32>
    tpu.vector_store %arg6[%c0_381, %c5_382, %c0_383, %c0_384], %290 {strides = array<i32>} : memref<1x8x8x8xf32, #tpu.memory_space<vmem>>, vector<1x1x8x8xf32>,
    %c0_385 = arith.constant 0 : index
    %c12_386 = arith.constant 12 : index
    %c0_387 = arith.constant 0 : index
    %c0_388 = arith.constant 0 : index
    %291 = vector.load %arg2[%c0_385, %c12_386, %c0_387, %c0_388] : memref<1x16x9x8xf32, #tpu.memory_space<vmem>>, vector<1x1x8x4xf32>
    %292 = vector.shape_cast %291 : vector<1x1x8x4xf32> to vector<8x4xf32>
    %c0_389 = arith.constant 0 : index
    %c0_390 = arith.constant 0 : index
    %293 = vector.load %arg4[%c0_389, %c0_390] : memref<36x8xf32, #tpu.memory_space<vmem>>, vector<4x8xf32>
    %cst_391 = arith.constant dense<0.000000e+00> : vector<8x8xf32>
    %294 = tpu.matmul %292, %293, %cst_391 {dimension_numbers = #tpu.dot_dimension_numbers<[1], [0], [0], [1], [0, 0, 1, 1], [], []>} : vector<8x4xf32>, vector<4x8xf32>, vector<8x8xf32> -> vector<8x8xf32>
    %295 = arith.addf %2, %294 : vector<8x8xf32>
    %c0_392 = arith.constant 0 : index
    %c12_393 = arith.constant 12 : index
    %c0_394 = arith.constant 0 : index
    %c4_395 = arith.constant 4 : index
    %296 = vector.load %arg2[%c0_392, %c12_393, %c0_394, %c4_395] : memref<1x16x9x8xf32, #tpu.memory_space<vmem>>, vector<1x1x8x4xf32>
    %297 = vector.shape_cast %296 : vector<1x1x8x4xf32> to vector<8x4xf32>
    %c4_396 = arith.constant 4 : index
    %c0_397 = arith.constant 0 : index
    %298 = vector.load %arg4[%c4_396, %c0_397] : memref<36x8xf32, #tpu.memory_space<vmem>>, vector<4x8xf32>
    %cst_398 = arith.constant dense<0.000000e+00> : vector<8x8xf32>
    %299 = tpu.matmul %297, %298, %cst_398 {dimension_numbers = #tpu.dot_dimension_numbers<[1], [0], [0], [1], [0, 0, 1, 1], [], []>} : vector<8x4xf32>, vector<4x8xf32>, vector<8x8xf32> -> vector<8x8xf32>
    %300 = arith.addf %295, %299 : vector<8x8xf32>
    %c0_399 = arith.constant 0 : index
    %c12_400 = arith.constant 12 : index
    %c1_401 = arith.constant 1 : index
    %c0_402 = arith.constant 0 : index
    %301 = vector.load %arg2[%c0_399, %c12_400, %c1_401, %c0_402] : memref<1x16x9x8xf32, #tpu.memory_space<vmem>>, vector<1x1x8x4xf32>
    %302 = vector.shape_cast %301 : vector<1x1x8x4xf32> to vector<8x4xf32>
    %c8_403 = arith.constant 8 : index
    %c0_404 = arith.constant 0 : index
    %303 = vector.load %arg4[%c8_403, %c0_404] : memref<36x8xf32, #tpu.memory_space<vmem>>, vector<4x8xf32>
    %cst_405 = arith.constant dense<0.000000e+00> : vector<8x8xf32>
    %304 = tpu.matmul %302, %303, %cst_405 {dimension_numbers = #tpu.dot_dimension_numbers<[1], [0], [0], [1], [0, 0, 1, 1], [], []>} : vector<8x4xf32>, vector<4x8xf32>, vector<8x8xf32> -> vector<8x8xf32>
    %305 = arith.addf %300, %304 : vector<8x8xf32>
    %c0_406 = arith.constant 0 : index
    %c13 = arith.constant 13 : index
    %c0_407 = arith.constant 0 : index
    %c0_408 = arith.constant 0 : index
    %306 = vector.load %arg2[%c0_406, %c13, %c0_407, %c0_408] : memref<1x16x9x8xf32, #tpu.memory_space<vmem>>, vector<1x1x8x4xf32>
    %307 = vector.shape_cast %306 : vector<1x1x8x4xf32> to vector<8x4xf32>
    %c12_409 = arith.constant 12 : index
    %c0_410 = arith.constant 0 : index
    %308 = vector.load %arg4[%c12_409, %c0_410] : memref<36x8xf32, #tpu.memory_space<vmem>>, vector<4x8xf32>
    %cst_411 = arith.constant dense<0.000000e+00> : vector<8x8xf32>
    %309 = tpu.matmul %307, %308, %cst_411 {dimension_numbers = #tpu.dot_dimension_numbers<[1], [0], [0], [1], [0, 0, 1, 1], [], []>} : vector<8x4xf32>, vector<4x8xf32>, vector<8x8xf32> -> vector<8x8xf32>
    %310 = arith.addf %305, %309 : vector<8x8xf32>
    %c0_412 = arith.constant 0 : index
    %c13_413 = arith.constant 13 : index
    %c0_414 = arith.constant 0 : index
    %c4_415 = arith.constant 4 : index
    %311 = vector.load %arg2[%c0_412, %c13_413, %c0_414, %c4_415] : memref<1x16x9x8xf32, #tpu.memory_space<vmem>>, vector<1x1x8x4xf32>
    %312 = vector.shape_cast %311 : vector<1x1x8x4xf32> to vector<8x4xf32>
    %c16_416 = arith.constant 16 : index
    %c0_417 = arith.constant 0 : index
    %313 = vector.load %arg4[%c16_416, %c0_417] : memref<36x8xf32, #tpu.memory_space<vmem>>, vector<4x8xf32>
    %cst_418 = arith.constant dense<0.000000e+00> : vector<8x8xf32>
    %314 = tpu.matmul %312, %313, %cst_418 {dimension_numbers = #tpu.dot_dimension_numbers<[1], [0], [0], [1], [0, 0, 1, 1], [], []>} : vector<8x4xf32>, vector<4x8xf32>, vector<8x8xf32> -> vector<8x8xf32>
    %315 = arith.addf %310, %314 : vector<8x8xf32>
    %c0_419 = arith.constant 0 : index
    %c13_420 = arith.constant 13 : index
    %c1_421 = arith.constant 1 : index
    %c0_422 = arith.constant 0 : index
    %316 = vector.load %arg2[%c0_419, %c13_420, %c1_421, %c0_422] : memref<1x16x9x8xf32, #tpu.memory_space<vmem>>, vector<1x1x8x4xf32>
    %317 = vector.shape_cast %316 : vector<1x1x8x4xf32> to vector<8x4xf32>
    %c20_423 = arith.constant 20 : index
    %c0_424 = arith.constant 0 : index
    %318 = vector.load %arg4[%c20_423, %c0_424] : memref<36x8xf32, #tpu.memory_space<vmem>>, vector<4x8xf32>
    %cst_425 = arith.constant dense<0.000000e+00> : vector<8x8xf32>
    %319 = tpu.matmul %317, %318, %cst_425 {dimension_numbers = #tpu.dot_dimension_numbers<[1], [0], [0], [1], [0, 0, 1, 1], [], []>} : vector<8x4xf32>, vector<4x8xf32>, vector<8x8xf32> -> vector<8x8xf32>
    %320 = arith.addf %315, %319 : vector<8x8xf32>
    %c0_426 = arith.constant 0 : index
    %c14 = arith.constant 14 : index
    %c0_427 = arith.constant 0 : index
    %c0_428 = arith.constant 0 : index
    %321 = vector.load %arg2[%c0_426, %c14, %c0_427, %c0_428] : memref<1x16x9x8xf32, #tpu.memory_space<vmem>>, vector<1x1x8x4xf32>
    %322 = vector.shape_cast %321 : vector<1x1x8x4xf32> to vector<8x4xf32>
    %c24_429 = arith.constant 24 : index
    %c0_430 = arith.constant 0 : index
    %323 = vector.load %arg4[%c24_429, %c0_430] : memref<36x8xf32, #tpu.memory_space<vmem>>, vector<4x8xf32>
    %cst_431 = arith.constant dense<0.000000e+00> : vector<8x8xf32>
    %324 = tpu.matmul %322, %323, %cst_431 {dimension_numbers = #tpu.dot_dimension_numbers<[1], [0], [0], [1], [0, 0, 1, 1], [], []>} : vector<8x4xf32>, vector<4x8xf32>, vector<8x8xf32> -> vector<8x8xf32>
    %325 = arith.addf %320, %324 : vector<8x8xf32>
    %c0_432 = arith.constant 0 : index
    %c14_433 = arith.constant 14 : index
    %c0_434 = arith.constant 0 : index
    %c4_435 = arith.constant 4 : index
    %326 = vector.load %arg2[%c0_432, %c14_433, %c0_434, %c4_435] : memref<1x16x9x8xf32, #tpu.memory_space<vmem>>, vector<1x1x8x4xf32>
    %327 = vector.shape_cast %326 : vector<1x1x8x4xf32> to vector<8x4xf32>
    %c28_436 = arith.constant 28 : index
    %c0_437 = arith.constant 0 : index
    %328 = vector.load %arg4[%c28_436, %c0_437] : memref<36x8xf32, #tpu.memory_space<vmem>>, vector<4x8xf32>
    %cst_438 = arith.constant dense<0.000000e+00> : vector<8x8xf32>
    %329 = tpu.matmul %327, %328, %cst_438 {dimension_numbers = #tpu.dot_dimension_numbers<[1], [0], [0], [1], [0, 0, 1, 1], [], []>} : vector<8x4xf32>, vector<4x8xf32>, vector<8x8xf32> -> vector<8x8xf32>
    %330 = arith.addf %325, %329 : vector<8x8xf32>
    %c0_439 = arith.constant 0 : index
    %c14_440 = arith.constant 14 : index
    %c1_441 = arith.constant 1 : index
    %c0_442 = arith.constant 0 : index
    %331 = vector.load %arg2[%c0_439, %c14_440, %c1_441, %c0_442] : memref<1x16x9x8xf32, #tpu.memory_space<vmem>>, vector<1x1x8x4xf32>
    %332 = vector.shape_cast %331 : vector<1x1x8x4xf32> to vector<8x4xf32>
    %c32_443 = arith.constant 32 : index
    %c0_444 = arith.constant 0 : index
    %333 = vector.load %arg4[%c32_443, %c0_444] : memref<36x8xf32, #tpu.memory_space<vmem>>, vector<4x8xf32>
    %cst_445 = arith.constant dense<0.000000e+00> : vector<8x8xf32>
    %334 = tpu.matmul %332, %333, %cst_445 {dimension_numbers = #tpu.dot_dimension_numbers<[1], [0], [0], [1], [0, 0, 1, 1], [], []>} : vector<8x4xf32>, vector<4x8xf32>, vector<8x8xf32> -> vector<8x8xf32>
    %335 = arith.addf %330, %334 : vector<8x8xf32>
    %c0_446 = arith.constant 0 : index
    %c6_447 = arith.constant 6 : index
    %c0_448 = arith.constant 0 : index
    %c0_449 = arith.constant 0 : index
    %336 = vector.load %arg6[%c0_446, %c6_447, %c0_448, %c0_449] : memref<1x8x8x8xf32, #tpu.memory_space<vmem>>, vector<1x1x8x8xf32>
    %337 = vector.shape_cast %336 : vector<1x1x8x8xf32> to vector<8x8xf32>
    %338 = vector.shape_cast %335 : vector<8x8xf32> to vector<1x1x8x8xf32>
    tpu.vector_store %arg6[%c0_446, %c6_447, %c0_448, %c0_449], %338 {strides = array<i32>} : memref<1x8x8x8xf32, #tpu.memory_space<vmem>>, vector<1x1x8x8xf32>,
    %c0_450 = arith.constant 0 : index
    %c14_451 = arith.constant 14 : index
    %c0_452 = arith.constant 0 : index
    %c0_453 = arith.constant 0 : index
    %339 = vector.load %arg2[%c0_450, %c14_451, %c0_452, %c0_453] : memref<1x16x9x8xf32, #tpu.memory_space<vmem>>, vector<1x1x8x4xf32>
    %340 = vector.shape_cast %339 : vector<1x1x8x4xf32> to vector<8x4xf32>
    %c0_454 = arith.constant 0 : index
    %c0_455 = arith.constant 0 : index
    %341 = vector.load %arg4[%c0_454, %c0_455] : memref<36x8xf32, #tpu.memory_space<vmem>>, vector<4x8xf32>
    %cst_456 = arith.constant dense<0.000000e+00> : vector<8x8xf32>
    %342 = tpu.matmul %340, %341, %cst_456 {dimension_numbers = #tpu.dot_dimension_numbers<[1], [0], [0], [1], [0, 0, 1, 1], [], []>} : vector<8x4xf32>, vector<4x8xf32>, vector<8x8xf32> -> vector<8x8xf32>
    %343 = arith.addf %2, %342 : vector<8x8xf32>
    %c0_457 = arith.constant 0 : index
    %c14_458 = arith.constant 14 : index
    %c0_459 = arith.constant 0 : index
    %c4_460 = arith.constant 4 : index
    %344 = vector.load %arg2[%c0_457, %c14_458, %c0_459, %c4_460] : memref<1x16x9x8xf32, #tpu.memory_space<vmem>>, vector<1x1x8x4xf32>
    %345 = vector.shape_cast %344 : vector<1x1x8x4xf32> to vector<8x4xf32>
    %c4_461 = arith.constant 4 : index
    %c0_462 = arith.constant 0 : index
    %346 = vector.load %arg4[%c4_461, %c0_462] : memref<36x8xf32, #tpu.memory_space<vmem>>, vector<4x8xf32>
    %cst_463 = arith.constant dense<0.000000e+00> : vector<8x8xf32>
    %347 = tpu.matmul %345, %346, %cst_463 {dimension_numbers = #tpu.dot_dimension_numbers<[1], [0], [0], [1], [0, 0, 1, 1], [], []>} : vector<8x4xf32>, vector<4x8xf32>, vector<8x8xf32> -> vector<8x8xf32>
    %348 = arith.addf %343, %347 : vector<8x8xf32>
    %c0_464 = arith.constant 0 : index
    %c14_465 = arith.constant 14 : index
    %c1_466 = arith.constant 1 : index
    %c0_467 = arith.constant 0 : index
    %349 = vector.load %arg2[%c0_464, %c14_465, %c1_466, %c0_467] : memref<1x16x9x8xf32, #tpu.memory_space<vmem>>, vector<1x1x8x4xf32>
    %350 = vector.shape_cast %349 : vector<1x1x8x4xf32> to vector<8x4xf32>
    %c8_468 = arith.constant 8 : index
    %c0_469 = arith.constant 0 : index
    %351 = vector.load %arg4[%c8_468, %c0_469] : memref<36x8xf32, #tpu.memory_space<vmem>>, vector<4x8xf32>
    %cst_470 = arith.constant dense<0.000000e+00> : vector<8x8xf32>
    %352 = tpu.matmul %350, %351, %cst_470 {dimension_numbers = #tpu.dot_dimension_numbers<[1], [0], [0], [1], [0, 0, 1, 1], [], []>} : vector<8x4xf32>, vector<4x8xf32>, vector<8x8xf32> -> vector<8x8xf32>
    %353 = arith.addf %348, %352 : vector<8x8xf32>
    %c0_471 = arith.constant 0 : index
    %c15 = arith.constant 15 : index
    %c0_472 = arith.constant 0 : index
    %c0_473 = arith.constant 0 : index
    %354 = vector.load %arg2[%c0_471, %c15, %c0_472, %c0_473] : memref<1x16x9x8xf32, #tpu.memory_space<vmem>>, vector<1x1x8x4xf32>
    %355 = vector.shape_cast %354 : vector<1x1x8x4xf32> to vector<8x4xf32>
    %c12_474 = arith.constant 12 : index
    %c0_475 = arith.constant 0 : index
    %356 = vector.load %arg4[%c12_474, %c0_475] : memref<36x8xf32, #tpu.memory_space<vmem>>, vector<4x8xf32>
    %cst_476 = arith.constant dense<0.000000e+00> : vector<8x8xf32>
    %357 = tpu.matmul %355, %356, %cst_476 {dimension_numbers = #tpu.dot_dimension_numbers<[1], [0], [0], [1], [0, 0, 1, 1], [], []>} : vector<8x4xf32>, vector<4x8xf32>, vector<8x8xf32> -> vector<8x8xf32>
    %358 = arith.addf %353, %357 : vector<8x8xf32>
    %c0_477 = arith.constant 0 : index
    %c15_478 = arith.constant 15 : index
    %c0_479 = arith.constant 0 : index
    %c4_480 = arith.constant 4 : index
    %359 = vector.load %arg2[%c0_477, %c15_478, %c0_479, %c4_480] : memref<1x16x9x8xf32, #tpu.memory_space<vmem>>, vector<1x1x8x4xf32>
    %360 = vector.shape_cast %359 : vector<1x1x8x4xf32> to vector<8x4xf32>
    %c16_481 = arith.constant 16 : index
    %c0_482 = arith.constant 0 : index
    %361 = vector.load %arg4[%c16_481, %c0_482] : memref<36x8xf32, #tpu.memory_space<vmem>>, vector<4x8xf32>
    %cst_483 = arith.constant dense<0.000000e+00> : vector<8x8xf32>
    %362 = tpu.matmul %360, %361, %cst_483 {dimension_numbers = #tpu.dot_dimension_numbers<[1], [0], [0], [1], [0, 0, 1, 1], [], []>} : vector<8x4xf32>, vector<4x8xf32>, vector<8x8xf32> -> vector<8x8xf32>
    %363 = arith.addf %358, %362 : vector<8x8xf32>
    %c0_484 = arith.constant 0 : index
    %c15_485 = arith.constant 15 : index
    %c1_486 = arith.constant 1 : index
    %c0_487 = arith.constant 0 : index
    %364 = vector.load %arg2[%c0_484, %c15_485, %c1_486, %c0_487] : memref<1x16x9x8xf32, #tpu.memory_space<vmem>>, vector<1x1x8x4xf32>
    %365 = vector.shape_cast %364 : vector<1x1x8x4xf32> to vector<8x4xf32>
    %c20_488 = arith.constant 20 : index
    %c0_489 = arith.constant 0 : index
    %366 = vector.load %arg4[%c20_488, %c0_489] : memref<36x8xf32, #tpu.memory_space<vmem>>, vector<4x8xf32>
    %cst_490 = arith.constant dense<0.000000e+00> : vector<8x8xf32>
    %367 = tpu.matmul %365, %366, %cst_490 {dimension_numbers = #tpu.dot_dimension_numbers<[1], [0], [0], [1], [0, 0, 1, 1], [], []>} : vector<8x4xf32>, vector<4x8xf32>, vector<8x8xf32> -> vector<8x8xf32>
    %368 = arith.addf %363, %367 : vector<8x8xf32>
    %c0_491 = arith.constant 0 : index
    %c0_492 = arith.constant 0 : index
    %c0_493 = arith.constant 0 : index
    %c0_494 = arith.constant 0 : index
    %369 = vector.load %arg3[%c0_491, %c0_492, %c0_493, %c0_494] : memref<1x2x9x8xf32, #tpu.memory_space<vmem>>, vector<1x1x8x4xf32>
    %370 = vector.shape_cast %369 : vector<1x1x8x4xf32> to vector<8x4xf32>
    %c24_495 = arith.constant 24 : index
    %c0_496 = arith.constant 0 : index
    %371 = vector.load %arg4[%c24_495, %c0_496] : memref<36x8xf32, #tpu.memory_space<vmem>>, vector<4x8xf32>
    %cst_497 = arith.constant dense<0.000000e+00> : vector<8x8xf32>
    %372 = tpu.matmul %370, %371, %cst_497 {dimension_numbers = #tpu.dot_dimension_numbers<[1], [0], [0], [1], [0, 0, 1, 1], [], []>} : vector<8x4xf32>, vector<4x8xf32>, vector<8x8xf32> -> vector<8x8xf32>
    %373 = arith.addf %368, %372 : vector<8x8xf32>
    %c0_498 = arith.constant 0 : index
    %c0_499 = arith.constant 0 : index
    %c0_500 = arith.constant 0 : index
    %c4_501 = arith.constant 4 : index
    %374 = vector.load %arg3[%c0_498, %c0_499, %c0_500, %c4_501] : memref<1x2x9x8xf32, #tpu.memory_space<vmem>>, vector<1x1x8x4xf32>
    %375 = vector.shape_cast %374 : vector<1x1x8x4xf32> to vector<8x4xf32>
    %c28_502 = arith.constant 28 : index
    %c0_503 = arith.constant 0 : index
    %376 = vector.load %arg4[%c28_502, %c0_503] : memref<36x8xf32, #tpu.memory_space<vmem>>, vector<4x8xf32>
    %cst_504 = arith.constant dense<0.000000e+00> : vector<8x8xf32>
    %377 = tpu.matmul %375, %376, %cst_504 {dimension_numbers = #tpu.dot_dimension_numbers<[1], [0], [0], [1], [0, 0, 1, 1], [], []>} : vector<8x4xf32>, vector<4x8xf32>, vector<8x8xf32> -> vector<8x8xf32>
    %378 = arith.addf %373, %377 : vector<8x8xf32>
    %c0_505 = arith.constant 0 : index
    %c0_506 = arith.constant 0 : index
    %c1_507 = arith.constant 1 : index
    %c0_508 = arith.constant 0 : index
    %379 = vector.load %arg3[%c0_505, %c0_506, %c1_507, %c0_508] : memref<1x2x9x8xf32, #tpu.memory_space<vmem>>, vector<1x1x8x4xf32>
    %380 = vector.shape_cast %379 : vector<1x1x8x4xf32> to vector<8x4xf32>
    %c32_509 = arith.constant 32 : index
    %c0_510 = arith.constant 0 : index
    %381 = vector.load %arg4[%c32_509, %c0_510] : memref<36x8xf32, #tpu.memory_space<vmem>>, vector<4x8xf32>
    %cst_511 = arith.constant dense<0.000000e+00> : vector<8x8xf32>
    %382 = tpu.matmul %380, %381, %cst_511 {dimension_numbers = #tpu.dot_dimension_numbers<[1], [0], [0], [1], [0, 0, 1, 1], [], []>} : vector<8x4xf32>, vector<4x8xf32>, vector<8x8xf32> -> vector<8x8xf32>
    %383 = arith.addf %378, %382 : vector<8x8xf32>
    %c0_512 = arith.constant 0 : index
    %c7_513 = arith.constant 7 : index
    %c0_514 = arith.constant 0 : index
    %c0_515 = arith.constant 0 : index
    %384 = vector.load %arg6[%c0_512, %c7_513, %c0_514, %c0_515] : memref<1x8x8x8xf32, #tpu.memory_space<vmem>>, vector<1x1x8x8xf32>
    %385 = vector.shape_cast %384 : vector<1x1x8x8xf32> to vector<8x8xf32>
    %386 = vector.shape_cast %383 : vector<8x8xf32> to vector<1x1x8x8xf32>
    tpu.vector_store %arg6[%c0_512, %c7_513, %c0_514, %c0_515], %386 {strides = array<i32>} : memref<1x8x8x8xf32, #tpu.memory_space<vmem>>, vector<1x1x8x8xf32>,
    return
  }
  func.func @transform_0(%arg0: i32, %arg1: i32) -> (i32, i32, i32, i32) {
    %c0_i32 = arith.constant 0 : i32
    %c0_i32_0 = arith.constant 0 : i32
    %c0_i32_1 = arith.constant 0 : i32
    return %arg0, %arg1, %c0_i32, %c0_i32_0 : i32, i32, i32, i32
  }
  func.func @transform_1(%arg0: i32, %arg1: i32) -> (i32, i32, i32, i32) {
    %c1_i32 = arith.constant 1 : i32
    %0 = arith.addi %arg1, %c1_i32 : i32
    %c8_i32 = arith.constant 8 : i32
    %1 = arith.muli %c8_i32, %0 : i32
    %c0_i32 = arith.constant 0 : i32
    %c0_i32_0 = arith.constant 0 : i32
    %c0_i32_1 = arith.constant 0 : i32
    return %arg0, %1, %c0_i32, %c0_i32_0 : i32, i32, i32, i32
  }
  func.func @transform_2(%arg0: i32, %arg1: i32) -> (i32, i32) {
    %c0_i32 = arith.constant 0 : i32
    %c0_i32_0 = arith.constant 0 : i32
    %c0_i32_1 = arith.constant 0 : i32
    return %c0_i32, %c0_i32_0 : i32, i32
  }
  func.func @transform_3(%arg0: i32, %arg1: i32) -> (i32, i32) {
    %c0_i32 = arith.constant 0 : i32
    %c0_i32_0 = arith.constant 0 : i32
    %c0_i32_1 = arith.constant 0 : i32
    return %c0_i32, %c0_i32_0 : i32, i32
  }
  func.func @transform_4(%arg0: i32, %arg1: i32) -> (i32, i32, i32, i32) {
    %c0_i32 = arith.constant 0 : i32
    %c0_i32_0 = arith.constant 0 : i32
    %c0_i32_1 = arith.constant 0 : i32
    return %arg0, %arg1, %c0_i32, %c0_i32_0 : i32, i32, i32, i32
  }
}

</mosaic_0001>

<llo_original>
// kernel: tpu_custom_call.1
$region0: #{tpu_custom_call.1}
  #allocation0 [shape = 'u32[]', space=smem, size = 0x4, offset = 0x4, fixed_abs, tag = 'smem constant byte address 0x4 - core index']
  #allocation1 [shape = 'u32[72,128]{1,0:T(1,128)}', space=vmem, size = 0x9000, scoped, tag = 'internal scratch']
  %s0 = inlined_call_operand.vmem [shape: f32[2,18,9,8], index: 0, kind: input, shape index: {}]
  %s1 = inlined_call_operand.vmem [shape: f32[2,18,9,8], index: 1, kind: input, shape index: {}]
  %s2 = inlined_call_operand.vmem [shape: f32[36,8], index: 2, kind: input, shape index: {}]
  %s3 = inlined_call_operand.vmem [shape: f32[1,8], index: 3, kind: input, shape index: {}]
  %s4 = inlined_call_operand.hbm [shape: f32[2,8,8,8], index: 4, kind: output, shape index: {}]
  %s5 = sld [smem:[#allocation0]]
  $region49: #{tpu_custom_call.1} parent=0
    _
  %s7 = ssub.s32 1, %s5
  %s8 = scalar_select 0, %s7, %s5
  $region1: #{tpu_custom_call.1} parent=0
    #allocation2 [shape = 'u8[65536]{0}', space=vmem, size = 0x10000, scoped, tag = 'output window, operand 0']
    #allocation3 [shape = 's32[2]{0}', space=sflag, size = 0x8, scoped, tag = 'scoped memory for tpu_custom_call.1']
    %9 = vsyncpa [#allocation3], 0
    %s10 = scalar_lea.sflag [#allocation3], 1
    %11 = vsyncpa %s10, 0
    loop: start=0, step=1, limit=4
    $region2: #{tpu_custom_call.1} parent=1 // loop_pre_header
      _
    $region3: #{tpu_custom_call.1} parent=1 // loop_header
      %s13 = sphi 0, %s17
      %p14 = scmp.ge.s32.totalorder %s13, 4
      %s20 = sphi 0, %s32
      %s21 = sphi 0, %s28
      %s22 = sphi 0, %s20
      %s23 = sphi 0, %s21
      %s24 = sphi 0, %s22
      %s25 = sphi 0, %s23
      %s37 = sphi 0, %s39
      %s40 = sphi 0, %s37
      %s41 = sphi 0, %s40
      %s57 = sphi 0, %s41
      %s69 = sphi 0, %s71
      %s72 = sphi 0, %s69
      %s73 = sphi 0, %s72
      %s89 = sphi 0, %s73
      %s93 = sphi 0, %s93
      %s95 = sphi 0, %s93
      %s96 = sphi 0, %s95
      %s110 = sphi 0, %s96
      %s114 = sphi 0, %s114
      %s116 = sphi 0, %s114
      %s117 = sphi 0, %s116
      %s131 = sphi 0, %s117
      %s139 = sphi 0, %s141
      %s142 = sphi 0, %s139
      %s143 = sphi 0, %s142
      %s159 = sphi 0, %s143
    $region4: #{tpu_custom_call.1} parent=1 // loop_header_branch
      %16 = sbr.rel (%p14) target = $region8
    $region5: #{tpu_custom_call.1} parent=1 // loop_body
      %s18 = ssub.s32 %s13, 1
      %s19 = ssub.s32 %s13, 2
      %s26 = sadd.s32 1, %s21
      %p27 = scmp.ge.s32.totalorder %s26, 1
      %s28 = scalar_select %p27, 0, %s26
      %s29 = sadd.s32 1, %s20
      %s30 = scalar_select %p27, %s29, %s20
      %p31 = scmp.ge.s32.totalorder %s30, 2
      %s32 = scalar_select %p31, 0, %s30
      %s33 = ssub.s32 %s20, %s32
      %s34 = ssub.s32 %s21, %s28
      %s35 = sor.u32 %s33, %s34
      %p36 = scmp.eq.s32.totalorder %s35, 0
      %s38 = sadd.s32 %s37, 1
      %s39 = scalar_select %p36, %s37, %s38
      %p42 = pneg %p36
      %p43 = scmp.eq.s32.totalorder %s13, 1
      %p44 = por %p42, %p43
      %p45 = scmp.ne.s32.totalorder %s37, %s40
      %p46 = scmp.eq.s32.totalorder %s13, 0
      %p47 = por %p45, %p46
      %p48 = scmp.ne.s32.totalorder %s37, %s40
      %p49 = scmp.eq.s32.totalorder %s18, 1
      %p50 = por %p48, %p49
      %p51 = scmp.ne.s32.totalorder %s40, %s41
      %p52 = scmp.eq.s32.totalorder %s18, 0
      %p53 = por %p51, %p52
      %p54 = scmp.ne.s32.totalorder %s40, %s41
      %p55 = scmp.eq.s32.totalorder %s19, 1
      %p56 = por %p54, %p55
      %p58 = scmp.ne.s32.totalorder %s41, %s57
      %p59 = scmp.eq.s32.totalorder %s19, 0
      %p60 = por %p58, %p59
      %s61 = sadd.s32 %s21, 1
      %s62 = smul.u32 %s61, 8
      %s63 = sadd.s32 %s28, 1
      %s64 = smul.u32 %s63, 8
      %s65 = ssub.s32 %s20, %s32
      %s66 = ssub.s32 %s62, %s64
      %s67 = sor.u32 %s65, %s66
      %p68 = scmp.eq.s32.totalorder %s67, 0
      %s70 = sadd.s32 %s69, 1
      %s71 = scalar_select %p68, %s69, %s70
      %p74 = pneg %p68
      %p75 = scmp.eq.s32.totalorder %s13, 1
      %p76 = por %p74, %p75
      %p77 = scmp.ne.s32.totalorder %s69, %s72
      %p78 = scmp.eq.s32.totalorder %s13, 0
      %p79 = por %p77, %p78
      %p80 = scmp.ne.s32.totalorder %s69, %s72
      %p81 = scmp.eq.s32.totalorder %s18, 1
      %p82 = por %p80, %p81
      %p83 = scmp.ne.s32.totalorder %s72, %s73
      %p84 = scmp.eq.s32.totalorder %s18, 0
      %p85 = por %p83, %p84
      %p86 = scmp.ne.s32.totalorder %s72, %s73
      %p87 = scmp.eq.s32.totalorder %s19, 1
      %p88 = por %p86, %p87
      %p90 = scmp.ne.s32.totalorder %s73, %s89
      %p91 = scmp.eq.s32.totalorder %s19, 0
      %p92 = por %p90, %p91
      %s94 = sadd.s32 %s93, 1
      %p97 = scmp.eq.s32.totalorder %s13, 1
      %p98 = scmp.ne.s32.totalorder %s93, %s95
      %p99 = scmp.eq.s32.totalorder %s13, 0
      %p100 = por %p98, %p99
      %p101 = scmp.ne.s32.totalorder %s93, %s95
      %p102 = scmp.eq.s32.totalorder %s18, 1
      %p103 = por %p101, %p102
      %p104 = scmp.ne.s32.totalorder %s95, %s96
      %p105 = scmp.eq.s32.totalorder %s18, 0
      %p106 = por %p104, %p105
      %p107 = scmp.ne.s32.totalorder %s95, %s96
      %p108 = scmp.eq.s32.totalorder %s19, 1
      %p109 = por %p107, %p108
      %p111 = scmp.ne.s32.totalorder %s96, %s110
      %p112 = scmp.eq.s32.totalorder %s19, 0
      %p113 = por %p111, %p112
      %s115 = sadd.s32 %s114, 1
      %p118 = scmp.eq.s32.totalorder %s13, 1
      %p119 = scmp.ne.s32.totalorder %s114, %s116
      %p120 = scmp.eq.s32.totalorder %s13, 0
      %p121 = por %p119, %p120
      %p122 = scmp.ne.s32.totalorder %s114, %s116
      %p123 = scmp.eq.s32.totalorder %s18, 1
      %p124 = por %p122, %p123
      %p125 = scmp.ne.s32.totalorder %s116, %s117
      %p126 = scmp.eq.s32.totalorder %s18, 0
      %p127 = por %p125, %p126
      %p128 = scmp.ne.s32.totalorder %s116, %s117
      %p129 = scmp.eq.s32.totalorder %s19, 1
      %p130 = por %p128, %p129
      %p132 = scmp.ne.s32.totalorder %s117, %s131
      %p133 = scmp.eq.s32.totalorder %s19, 0
      %p134 = por %p132, %p133
      %s135 = ssub.s32 %s20, %s32
      %s136 = ssub.s32 %s21, %s28
      %s137 = sor.u32 %s135, %s136
      %p138 = scmp.eq.s32.totalorder %s137, 0
      %s140 = sadd.s32 %s139, 1
      %s141 = scalar_select %p138, %s139, %s140
      %p144 = pneg %p138
      %p145 = scmp.eq.s32.totalorder %s13, 1
      %p146 = por %p144, %p145
      %p147 = scmp.ne.s32.totalorder %s139, %s142
      %p148 = scmp.eq.s32.totalorder %s13, 0
      %p149 = por %p147, %p148
      %p150 = scmp.ne.s32.totalorder %s139, %s142
      %p151 = scmp.eq.s32.totalorder %s18, 1
      %p152 = por %p150, %p151
      %p153 = scmp.ne.s32.totalorder %s142, %s143
      %p154 = scmp.eq.s32.totalorder %s18, 0
      %p155 = por %p153, %p154
      %p156 = scmp.ne.s32.totalorder %s142, %s143
      %p157 = scmp.eq.s32.totalorder %s19, 1
      %p158 = por %p156, %p157
      %p160 = scmp.ne.s32.totalorder %s143, %s159
      %p161 = scmp.eq.s32.totalorder %s19, 0
      %p162 = por %p160, %p161
      %p163 = scmp.le.s32.totalorder 1, %s13
      %p164 = scmp.lt.s32.totalorder %s13, 3
      %p165 = pnand %p163, %p164
      %p166 = pneg %p165
      // Predicated region
      $region9: #{tpu_custom_call.1} parent=5 // pred_check
        _
      $region10: #{tpu_custom_call.1} parent=5 // pred_check_branch
        %168 = sbr.rel (%p165) target = $region12
      $region11: #{tpu_custom_call.1} parent=5 // pred_region
        %s169 = ssub.s32 %s13, 1
        // Predicated region
        $region13: #{tpu_custom_call.1} parent=11 // pred_check
          %p170 = pneg %p106
        $region14: #{tpu_custom_call.1} parent=11 // pred_check_branch
          %172 = sbr.rel (%p170) target = $region16
        $region15: #{tpu_custom_call.1} parent=11 // pred_region
          _
        $region16: #{tpu_custom_call.1} parent=11 // pred_fallthru
          _
        // Predicated region
        $region17: #{tpu_custom_call.1} parent=11 // pred_check
          %p173 = pneg %p127
        $region18: #{tpu_custom_call.1} parent=11 // pred_check_branch
          %175 = sbr.rel (%p173) target = $region20
        $region19: #{tpu_custom_call.1} parent=11 // pred_region
          _
        $region20: #{tpu_custom_call.1} parent=11 // pred_fallthru
          _
      $region12: #{tpu_custom_call.1} parent=5 // pred_fallthru
        _
      %p176 = scmp.lt.s32.totalorder %s13, 2
      // Predicated region
      $region21: #{tpu_custom_call.1} parent=5 // pred_check
        %p177 = pneg %p176
      $region22: #{tpu_custom_call.1} parent=5 // pred_check_branch
        %179 = sbr.rel (%p177) target = $region24
      $region23: #{tpu_custom_call.1} parent=5 // pred_region
        // Predicated region
        $region25: #{tpu_custom_call.1} parent=23 // pred_check
          %p180 = pneg %p47
        $region26: #{tpu_custom_call.1} parent=23 // pred_check_branch
          %182 = sbr.rel (%p180) target = $region28
        $region27: #{tpu_custom_call.1} parent=23 // pred_region
          %s183 = smul.u32 16, %s21
          %s184 = ssub.s32 18, %s183
          %p185 = scmp.lt.s32.totalorder %s184, 16
          %s186 = scalar_select %p185, %s184, 16
          %s187 = smul.u32 8, %s186
          %s188 = smul.u32 %s187, 2
          %p189 = scmp.lt.s32.totalorder %s20, 1
          %s190 = scalar_select %p189, %s20, 1
          %p191 = scmp.lt.s32.totalorder %s183, 17
          %s192 = scalar_select %p191, %s183, 17
          %s193 = smul.addr %s192, 2
          %s194 = smul.addr %s190, 36
          %s195 = sadd.s32 %s193, %s194
          %s196 = smul.addr %s195, 8
          %s197 = scalar_lea.vmem %s0, %s196
          %s198 = smul.u32 16, %s21
          %s199 = ssub.s32 18, %s198
          %p200 = scmp.lt.s32.totalorder %s199, 16
          %s201 = scalar_select %p200, %s199, 16
          %s202 = smul.u32 8, %s201
          %s203 = smul.u32 %s202, 2
        $region28: #{tpu_custom_call.1} parent=23 // pred_fallthru
          _
        // Predicated region
        $region29: #{tpu_custom_call.1} parent=23 // pred_check
          %p204 = pneg %p79
        $region30: #{tpu_custom_call.1} parent=23 // pred_check_branch
          %206 = sbr.rel (%p204) target = $region32
        $region31: #{tpu_custom_call.1} parent=23 // pred_region
          %s207 = sadd.s32 %s21, 1
          %s208 = smul.u32 %s207, 8
          %s209 = smul.u32 2, %s208
          %p210 = scmp.lt.s32.totalorder %s20, 1
          %s211 = scalar_select %p210, %s20, 1
          %p212 = scmp.lt.s32.totalorder %s209, 17
          %s213 = scalar_select %p212, %s209, 17
          %s214 = smul.addr %s213, 2
          %s215 = smul.addr %s211, 36
          %s216 = sadd.s32 %s214, %s215
          %s217 = smul.addr %s216, 8
          %s218 = scalar_lea.vmem %s1, %s217
          %s219 = sadd.s32 %s21, 1
          %s220 = smul.u32 %s219, 8
          %s221 = smul.u32 2, %s220
        $region32: #{tpu_custom_call.1} parent=23 // pred_fallthru
          _
      $region24: #{tpu_custom_call.1} parent=5 // pred_fallthru
        _
      %p222 = scmp.le.s32.totalorder 1, %s13
      %p223 = scmp.lt.s32.totalorder %s13, 3
      %p224 = pnand %p222, %p223
      %p225 = pneg %p224
      // Predicated region
      $region33: #{tpu_custom_call.1} parent=5 // pred_check
        _
      $region34: #{tpu_custom_call.1} parent=5 // pred_check_branch
        %227 = sbr.rel (%p224) target = $region36
      $region35: #{tpu_custom_call.1} parent=5 // pred_region
        %s228 = ssub.s32 %s13, 1
        %s229 = smul.u32 16, %s23
        %s230 = ssub.s32 18, %s229
        %p231 = scmp.lt.s32.totalorder %s230, 16
        %s232 = scalar_select %p231, %s230, 16
        %s233 = smul.u32 8, %s232
        %s234 = smul.u32 %s233, 2
        %p235 = scmp.lt.s32.totalorder %s22, 1
        %s236 = scalar_select %p235, %s22, 1
        %p237 = scmp.lt.s32.totalorder %s229, 17
        %s238 = scalar_select %p237, %s229, 17
        %s239 = smul.addr %s238, 2
        %s240 = smul.addr %s236, 36
        %s241 = sadd.s32 %s239, %s240
        %s242 = smul.addr %s241, 8
        %s243 = scalar_lea.vmem %s0, %s242
        %p244 = pneg %p53
        %p245 = pneg %p50
        %s246 = sadd.s32 %s23, 1
        %s247 = smul.u32 %s246, 8
        %s248 = smul.u32 2, %s247
        %p249 = scmp.lt.s32.totalorder %s22, 1
        %s250 = scalar_select %p249, %s22, 1
        %p251 = scmp.lt.s32.totalorder %s248, 17
        %s252 = scalar_select %p251, %s248, 17
        %s253 = smul.addr %s252, 2
        %s254 = smul.addr %s250, 36
        %s255 = sadd.s32 %s253, %s254
        %s256 = smul.addr %s255, 8
        %s257 = scalar_lea.vmem %s1, %s256
        %p258 = pneg %p85
        %p259 = pneg %p82
        %p260 = pneg %p106
        %p261 = pneg %p103
        %p262 = pneg %p127
        %p263 = pneg %p124
        %p264 = pneg %p155
        %p265 = pneg %p152
        %s266 = sand.u32 %s142, 1
        %s267 = scalar_lea.sflag [#allocation3], %s266
        %s268 = sand.u32 %s142, 1
        %s269 = smul.addr %s268, 64
        %s270 = scalar_lea.vmem [#allocation2], %s269
        %s271 = smul.u32 16, %s23
        %s272 = ssub.s32 18, %s271
        %p273 = scmp.lt.s32.totalorder %s272, 16
        %s274 = scalar_select %p273, %s272, 16
        %s275 = smul.u32 8, %s274
        %s276 = smul.u32 %s275, 2
        %p277 = scmp.lt.s32.totalorder %s22, 1
        %s278 = scalar_select %p277, %s22, 1
        %p279 = scmp.lt.s32.totalorder %s271, 17
        %s280 = scalar_select %p279, %s271, 17
        %s281 = smul.addr %s280, 2
        %s282 = smul.addr %s278, 36
        %s283 = sadd.s32 %s281, %s282
        %s284 = smul.addr %s283, 8
        %s285 = scalar_lea.vmem %s0, %s284
        %s286 = smul.u32 16, %s23
        %s287 = ssub.s32 18, %s286
        %p288 = scmp.lt.s32.totalorder %s287, 16
        %s289 = scalar_select %p288, %s287, 16
        %s290 = smul.u32 8, %s289
        %s291 = smul.u32 %s290, 2
        %s292 = sadd.s32 %s23, 1
        %s293 = smul.u32 %s292, 8
        %s294 = smul.u32 2, %s293
        %p295 = scmp.lt.s32.totalorder %s22, 1
        %s296 = scalar_select %p295, %s22, 1
        %p297 = scmp.lt.s32.totalorder %s294, 17
        %s298 = scalar_select %p297, %s294, 17
        %s299 = smul.addr %s298, 2
        %s300 = smul.addr %s296, 36
        %s301 = sadd.s32 %s299, %s300
        %s302 = smul.addr %s301, 8
        %s303 = scalar_lea.vmem %s1, %s302
        %s304 = sadd.s32 %s23, 1
        %s305 = smul.u32 %s304, 8
        %s306 = smul.u32 2, %s305
        %s307 = smul.u32 8, %s23
        %v308 = vld [vmem:[%s3] sm:$0x1]
        %v310 = vperm.slane %v308, 0
        %v312 = vld [vmem:[%s285] sm:$0xff]
        %v313 = vld [vmem:[%s2] sm:$0xf]
        %vm314 = vcmask 31744
        %v316 = vsel %vm314, %v312, 0
        %vm318 = vcmask 1043456
        %v320 = vsel %vm318, %v313, 0
        %322 = vmatpush.msra.mxu0 0.0
        %323 = vmatpush.msra.mxu0 0.0
        %324 = vmatpush.msra.mxu0 0.0
        %325 = vmatpush.msra.mxu0 0.0
        %326 = vmatpush.msra.mxu0 0.0
        %327 = vmatpush.msra.mxu0 0.0
        %328 = vmatpush.msra.mxu0 0.0
        %329 = vmatpush.msra.mxu0 0.0
        %330 = vmatpush.msra.mxu0 0.0
        %331 = vmatpush.msra.mxu0 0.0
        %332 = vmatpush.msra.mxu0 0.0
        %333 = vmatpush.msra.mxu0 0.0
        %334 = vmatpush.msra.mxu0 0.0
        %335 = vmatpush.msra.mxu0 0.0
        %336 = vmatpush.msra.mxu0 0.0
        %337 = vmatpush.msra.mxu0 %v320
        %338 = vmatmul.f32.gmra.mxu0 %v316
        %v339 = vpop.f32.mrf.mxu0
        %v340 = vadd.f32 0.0, %v339
        %341 = vdwg.mxu0
        %v342 = vadd.f32 %v310, %v340
        %v343 = vld [vmem:[%s2 + $0x4] sm:$0xf]
        %344 = vrot.lane.b32.xlu0 %v312, 124
        %v345 = vpop.permute.xlu0 %344
        %v346 = vsel %vm314, %v345, 0
        %v349 = vsel %vm318, %v343, 0
        %351 = vmatpush.msra.mxu0 0.0
        %352 = vmatpush.msra.mxu0 0.0
        %353 = vmatpush.msra.mxu0 0.0
        %354 = vmatpush.msra.mxu0 0.0
        %355 = vmatpush.msra.mxu0 0.0
        %356 = vmatpush.msra.mxu0 0.0
        %357 = vmatpush.msra.mxu0 0.0
        %358 = vmatpush.msra.mxu0 0.0
        %359 = vmatpush.msra.mxu0 0.0
        %360 = vmatpush.msra.mxu0 0.0
        %361 = vmatpush.msra.mxu0 0.0
        %362 = vmatpush.msra.mxu0 0.0
        %363 = vmatpush.msra.mxu0 0.0
        %364 = vmatpush.msra.mxu0 0.0
        %365 = vmatpush.msra.mxu0 0.0
        %366 = vmatpush.msra.mxu0 %v349
        %367 = vmatmul.f32.gmra.mxu0 %v346
        %v368 = vpop.f32.mrf.mxu0
        %v369 = vadd.f32 0.0, %v368
        %370 = vdwg.mxu0
        %v371 = vadd.f32 %v342, %v369
        %v372 = vld [vmem:[%s285 + $0x1] sm:$0xff]
        %v373 = vld [vmem:[%s2 + $0x8] sm:$0xf]
        %v375 = vsel %vm314, %v372, 0
        %v378 = vsel %vm318, %v373, 0
        %380 = vmatpush.msra.mxu0 0.0
        %381 = vmatpush.msra.mxu0 0.0
        %382 = vmatpush.msra.mxu0 0.0
        %383 = vmatpush.msra.mxu0 0.0
        %384 = vmatpush.msra.mxu0 0.0
        %385 = vmatpush.msra.mxu0 0.0
        %386 = vmatpush.msra.mxu0 0.0
        %387 = vmatpush.msra.mxu0 0.0
        %388 = vmatpush.msra.mxu0 0.0
        %389 = vmatpush.msra.mxu0 0.0
        %390 = vmatpush.msra.mxu0 0.0
        %391 = vmatpush.msra.mxu0 0.0
        %392 = vmatpush.msra.mxu0 0.0
        %393 = vmatpush.msra.mxu0 0.0
        %394 = vmatpush.msra.mxu0 0.0
        %395 = vmatpush.msra.mxu0 %v378
        %396 = vmatmul.f32.gmra.mxu0 %v375
        %v397 = vpop.f32.mrf.mxu0
        %v398 = vadd.f32 0.0, %v397
        %399 = vdwg.mxu0
        %v400 = vadd.f32 %v371, %v398
        %s401 = scalar_lea.vmem %s285, 16
        %v402 = vld [vmem:[%s401] sm:$0xff]
        %v403 = vld [vmem:[%s2 + $0xc] sm:$0xf]
        %v405 = vsel %vm314, %v402, 0
        %v408 = vsel %vm318, %v403, 0
        %410 = vmatpush.msra.mxu0 0.0
        %411 = vmatpush.msra.mxu0 0.0
        %412 = vmatpush.msra.mxu0 0.0
        %413 = vmatpush.msra.mxu0 0.0
        %414 = vmatpush.msra.mxu0 0.0
        %415 = vmatpush.msra.mxu0 0.0
        %416 = vmatpush.msra.mxu0 0.0
        %417 = vmatpush.msra.mxu0 0.0
        %418 = vmatpush.msra.mxu0 0.0
        %419 = vmatpush.msra.mxu0 0.0
        %420 = vmatpush.msra.mxu0 0.0
        %421 = vmatpush.msra.mxu0 0.0
        %422 = vmatpush.msra.mxu0 0.0
        %423 = vmatpush.msra.mxu0 0.0
        %424 = vmatpush.msra.mxu0 0.0
        %425 = vmatpush.msra.mxu0 %v408
        %426 = vmatmul.f32.gmra.mxu0 %v405
        %v427 = vpop.f32.mrf.mxu0
        %v428 = vadd.f32 0.0, %v427
        %429 = vdwg.mxu0
        %v430 = vadd.f32 %v400, %v428
        %v431 = vld [vmem:[%s2 + $0x10] sm:$0xf]
        %432 = vrot.lane.b32.xlu0 %v402, 124
        %v433 = vpop.permute.xlu0 %432
        %v434 = vsel %vm314, %v433, 0
        %v437 = vsel %vm318, %v431, 0
        %439 = vmatpush.msra.mxu0 0.0
        %440 = vmatpush.msra.mxu0 0.0
        %441 = vmatpush.msra.mxu0 0.0
        %442 = vmatpush.msra.mxu0 0.0
        %443 = vmatpush.msra.mxu0 0.0
        %444 = vmatpush.msra.mxu0 0.0
        %445 = vmatpush.msra.mxu0 0.0
        %446 = vmatpush.msra.mxu0 0.0
        %447 = vmatpush.msra.mxu0 0.0
        %448 = vmatpush.msra.mxu0 0.0
        %449 = vmatpush.msra.mxu0 0.0
        %450 = vmatpush.msra.mxu0 0.0
        %451 = vmatpush.msra.mxu0 0.0
        %452 = vmatpush.msra.mxu0 0.0
        %453 = vmatpush.msra.mxu0 0.0
        %454 = vmatpush.msra.mxu0 %v437
        %455 = vmatmul.f32.gmra.mxu0 %v434
        %v456 = vpop.f32.mrf.mxu0
        %v457 = vadd.f32 0.0, %v456
        %458 = vdwg.mxu0
        %v459 = vadd.f32 %v430, %v457
        %v460 = vld [vmem:[%s401 + $0x1] sm:$0xff]
        %v461 = vld [vmem:[%s2 + $0x14] sm:$0xf]
        %v463 = vsel %vm314, %v460, 0
        %v466 = vsel %vm318, %v461, 0
        %468 = vmatpush.msra.mxu0 0.0
        %469 = vmatpush.msra.mxu0 0.0
        %470 = vmatpush.msra.mxu0 0.0
        %471 = vmatpush.msra.mxu0 0.0
        %472 = vmatpush.msra.mxu0 0.0
        %473 = vmatpush.msra.mxu0 0.0
        %474 = vmatpush.msra.mxu0 0.0
        %475 = vmatpush.msra.mxu0 0.0
        %476 = vmatpush.msra.mxu0 0.0
        %477 = vmatpush.msra.mxu0 0.0
        %478 = vmatpush.msra.mxu0 0.0
        %479 = vmatpush.msra.mxu0 0.0
        %480 = vmatpush.msra.mxu0 0.0
        %481 = vmatpush.msra.mxu0 0.0
        %482 = vmatpush.msra.mxu0 0.0
        %483 = vmatpush.msra.mxu0 %v466
        %484 = vmatmul.f32.gmra.mxu0 %v463
        %v485 = vpop.f32.mrf.mxu0
        %v486 = vadd.f32 0.0, %v485
        %487 = vdwg.mxu0
        %v488 = vadd.f32 %v459, %v486
        %s489 = scalar_lea.vmem %s285, 32
        %v490 = vld [vmem:[%s489] sm:$0xff]
        %v491 = vld [vmem:[%s2 + $0x18] sm:$0xf]
        %v493 = vsel %vm314, %v490, 0
        %v496 = vsel %vm318, %v491, 0
        %498 = vmatpush.msra.mxu0 0.0
        %499 = vmatpush.msra.mxu0 0.0
        %500 = vmatpush.msra.mxu0 0.0
        %501 = vmatpush.msra.mxu0 0.0
        %502 = vmatpush.msra.mxu0 0.0
        %503 = vmatpush.msra.mxu0 0.0
        %504 = vmatpush.msra.mxu0 0.0
        %505 = vmatpush.msra.mxu0 0.0
        %506 = vmatpush.msra.mxu0 0.0
        %507 = vmatpush.msra.mxu0 0.0
        %508 = vmatpush.msra.mxu0 0.0
        %509 = vmatpush.msra.mxu0 0.0
        %510 = vmatpush.msra.mxu0 0.0
        %511 = vmatpush.msra.mxu0 0.0
        %512 = vmatpush.msra.mxu0 0.0
        %513 = vmatpush.msra.mxu0 %v496
        %514 = vmatmul.f32.gmra.mxu0 %v493
        %v515 = vpop.f32.mrf.mxu0
        %v516 = vadd.f32 0.0, %v515
        %517 = vdwg.mxu0
        %v518 = vadd.f32 %v488, %v516
        %v519 = vld [vmem:[%s2 + $0x1c] sm:$0xf]
        %520 = vrot.lane.b32.xlu0 %v490, 124
        %v521 = vpop.permute.xlu0 %520
        %v522 = vsel %vm314, %v521, 0
        %v525 = vsel %vm318, %v519, 0
        %527 = vmatpush.msra.mxu0 0.0
        %528 = vmatpush.msra.mxu0 0.0
        %529 = vmatpush.msra.mxu0 0.0
        %530 = vmatpush.msra.mxu0 0.0
        %531 = vmatpush.msra.mxu0 0.0
        %532 = vmatpush.msra.mxu0 0.0
        %533 = vmatpush.msra.mxu0 0.0
        %534 = vmatpush.msra.mxu0 0.0
        %535 = vmatpush.msra.mxu0 0.0
        %536 = vmatpush.msra.mxu0 0.0
        %537 = vmatpush.msra.mxu0 0.0
        %538 = vmatpush.msra.mxu0 0.0
        %539 = vmatpush.msra.mxu0 0.0
        %540 = vmatpush.msra.mxu0 0.0
        %541 = vmatpush.msra.mxu0 0.0
        %542 = vmatpush.msra.mxu0 %v525
        %543 = vmatmul.f32.gmra.mxu0 %v522
        %v544 = vpop.f32.mrf.mxu0
        %v545 = vadd.f32 0.0, %v544
        %546 = vdwg.mxu0
        %v547 = vadd.f32 %v518, %v545
        %v548 = vld [vmem:[%s489 + $0x1] sm:$0xff]
        %v549 = vld [vmem:[%s2 + $0x20] sm:$0xf]
        %v551 = vsel %vm314, %v548, 0
        %v554 = vsel %vm318, %v549, 0
        %556 = vmatpush.msra.mxu0 0.0
        %557 = vmatpush.msra.mxu0 0.0
        %558 = vmatpush.msra.mxu0 0.0
        %559 = vmatpush.msra.mxu0 0.0
        %560 = vmatpush.msra.mxu0 0.0
        %561 = vmatpush.msra.mxu0 0.0
        %562 = vmatpush.msra.mxu0 0.0
        %563 = vmatpush.msra.mxu0 0.0
        %564 = vmatpush.msra.mxu0 0.0
        %565 = vmatpush.msra.mxu0 0.0
        %566 = vmatpush.msra.mxu0 0.0
        %567 = vmatpush.msra.mxu0 0.0
        %568 = vmatpush.msra.mxu0 0.0
        %569 = vmatpush.msra.mxu0 0.0
        %570 = vmatpush.msra.mxu0 0.0
        %571 = vmatpush.msra.mxu0 %v554
        %572 = vmatmul.f32.gmra.mxu0 %v551
        %v573 = vpop.f32.mrf.mxu0
        %v574 = vadd.f32 0.0, %v573
        %575 = vdwg.mxu0
        %v576 = vadd.f32 %v547, %v574
        %vm577 = vcmask 64512
        %578 = vst.msk [vmem:[%s270] sm:$0xff] %vm577, %v576
        %v579 = vld [vmem:[%s489] sm:$0xff]
        %v580 = vld [vmem:[%s2] sm:$0xf]
        %v582 = vsel %vm314, %v579, 0
        %v585 = vsel %vm318, %v580, 0
        %587 = vmatpush.msra.mxu0 0.0
        %588 = vmatpush.msra.mxu0 0.0
        %589 = vmatpush.msra.mxu0 0.0
        %590 = vmatpush.msra.mxu0 0.0
        %591 = vmatpush.msra.mxu0 0.0
        %592 = vmatpush.msra.mxu0 0.0
        %593 = vmatpush.msra.mxu0 0.0
        %594 = vmatpush.msra.mxu0 0.0
        %595 = vmatpush.msra.mxu0 0.0
        %596 = vmatpush.msra.mxu0 0.0
        %597 = vmatpush.msra.mxu0 0.0
        %598 = vmatpush.msra.mxu0 0.0
        %599 = vmatpush.msra.mxu0 0.0
        %600 = vmatpush.msra.mxu0 0.0
        %601 = vmatpush.msra.mxu0 0.0
        %602 = vmatpush.msra.mxu0 %v585
        %603 = vmatmul.f32.gmra.mxu0 %v582
        %v604 = vpop.f32.mrf.mxu0
        %v605 = vadd.f32 0.0, %v604
        %606 = vdwg.mxu0
        %v607 = vadd.f32 %v310, %v605
        %v608 = vld [vmem:[%s2 + $0x4] sm:$0xf]
        %609 = vrot.lane.b32.xlu0 %v579, 124
        %v610 = vpop.permute.xlu0 %609
        %v611 = vsel %vm314, %v610, 0
        %v614 = vsel %vm318, %v608, 0
        %616 = vmatpush.msra.mxu0 0.0
        %617 = vmatpush.msra.mxu0 0.0
        %618 = vmatpush.msra.mxu0 0.0
        %619 = vmatpush.msra.mxu0 0.0
        %620 = vmatpush.msra.mxu0 0.0
        %621 = vmatpush.msra.mxu0 0.0
        %622 = vmatpush.msra.mxu0 0.0
        %623 = vmatpush.msra.mxu0 0.0
        %624 = vmatpush.msra.mxu0 0.0
        %625 = vmatpush.msra.mxu0 0.0
        %626 = vmatpush.msra.mxu0 0.0
        %627 = vmatpush.msra.mxu0 0.0
        %628 = vmatpush.msra.mxu0 0.0
        %629 = vmatpush.msra.mxu0 0.0
        %630 = vmatpush.msra.mxu0 0.0
        %631 = vmatpush.msra.mxu0 %v614
        %632 = vmatmul.f32.gmra.mxu0 %v611
        %v633 = vpop.f32.mrf.mxu0
        %v634 = vadd.f32 0.0, %v633
        %635 = vdwg.mxu0
        %v636 = vadd.f32 %v607, %v634
        %v637 = vld [vmem:[%s489 + $0x1] sm:$0xff]
        %v638 = vld [vmem:[%s2 + $0x8] sm:$0xf]
        %v640 = vsel %vm314, %v637, 0
        %v643 = vsel %vm318, %v638, 0
        %645 = vmatpush.msra.mxu0 0.0
        %646 = vmatpush.msra.mxu0 0.0
        %647 = vmatpush.msra.mxu0 0.0
        %648 = vmatpush.msra.mxu0 0.0
        %649 = vmatpush.msra.mxu0 0.0
        %650 = vmatpush.msra.mxu0 0.0
        %651 = vmatpush.msra.mxu0 0.0
        %652 = vmatpush.msra.mxu0 0.0
        %653 = vmatpush.msra.mxu0 0.0
        %654 = vmatpush.msra.mxu0 0.0
        %655 = vmatpush.msra.mxu0 0.0
        %656 = vmatpush.msra.mxu0 0.0
        %657 = vmatpush.msra.mxu0 0.0
        %658 = vmatpush.msra.mxu0 0.0
        %659 = vmatpush.msra.mxu0 0.0
        %660 = vmatpush.msra.mxu0 %v643
        %661 = vmatmul.f32.gmra.mxu0 %v640
        %v662 = vpop.f32.mrf.mxu0
        %v663 = vadd.f32 0.0, %v662
        %664 = vdwg.mxu0
        %v665 = vadd.f32 %v636, %v663
        %s666 = scalar_lea.vmem %s285, 48
        %v667 = vld [vmem:[%s666] sm:$0xff]
        %v668 = vld [vmem:[%s2 + $0xc] sm:$0xf]
        %v670 = vsel %vm314, %v667, 0
        %v673 = vsel %vm318, %v668, 0
        %675 = vmatpush.msra.mxu0 0.0
        %676 = vmatpush.msra.mxu0 0.0
        %677 = vmatpush.msra.mxu0 0.0
        %678 = vmatpush.msra.mxu0 0.0
        %679 = vmatpush.msra.mxu0 0.0
        %680 = vmatpush.msra.mxu0 0.0
        %681 = vmatpush.msra.mxu0 0.0
        %682 = vmatpush.msra.mxu0 0.0
        %683 = vmatpush.msra.mxu0 0.0
        %684 = vmatpush.msra.mxu0 0.0
        %685 = vmatpush.msra.mxu0 0.0
        %686 = vmatpush.msra.mxu0 0.0
        %687 = vmatpush.msra.mxu0 0.0
        %688 = vmatpush.msra.mxu0 0.0
        %689 = vmatpush.msra.mxu0 0.0
        %690 = vmatpush.msra.mxu0 %v673
        %691 = vmatmul.f32.gmra.mxu0 %v670
        %v692 = vpop.f32.mrf.mxu0
        %v693 = vadd.f32 0.0, %v692
        %694 = vdwg.mxu0
        %v695 = vadd.f32 %v665, %v693
        %v696 = vld [vmem:[%s2 + $0x10] sm:$0xf]
        %697 = vrot.lane.b32.xlu0 %v667, 124
        %v698 = vpop.permute.xlu0 %697
        %v699 = vsel %vm314, %v698, 0
        %v702 = vsel %vm318, %v696, 0
        %704 = vmatpush.msra.mxu0 0.0
        %705 = vmatpush.msra.mxu0 0.0
        %706 = vmatpush.msra.mxu0 0.0
        %707 = vmatpush.msra.mxu0 0.0
        %708 = vmatpush.msra.mxu0 0.0
        %709 = vmatpush.msra.mxu0 0.0
        %710 = vmatpush.msra.mxu0 0.0
        %711 = vmatpush.msra.mxu0 0.0
        %712 = vmatpush.msra.mxu0 0.0
        %713 = vmatpush.msra.mxu0 0.0
        %714 = vmatpush.msra.mxu0 0.0
        %715 = vmatpush.msra.mxu0 0.0
        %716 = vmatpush.msra.mxu0 0.0
        %717 = vmatpush.msra.mxu0 0.0
        %718 = vmatpush.msra.mxu0 0.0
        %719 = vmatpush.msra.mxu0 %v702
        %720 = vmatmul.f32.gmra.mxu0 %v699
        %v721 = vpop.f32.mrf.mxu0
        %v722 = vadd.f32 0.0, %v721
        %723 = vdwg.mxu0
        %v724 = vadd.f32 %v695, %v722
        %v725 = vld [vmem:[%s666 + $0x1] sm:$0xff]
        %v726 = vld [vmem:[%s2 + $0x14] sm:$0xf]
        %v728 = vsel %vm314, %v725, 0
        %v731 = vsel %vm318, %v726, 0
        %733 = vmatpush.msra.mxu0 0.0
        %734 = vmatpush.msra.mxu0 0.0
        %735 = vmatpush.msra.mxu0 0.0
        %736 = vmatpush.msra.mxu0 0.0
        %737 = vmatpush.msra.mxu0 0.0
        %738 = vmatpush.msra.mxu0 0.0
        %739 = vmatpush.msra.mxu0 0.0
        %740 = vmatpush.msra.mxu0 0.0
        %741 = vmatpush.msra.mxu0 0.0
        %742 = vmatpush.msra.mxu0 0.0
        %743 = vmatpush.msra.mxu0 0.0
        %744 = vmatpush.msra.mxu0 0.0
        %745 = vmatpush.msra.mxu0 0.0
        %746 = vmatpush.msra.mxu0 0.0
        %747 = vmatpush.msra.mxu0 0.0
        %748 = vmatpush.msra.mxu0 %v731
        %749 = vmatmul.f32.gmra.mxu0 %v728
        %v750 = vpop.f32.mrf.mxu0
        %v751 = vadd.f32 0.0, %v750
        %752 = vdwg.mxu0
        %v753 = vadd.f32 %v724, %v751
        %s754 = scalar_lea.vmem %s285, 64
        %v755 = vld [vmem:[%s754] sm:$0xff]
        %v756 = vld [vmem:[%s2 + $0x18] sm:$0xf]
        %v758 = vsel %vm314, %v755, 0
        %v761 = vsel %vm318, %v756, 0
        %763 = vmatpush.msra.mxu0 0.0
        %764 = vmatpush.msra.mxu0 0.0
        %765 = vmatpush.msra.mxu0 0.0
        %766 = vmatpush.msra.mxu0 0.0
        %767 = vmatpush.msra.mxu0 0.0
        %768 = vmatpush.msra.mxu0 0.0
        %769 = vmatpush.msra.mxu0 0.0
        %770 = vmatpush.msra.mxu0 0.0
        %771 = vmatpush.msra.mxu0 0.0
        %772 = vmatpush.msra.mxu0 0.0
        %773 = vmatpush.msra.mxu0 0.0
        %774 = vmatpush.msra.mxu0 0.0
        %775 = vmatpush.msra.mxu0 0.0
        %776 = vmatpush.msra.mxu0 0.0
        %777 = vmatpush.msra.mxu0 0.0
        %778 = vmatpush.msra.mxu0 %v761
        %779 = vmatmul.f32.gmra.mxu0 %v758
        %v780 = vpop.f32.mrf.mxu0
        %v781 = vadd.f32 0.0, %v780
        %782 = vdwg.mxu0
        %v783 = vadd.f32 %v753, %v781
        %v784 = vld [vmem:[%s2 + $0x1c] sm:$0xf]
        %785 = vrot.lane.b32.xlu0 %v755, 124
        %v786 = vpop.permute.xlu0 %785
        %v787 = vsel %vm314, %v786, 0
        %v790 = vsel %vm318, %v784, 0
        %792 = vmatpush.msra.mxu0 0.0
        %793 = vmatpush.msra.mxu0 0.0
        %794 = vmatpush.msra.mxu0 0.0
        %795 = vmatpush.msra.mxu0 0.0
        %796 = vmatpush.msra.mxu0 0.0
        %797 = vmatpush.msra.mxu0 0.0
        %798 = vmatpush.msra.mxu0 0.0
        %799 = vmatpush.msra.mxu0 0.0
        %800 = vmatpush.msra.mxu0 0.0
        %801 = vmatpush.msra.mxu0 0.0
        %802 = vmatpush.msra.mxu0 0.0
        %803 = vmatpush.msra.mxu0 0.0
        %804 = vmatpush.msra.mxu0 0.0
        %805 = vmatpush.msra.mxu0 0.0
        %806 = vmatpush.msra.mxu0 0.0
        %807 = vmatpush.msra.mxu0 %v790
        %808 = vmatmul.f32.gmra.mxu0 %v787
        %v809 = vpop.f32.mrf.mxu0
        %v810 = vadd.f32 0.0, %v809
        %811 = vdwg.mxu0
        %v812 = vadd.f32 %v783, %v810
        %v813 = vld [vmem:[%s754 + $0x1] sm:$0xff]
        %v814 = vld [vmem:[%s2 + $0x20] sm:$0xf]
        %v816 = vsel %vm314, %v813, 0
        %v819 = vsel %vm318, %v814, 0
        %821 = vmatpush.msra.mxu0 0.0
        %822 = vmatpush.msra.mxu0 0.0
        %823 = vmatpush.msra.mxu0 0.0
        %824 = vmatpush.msra.mxu0 0.0
        %825 = vmatpush.msra.mxu0 0.0
        %826 = vmatpush.msra.mxu0 0.0
        %827 = vmatpush.msra.mxu0 0.0
        %828 = vmatpush.msra.mxu0 0.0
        %829 = vmatpush.msra.mxu0 0.0
        %830 = vmatpush.msra.mxu0 0.0
        %831 = vmatpush.msra.mxu0 0.0
        %832 = vmatpush.msra.mxu0 0.0
        %833 = vmatpush.msra.mxu0 0.0
        %834 = vmatpush.msra.mxu0 0.0
        %835 = vmatpush.msra.mxu0 0.0
        %836 = vmatpush.msra.mxu0 %v819
        %837 = vmatmul.f32.gmra.mxu0 %v816
        %v838 = vpop.f32.mrf.mxu0
        %v839 = vadd.f32 0.0, %v838
        %840 = vdwg.mxu0
        %v841 = vadd.f32 %v812, %v839
        %s842 = scalar_lea.vmem %s270, 8 [#allocation2]
        %843 = vst.msk [vmem:[%s842] sm:$0xff] %vm577, %v841
        %v844 = vld [vmem:[%s754] sm:$0xff]
        %v845 = vld [vmem:[%s2] sm:$0xf]
        %v847 = vsel %vm314, %v844, 0
        %v850 = vsel %vm318, %v845, 0
        %852 = vmatpush.msra.mxu0 0.0
        %853 = vmatpush.msra.mxu0 0.0
        %854 = vmatpush.msra.mxu0 0.0
        %855 = vmatpush.msra.mxu0 0.0
        %856 = vmatpush.msra.mxu0 0.0
        %857 = vmatpush.msra.mxu0 0.0
        %858 = vmatpush.msra.mxu0 0.0
        %859 = vmatpush.msra.mxu0 0.0
        %860 = vmatpush.msra.mxu0 0.0
        %861 = vmatpush.msra.mxu0 0.0
        %862 = vmatpush.msra.mxu0 0.0
        %863 = vmatpush.msra.mxu0 0.0
        %864 = vmatpush.msra.mxu0 0.0
        %865 = vmatpush.msra.mxu0 0.0
        %866 = vmatpush.msra.mxu0 0.0
        %867 = vmatpush.msra.mxu0 %v850
        %868 = vmatmul.f32.gmra.mxu0 %v847
        %v869 = vpop.f32.mrf.mxu0
        %v870 = vadd.f32 0.0, %v869
        %871 = vdwg.mxu0
        %v872 = vadd.f32 %v310, %v870
        %v873 = vld [vmem:[%s2 + $0x4] sm:$0xf]
        %874 = vrot.lane.b32.xlu0 %v844, 124
        %v875 = vpop.permute.xlu0 %874
        %v876 = vsel %vm314, %v875, 0
        %v879 = vsel %vm318, %v873, 0
        %881 = vmatpush.msra.mxu0 0.0
        %882 = vmatpush.msra.mxu0 0.0
        %883 = vmatpush.msra.mxu0 0.0
        %884 = vmatpush.msra.mxu0 0.0
        %885 = vmatpush.msra.mxu0 0.0
        %886 = vmatpush.msra.mxu0 0.0
        %887 = vmatpush.msra.mxu0 0.0
        %888 = vmatpush.msra.mxu0 0.0
        %889 = vmatpush.msra.mxu0 0.0
        %890 = vmatpush.msra.mxu0 0.0
        %891 = vmatpush.msra.mxu0 0.0
        %892 = vmatpush.msra.mxu0 0.0
        %893 = vmatpush.msra.mxu0 0.0
        %894 = vmatpush.msra.mxu0 0.0
        %895 = vmatpush.msra.mxu0 0.0
        %896 = vmatpush.msra.mxu0 %v879
        %897 = vmatmul.f32.gmra.mxu0 %v876
        %v898 = vpop.f32.mrf.mxu0
        %v899 = vadd.f32 0.0, %v898
        %900 = vdwg.mxu0
        %v901 = vadd.f32 %v872, %v899
        %v902 = vld [vmem:[%s754 + $0x1] sm:$0xff]
        %v903 = vld [vmem:[%s2 + $0x8] sm:$0xf]
        %v905 = vsel %vm314, %v902, 0
        %v908 = vsel %vm318, %v903, 0
        %910 = vmatpush.msra.mxu0 0.0
        %911 = vmatpush.msra.mxu0 0.0
        %912 = vmatpush.msra.mxu0 0.0
        %913 = vmatpush.msra.mxu0 0.0
        %914 = vmatpush.msra.mxu0 0.0
        %915 = vmatpush.msra.mxu0 0.0
        %916 = vmatpush.msra.mxu0 0.0
        %917 = vmatpush.msra.mxu0 0.0
        %918 = vmatpush.msra.mxu0 0.0
        %919 = vmatpush.msra.mxu0 0.0
        %920 = vmatpush.msra.mxu0 0.0
        %921 = vmatpush.msra.mxu0 0.0
        %922 = vmatpush.msra.mxu0 0.0
        %923 = vmatpush.msra.mxu0 0.0
        %924 = vmatpush.msra.mxu0 0.0
        %925 = vmatpush.msra.mxu0 %v908
        %926 = vmatmul.f32.gmra.mxu0 %v905
        %v927 = vpop.f32.mrf.mxu0
        %v928 = vadd.f32 0.0, %v927
        %929 = vdwg.mxu0
        %v930 = vadd.f32 %v901, %v928
        %s931 = scalar_lea.vmem %s285, 80
        %v932 = vld [vmem:[%s931] sm:$0xff]
        %v933 = vld [vmem:[%s2 + $0xc] sm:$0xf]
        %v935 = vsel %vm314, %v932, 0
        %v938 = vsel %vm318, %v933, 0
        %940 = vmatpush.msra.mxu0 0.0
        %941 = vmatpush.msra.mxu0 0.0
        %942 = vmatpush.msra.mxu0 0.0
        %943 = vmatpush.msra.mxu0 0.0
        %944 = vmatpush.msra.mxu0 0.0
        %945 = vmatpush.msra.mxu0 0.0
        %946 = vmatpush.msra.mxu0 0.0
        %947 = vmatpush.msra.mxu0 0.0
        %948 = vmatpush.msra.mxu0 0.0
        %949 = vmatpush.msra.mxu0 0.0
        %950 = vmatpush.msra.mxu0 0.0
        %951 = vmatpush.msra.mxu0 0.0
        %952 = vmatpush.msra.mxu0 0.0
        %953 = vmatpush.msra.mxu0 0.0
        %954 = vmatpush.msra.mxu0 0.0
        %955 = vmatpush.msra.mxu0 %v938
        %956 = vmatmul.f32.gmra.mxu0 %v935
        %v957 = vpop.f32.mrf.mxu0
        %v958 = vadd.f32 0.0, %v957
        %959 = vdwg.mxu0
        %v960 = vadd.f32 %v930, %v958
        %v961 = vld [vmem:[%s2 + $0x10] sm:$0xf]
        %962 = vrot.lane.b32.xlu0 %v932, 124
        %v963 = vpop.permute.xlu0 %962
        %v964 = vsel %vm314, %v963, 0
        %v967 = vsel %vm318, %v961, 0
        %969 = vmatpush.msra.mxu0 0.0
        %970 = vmatpush.msra.mxu0 0.0
        %971 = vmatpush.msra.mxu0 0.0
        %972 = vmatpush.msra.mxu0 0.0
        %973 = vmatpush.msra.mxu0 0.0
        %974 = vmatpush.msra.mxu0 0.0
        %975 = vmatpush.msra.mxu0 0.0
        %976 = vmatpush.msra.mxu0 0.0
        %977 = vmatpush.msra.mxu0 0.0
        %978 = vmatpush.msra.mxu0 0.0
        %979 = vmatpush.msra.mxu0 0.0
        %980 = vmatpush.msra.mxu0 0.0
        %981 = vmatpush.msra.mxu0 0.0
        %982 = vmatpush.msra.mxu0 0.0
        %983 = vmatpush.msra.mxu0 0.0
        %984 = vmatpush.msra.mxu0 %v967
        %985 = vmatmul.f32.gmra.mxu0 %v964
        %v986 = vpop.f32.mrf.mxu0
        %v987 = vadd.f32 0.0, %v986
        %988 = vdwg.mxu0
        %v989 = vadd.f32 %v960, %v987
        %v990 = vld [vmem:[%s931 + $0x1] sm:$0xff]
        %v991 = vld [vmem:[%s2 + $0x14] sm:$0xf]
        %v993 = vsel %vm314, %v990, 0
        %v996 = vsel %vm318, %v991, 0
        %998 = vmatpush.msra.mxu0 0.0
        %999 = vmatpush.msra.mxu0 0.0
        %1000 = vmatpush.msra.mxu0 0.0
        %1001 = vmatpush.msra.mxu0 0.0
        %1002 = vmatpush.msra.mxu0 0.0
        %1003 = vmatpush.msra.mxu0 0.0
        %1004 = vmatpush.msra.mxu0 0.0
        %1005 = vmatpush.msra.mxu0 0.0
        %1006 = vmatpush.msra.mxu0 0.0
        %1007 = vmatpush.msra.mxu0 0.0
        %1008 = vmatpush.msra.mxu0 0.0
        %1009 = vmatpush.msra.mxu0 0.0
        %1010 = vmatpush.msra.mxu0 0.0
        %1011 = vmatpush.msra.mxu0 0.0
        %1012 = vmatpush.msra.mxu0 0.0
        %1013 = vmatpush.msra.mxu0 %v996
        %1014 = vmatmul.f32.gmra.mxu0 %v993
        %v1015 = vpop.f32.mrf.mxu0
        %v1016 = vadd.f32 0.0, %v1015
        %1017 = vdwg.mxu0
        %v1018 = vadd.f32 %v989, %v1016
        %s1019 = scalar_lea.vmem %s285, 96
        %v1020 = vld [vmem:[%s1019] sm:$0xff]
        %v1021 = vld [vmem:[%s2 + $0x18] sm:$0xf]
        %v1023 = vsel %vm314, %v1020, 0
        %v1026 = vsel %vm318, %v1021, 0
        %1028 = vmatpush.msra.mxu0 0.0
        %1029 = vmatpush.msra.mxu0 0.0
        %1030 = vmatpush.msra.mxu0 0.0
        %1031 = vmatpush.msra.mxu0 0.0
        %1032 = vmatpush.msra.mxu0 0.0
        %1033 = vmatpush.msra.mxu0 0.0
        %1034 = vmatpush.msra.mxu0 0.0
        %1035 = vmatpush.msra.mxu0 0.0
        %1036 = vmatpush.msra.mxu0 0.0
        %1037 = vmatpush.msra.mxu0 0.0
        %1038 = vmatpush.msra.mxu0 0.0
        %1039 = vmatpush.msra.mxu0 0.0
        %1040 = vmatpush.msra.mxu0 0.0
        %1041 = vmatpush.msra.mxu0 0.0
        %1042 = vmatpush.msra.mxu0 0.0
        %1043 = vmatpush.msra.mxu0 %v1026
        %1044 = vmatmul.f32.gmra.mxu0 %v1023
        %v1045 = vpop.f32.mrf.mxu0
        %v1046 = vadd.f32 0.0, %v1045
        %1047 = vdwg.mxu0
        %v1048 = vadd.f32 %v1018, %v1046
        %v1049 = vld [vmem:[%s2 + $0x1c] sm:$0xf]
        %1050 = vrot.lane.b32.xlu0 %v1020, 124
        %v1051 = vpop.permute.xlu0 %1050
        %v1052 = vsel %vm314, %v1051, 0
        %v1055 = vsel %vm318, %v1049, 0
        %1057 = vmatpush.msra.mxu0 0.0
        %1058 = vmatpush.msra.mxu0 0.0
        %1059 = vmatpush.msra.mxu0 0.0
        %1060 = vmatpush.msra.mxu0 0.0
        %1061 = vmatpush.msra.mxu0 0.0
        %1062 = vmatpush.msra.mxu0 0.0
        %1063 = vmatpush.msra.mxu0 0.0
        %1064 = vmatpush.msra.mxu0 0.0
        %1065 = vmatpush.msra.mxu0 0.0
        %1066 = vmatpush.msra.mxu0 0.0
        %1067 = vmatpush.msra.mxu0 0.0
        %1068 = vmatpush.msra.mxu0 0.0
        %1069 = vmatpush.msra.mxu0 0.0
        %1070 = vmatpush.msra.mxu0 0.0
        %1071 = vmatpush.msra.mxu0 0.0
        %1072 = vmatpush.msra.mxu0 %v1055
        %1073 = vmatmul.f32.gmra.mxu0 %v1052
        %v1074 = vpop.f32.mrf.mxu0
        %v1075 = vadd.f32 0.0, %v1074
        %1076 = vdwg.mxu0
        %v1077 = vadd.f32 %v1048, %v1075
        %v1078 = vld [vmem:[%s1019 + $0x1] sm:$0xff]
        %v1079 = vld [vmem:[%s2 + $0x20] sm:$0xf]
        %v1081 = vsel %vm314, %v1078, 0
        %v1084 = vsel %vm318, %v1079, 0
        %1086 = vmatpush.msra.mxu0 0.0
        %1087 = vmatpush.msra.mxu0 0.0
        %1088 = vmatpush.msra.mxu0 0.0
        %1089 = vmatpush.msra.mxu0 0.0
        %1090 = vmatpush.msra.mxu0 0.0
        %1091 = vmatpush.msra.mxu0 0.0
        %1092 = vmatpush.msra.mxu0 0.0
        %1093 = vmatpush.msra.mxu0 0.0
        %1094 = vmatpush.msra.mxu0 0.0
        %1095 = vmatpush.msra.mxu0 0.0
        %1096 = vmatpush.msra.mxu0 0.0
        %1097 = vmatpush.msra.mxu0 0.0
        %1098 = vmatpush.msra.mxu0 0.0
        %1099 = vmatpush.msra.mxu0 0.0
        %1100 = vmatpush.msra.mxu0 0.0
        %1101 = vmatpush.msra.mxu0 %v1084
        %1102 = vmatmul.f32.gmra.mxu0 %v1081
        %v1103 = vpop.f32.mrf.mxu0
        %v1104 = vadd.f32 0.0, %v1103
        %1105 = vdwg.mxu0
        %v1106 = vadd.f32 %v1077, %v1104
        %s1107 = scalar_lea.vmem %s270, 16 [#allocation2]
        %1108 = vst.msk [vmem:[%s1107] sm:$0xff] %vm577, %v1106
        %v1109 = vld [vmem:[%s1019] sm:$0xff]
        %v1110 = vld [vmem:[%s2] sm:$0xf]
        %v1112 = vsel %vm314, %v1109, 0
        %v1115 = vsel %vm318, %v1110, 0
        %1117 = vmatpush.msra.mxu0 0.0
        %1118 = vmatpush.msra.mxu0 0.0
        %1119 = vmatpush.msra.mxu0 0.0
        %1120 = vmatpush.msra.mxu0 0.0
        %1121 = vmatpush.msra.mxu0 0.0
        %1122 = vmatpush.msra.mxu0 0.0
        %1123 = vmatpush.msra.mxu0 0.0
        %1124 = vmatpush.msra.mxu0 0.0
        %1125 = vmatpush.msra.mxu0 0.0
        %1126 = vmatpush.msra.mxu0 0.0
        %1127 = vmatpush.msra.mxu0 0.0
        %1128 = vmatpush.msra.mxu0 0.0
        %1129 = vmatpush.msra.mxu0 0.0
        %1130 = vmatpush.msra.mxu0 0.0
        %1131 = vmatpush.msra.mxu0 0.0
        %1132 = vmatpush.msra.mxu0 %v1115
        %1133 = vmatmul.f32.gmra.mxu0 %v1112
        %v1134 = vpop.f32.mrf.mxu0
        %v1135 = vadd.f32 0.0, %v1134
        %1136 = vdwg.mxu0
        %v1137 = vadd.f32 %v310, %v1135
        %v1138 = vld [vmem:[%s2 + $0x4] sm:$0xf]
        %1139 = vrot.lane.b32.xlu0 %v1109, 124
        %v1140 = vpop.permute.xlu0 %1139
        %v1141 = vsel %vm314, %v1140, 0
        %v1144 = vsel %vm318, %v1138, 0
        %1146 = vmatpush.msra.mxu0 0.0
        %1147 = vmatpush.msra.mxu0 0.0
        %1148 = vmatpush.msra.mxu0 0.0
        %1149 = vmatpush.msra.mxu0 0.0
        %1150 = vmatpush.msra.mxu0 0.0
        %1151 = vmatpush.msra.mxu0 0.0
        %1152 = vmatpush.msra.mxu0 0.0
        %1153 = vmatpush.msra.mxu0 0.0
        %1154 = vmatpush.msra.mxu0 0.0
        %1155 = vmatpush.msra.mxu0 0.0
        %1156 = vmatpush.msra.mxu0 0.0
        %1157 = vmatpush.msra.mxu0 0.0
        %1158 = vmatpush.msra.mxu0 0.0
        %1159 = vmatpush.msra.mxu0 0.0
        %1160 = vmatpush.msra.mxu0 0.0
        %1161 = vmatpush.msra.mxu0 %v1144
        %1162 = vmatmul.f32.gmra.mxu0 %v1141
        %v1163 = vpop.f32.mrf.mxu0
        %v1164 = vadd.f32 0.0, %v1163
        %1165 = vdwg.mxu0
        %v1166 = vadd.f32 %v1137, %v1164
        %v1167 = vld [vmem:[%s1019 + $0x1] sm:$0xff]
        %v1168 = vld [vmem:[%s2 + $0x8] sm:$0xf]
        %v1170 = vsel %vm314, %v1167, 0
        %v1173 = vsel %vm318, %v1168, 0
        %1175 = vmatpush.msra.mxu0 0.0
        %1176 = vmatpush.msra.mxu0 0.0
        %1177 = vmatpush.msra.mxu0 0.0
        %1178 = vmatpush.msra.mxu0 0.0
        %1179 = vmatpush.msra.mxu0 0.0
        %1180 = vmatpush.msra.mxu0 0.0
        %1181 = vmatpush.msra.mxu0 0.0
        %1182 = vmatpush.msra.mxu0 0.0
        %1183 = vmatpush.msra.mxu0 0.0
        %1184 = vmatpush.msra.mxu0 0.0
        %1185 = vmatpush.msra.mxu0 0.0
        %1186 = vmatpush.msra.mxu0 0.0
        %1187 = vmatpush.msra.mxu0 0.0
        %1188 = vmatpush.msra.mxu0 0.0
        %1189 = vmatpush.msra.mxu0 0.0
        %1190 = vmatpush.msra.mxu0 %v1173
        %1191 = vmatmul.f32.gmra.mxu0 %v1170
        %v1192 = vpop.f32.mrf.mxu0
        %v1193 = vadd.f32 0.0, %v1192
        %1194 = vdwg.mxu0
        %v1195 = vadd.f32 %v1166, %v1193
        %s1196 = scalar_lea.vmem %s285, 112
        %v1197 = vld [vmem:[%s1196] sm:$0xff]
        %v1198 = vld [vmem:[%s2 + $0xc] sm:$0xf]
        %v1200 = vsel %vm314, %v1197, 0
        %v1203 = vsel %vm318, %v1198, 0
        %1205 = vmatpush.msra.mxu0 0.0
        %1206 = vmatpush.msra.mxu0 0.0
        %1207 = vmatpush.msra.mxu0 0.0
        %1208 = vmatpush.msra.mxu0 0.0
        %1209 = vmatpush.msra.mxu0 0.0
        %1210 = vmatpush.msra.mxu0 0.0
        %1211 = vmatpush.msra.mxu0 0.0
        %1212 = vmatpush.msra.mxu0 0.0
        %1213 = vmatpush.msra.mxu0 0.0
        %1214 = vmatpush.msra.mxu0 0.0
        %1215 = vmatpush.msra.mxu0 0.0
        %1216 = vmatpush.msra.mxu0 0.0
        %1217 = vmatpush.msra.mxu0 0.0
        %1218 = vmatpush.msra.mxu0 0.0
        %1219 = vmatpush.msra.mxu0 0.0
        %1220 = vmatpush.msra.mxu0 %v1203
        %1221 = vmatmul.f32.gmra.mxu0 %v1200
        %v1222 = vpop.f32.mrf.mxu0
        %v1223 = vadd.f32 0.0, %v1222
        %1224 = vdwg.mxu0
        %v1225 = vadd.f32 %v1195, %v1223
        %v1226 = vld [vmem:[%s2 + $0x10] sm:$0xf]
        %1227 = vrot.lane.b32.xlu0 %v1197, 124
        %v1228 = vpop.permute.xlu0 %1227
        %v1229 = vsel %vm314, %v1228, 0
        %v1232 = vsel %vm318, %v1226, 0
        %1234 = vmatpush.msra.mxu0 0.0
        %1235 = vmatpush.msra.mxu0 0.0
        %1236 = vmatpush.msra.mxu0 0.0
        %1237 = vmatpush.msra.mxu0 0.0
        %1238 = vmatpush.msra.mxu0 0.0
        %1239 = vmatpush.msra.mxu0 0.0
        %1240 = vmatpush.msra.mxu0 0.0
        %1241 = vmatpush.msra.mxu0 0.0
        %1242 = vmatpush.msra.mxu0 0.0
        %1243 = vmatpush.msra.mxu0 0.0
        %1244 = vmatpush.msra.mxu0 0.0
        %1245 = vmatpush.msra.mxu0 0.0
        %1246 = vmatpush.msra.mxu0 0.0
        %1247 = vmatpush.msra.mxu0 0.0
        %1248 = vmatpush.msra.mxu0 0.0
        %1249 = vmatpush.msra.mxu0 %v1232
        %1250 = vmatmul.f32.gmra.mxu0 %v1229
        %v1251 = vpop.f32.mrf.mxu0
        %v1252 = vadd.f32 0.0, %v1251
        %1253 = vdwg.mxu0
        %v1254 = vadd.f32 %v1225, %v1252
        %v1255 = vld [vmem:[%s1196 + $0x1] sm:$0xff]
        %v1256 = vld [vmem:[%s2 + $0x14] sm:$0xf]
        %v1258 = vsel %vm314, %v1255, 0
        %v1261 = vsel %vm318, %v1256, 0
        %1263 = vmatpush.msra.mxu0 0.0
        %1264 = vmatpush.msra.mxu0 0.0
        %1265 = vmatpush.msra.mxu0 0.0
        %1266 = vmatpush.msra.mxu0 0.0
        %1267 = vmatpush.msra.mxu0 0.0
        %1268 = vmatpush.msra.mxu0 0.0
        %1269 = vmatpush.msra.mxu0 0.0
        %1270 = vmatpush.msra.mxu0 0.0
        %1271 = vmatpush.msra.mxu0 0.0
        %1272 = vmatpush.msra.mxu0 0.0
        %1273 = vmatpush.msra.mxu0 0.0
        %1274 = vmatpush.msra.mxu0 0.0
        %1275 = vmatpush.msra.mxu0 0.0
        %1276 = vmatpush.msra.mxu0 0.0
        %1277 = vmatpush.msra.mxu0 0.0
        %1278 = vmatpush.msra.mxu0 %v1261
        %1279 = vmatmul.f32.gmra.mxu0 %v1258
        %v1280 = vpop.f32.mrf.mxu0
        %v1281 = vadd.f32 0.0, %v1280
        %1282 = vdwg.mxu0
        %v1283 = vadd.f32 %v1254, %v1281
        %s1284 = scalar_lea.vmem %s285, 128
        %v1285 = vld [vmem:[%s1284] sm:$0xff]
        %v1286 = vld [vmem:[%s2 + $0x18] sm:$0xf]
        %v1288 = vsel %vm314, %v1285, 0
        %v1291 = vsel %vm318, %v1286, 0
        %1293 = vmatpush.msra.mxu0 0.0
        %1294 = vmatpush.msra.mxu0 0.0
        %1295 = vmatpush.msra.mxu0 0.0
        %1296 = vmatpush.msra.mxu0 0.0
        %1297 = vmatpush.msra.mxu0 0.0
        %1298 = vmatpush.msra.mxu0 0.0
        %1299 = vmatpush.msra.mxu0 0.0
        %1300 = vmatpush.msra.mxu0 0.0
        %1301 = vmatpush.msra.mxu0 0.0
        %1302 = vmatpush.msra.mxu0 0.0
        %1303 = vmatpush.msra.mxu0 0.0
        %1304 = vmatpush.msra.mxu0 0.0
        %1305 = vmatpush.msra.mxu0 0.0
        %1306 = vmatpush.msra.mxu0 0.0
        %1307 = vmatpush.msra.mxu0 0.0
        %1308 = vmatpush.msra.mxu0 %v1291
        %1309 = vmatmul.f32.gmra.mxu0 %v1288
        %v1310 = vpop.f32.mrf.mxu0
        %v1311 = vadd.f32 0.0, %v1310
        %1312 = vdwg.mxu0
        %v1313 = vadd.f32 %v1283, %v1311
        %v1314 = vld [vmem:[%s2 + $0x1c] sm:$0xf]
        %1315 = vrot.lane.b32.xlu0 %v1285, 124
        %v1316 = vpop.permute.xlu0 %1315
        %v1317 = vsel %vm314, %v1316, 0
        %v1320 = vsel %vm318, %v1314, 0
        %1322 = vmatpush.msra.mxu0 0.0
        %1323 = vmatpush.msra.mxu0 0.0
        %1324 = vmatpush.msra.mxu0 0.0
        %1325 = vmatpush.msra.mxu0 0.0
        %1326 = vmatpush.msra.mxu0 0.0
        %1327 = vmatpush.msra.mxu0 0.0
        %1328 = vmatpush.msra.mxu0 0.0
        %1329 = vmatpush.msra.mxu0 0.0
        %1330 = vmatpush.msra.mxu0 0.0
        %1331 = vmatpush.msra.mxu0 0.0
        %1332 = vmatpush.msra.mxu0 0.0
        %1333 = vmatpush.msra.mxu0 0.0
        %1334 = vmatpush.msra.mxu0 0.0
        %1335 = vmatpush.msra.mxu0 0.0
        %1336 = vmatpush.msra.mxu0 0.0
        %1337 = vmatpush.msra.mxu0 %v1320
        %1338 = vmatmul.f32.gmra.mxu0 %v1317
        %v1339 = vpop.f32.mrf.mxu0
        %v1340 = vadd.f32 0.0, %v1339
        %1341 = vdwg.mxu0
        %v1342 = vadd.f32 %v1313, %v1340
        %v1343 = vld [vmem:[%s1284 + $0x1] sm:$0xff]
        %v1344 = vld [vmem:[%s2 + $0x20] sm:$0xf]
        %v1346 = vsel %vm314, %v1343, 0
        %v1349 = vsel %vm318, %v1344, 0
        %1351 = vmatpush.msra.mxu0 0.0
        %1352 = vmatpush.msra.mxu0 0.0
        %1353 = vmatpush.msra.mxu0 0.0
        %1354 = vmatpush.msra.mxu0 0.0
        %1355 = vmatpush.msra.mxu0 0.0
        %1356 = vmatpush.msra.mxu0 0.0
        %1357 = vmatpush.msra.mxu0 0.0
        %1358 = vmatpush.msra.mxu0 0.0
        %1359 = vmatpush.msra.mxu0 0.0
        %1360 = vmatpush.msra.mxu0 0.0
        %1361 = vmatpush.msra.mxu0 0.0
        %1362 = vmatpush.msra.mxu0 0.0
        %1363 = vmatpush.msra.mxu0 0.0
        %1364 = vmatpush.msra.mxu0 0.0
        %1365 = vmatpush.msra.mxu0 0.0
        %1366 = vmatpush.msra.mxu0 %v1349
        %1367 = vmatmul.f32.gmra.mxu0 %v1346
        %v1368 = vpop.f32.mrf.mxu0
        %v1369 = vadd.f32 0.0, %v1368
        %1370 = vdwg.mxu0
        %v1371 = vadd.f32 %v1342, %v1369
        %s1372 = scalar_lea.vmem %s270, 24 [#allocation2]
        %1373 = vst.msk [vmem:[%s1372] sm:$0xff] %vm577, %v1371
        %v1374 = vld [vmem:[%s1284] sm:$0xff]
        %v1375 = vld [vmem:[%s2] sm:$0xf]
        %v1377 = vsel %vm314, %v1374, 0
        %v1380 = vsel %vm318, %v1375, 0
        %1382 = vmatpush.msra.mxu0 0.0
        %1383 = vmatpush.msra.mxu0 0.0
        %1384 = vmatpush.msra.mxu0 0.0
        %1385 = vmatpush.msra.mxu0 0.0
        %1386 = vmatpush.msra.mxu0 0.0
        %1387 = vmatpush.msra.mxu0 0.0
        %1388 = vmatpush.msra.mxu0 0.0
        %1389 = vmatpush.msra.mxu0 0.0
        %1390 = vmatpush.msra.mxu0 0.0
        %1391 = vmatpush.msra.mxu0 0.0
        %1392 = vmatpush.msra.mxu0 0.0
        %1393 = vmatpush.msra.mxu0 0.0
        %1394 = vmatpush.msra.mxu0 0.0
        %1395 = vmatpush.msra.mxu0 0.0
        %1396 = vmatpush.msra.mxu0 0.0
        %1397 = vmatpush.msra.mxu0 %v1380
        %1398 = vmatmul.f32.gmra.mxu0 %v1377
        %v1399 = vpop.f32.mrf.mxu0
        %v1400 = vadd.f32 0.0, %v1399
        %1401 = vdwg.mxu0
        %v1402 = vadd.f32 %v310, %v1400
        %v1403 = vld [vmem:[%s2 + $0x4] sm:$0xf]
        %1404 = vrot.lane.b32.xlu0 %v1374, 124
        %v1405 = vpop.permute.xlu0 %1404
        %v1406 = vsel %vm314, %v1405, 0
        %v1409 = vsel %vm318, %v1403, 0
        %1411 = vmatpush.msra.mxu0 0.0
        %1412 = vmatpush.msra.mxu0 0.0
        %1413 = vmatpush.msra.mxu0 0.0
        %1414 = vmatpush.msra.mxu0 0.0
        %1415 = vmatpush.msra.mxu0 0.0
        %1416 = vmatpush.msra.mxu0 0.0
        %1417 = vmatpush.msra.mxu0 0.0
        %1418 = vmatpush.msra.mxu0 0.0
        %1419 = vmatpush.msra.mxu0 0.0
        %1420 = vmatpush.msra.mxu0 0.0
        %1421 = vmatpush.msra.mxu0 0.0
        %1422 = vmatpush.msra.mxu0 0.0
        %1423 = vmatpush.msra.mxu0 0.0
        %1424 = vmatpush.msra.mxu0 0.0
        %1425 = vmatpush.msra.mxu0 0.0
        %1426 = vmatpush.msra.mxu0 %v1409
        %1427 = vmatmul.f32.gmra.mxu0 %v1406
        %v1428 = vpop.f32.mrf.mxu0
        %v1429 = vadd.f32 0.0, %v1428
        %1430 = vdwg.mxu0
        %v1431 = vadd.f32 %v1402, %v1429
        %v1432 = vld [vmem:[%s1284 + $0x1] sm:$0xff]
        %v1433 = vld [vmem:[%s2 + $0x8] sm:$0xf]
        %v1435 = vsel %vm314, %v1432, 0
        %v1438 = vsel %vm318, %v1433, 0
        %1440 = vmatpush.msra.mxu0 0.0
        %1441 = vmatpush.msra.mxu0 0.0
        %1442 = vmatpush.msra.mxu0 0.0
        %1443 = vmatpush.msra.mxu0 0.0
        %1444 = vmatpush.msra.mxu0 0.0
        %1445 = vmatpush.msra.mxu0 0.0
        %1446 = vmatpush.msra.mxu0 0.0
        %1447 = vmatpush.msra.mxu0 0.0
        %1448 = vmatpush.msra.mxu0 0.0
        %1449 = vmatpush.msra.mxu0 0.0
        %1450 = vmatpush.msra.mxu0 0.0
        %1451 = vmatpush.msra.mxu0 0.0
        %1452 = vmatpush.msra.mxu0 0.0
        %1453 = vmatpush.msra.mxu0 0.0
        %1454 = vmatpush.msra.mxu0 0.0
        %1455 = vmatpush.msra.mxu0 %v1438
        %1456 = vmatmul.f32.gmra.mxu0 %v1435
        %v1457 = vpop.f32.mrf.mxu0
        %v1458 = vadd.f32 0.0, %v1457
        %1459 = vdwg.mxu0
        %v1460 = vadd.f32 %v1431, %v1458
        %s1461 = scalar_lea.vmem %s285, 144
        %v1462 = vld [vmem:[%s1461] sm:$0xff]
        %v1463 = vld [vmem:[%s2 + $0xc] sm:$0xf]
        %v1465 = vsel %vm314, %v1462, 0
        %v1468 = vsel %vm318, %v1463, 0
        %1470 = vmatpush.msra.mxu0 0.0
        %1471 = vmatpush.msra.mxu0 0.0
        %1472 = vmatpush.msra.mxu0 0.0
        %1473 = vmatpush.msra.mxu0 0.0
        %1474 = vmatpush.msra.mxu0 0.0
        %1475 = vmatpush.msra.mxu0 0.0
        %1476 = vmatpush.msra.mxu0 0.0
        %1477 = vmatpush.msra.mxu0 0.0
        %1478 = vmatpush.msra.mxu0 0.0
        %1479 = vmatpush.msra.mxu0 0.0
        %1480 = vmatpush.msra.mxu0 0.0
        %1481 = vmatpush.msra.mxu0 0.0
        %1482 = vmatpush.msra.mxu0 0.0
        %1483 = vmatpush.msra.mxu0 0.0
        %1484 = vmatpush.msra.mxu0 0.0
        %1485 = vmatpush.msra.mxu0 %v1468
        %1486 = vmatmul.f32.gmra.mxu0 %v1465
        %v1487 = vpop.f32.mrf.mxu0
        %v1488 = vadd.f32 0.0, %v1487
        %1489 = vdwg.mxu0
        %v1490 = vadd.f32 %v1460, %v1488
        %v1491 = vld [vmem:[%s2 + $0x10] sm:$0xf]
        %1492 = vrot.lane.b32.xlu0 %v1462, 124
        %v1493 = vpop.permute.xlu0 %1492
        %v1494 = vsel %vm314, %v1493, 0
        %v1497 = vsel %vm318, %v1491, 0
        %1499 = vmatpush.msra.mxu0 0.0
        %1500 = vmatpush.msra.mxu0 0.0
        %1501 = vmatpush.msra.mxu0 0.0
        %1502 = vmatpush.msra.mxu0 0.0
        %1503 = vmatpush.msra.mxu0 0.0
        %1504 = vmatpush.msra.mxu0 0.0
        %1505 = vmatpush.msra.mxu0 0.0
        %1506 = vmatpush.msra.mxu0 0.0
        %1507 = vmatpush.msra.mxu0 0.0
        %1508 = vmatpush.msra.mxu0 0.0
        %1509 = vmatpush.msra.mxu0 0.0
        %1510 = vmatpush.msra.mxu0 0.0
        %1511 = vmatpush.msra.mxu0 0.0
        %1512 = vmatpush.msra.mxu0 0.0
        %1513 = vmatpush.msra.mxu0 0.0
        %1514 = vmatpush.msra.mxu0 %v1497
        %1515 = vmatmul.f32.gmra.mxu0 %v1494
        %v1516 = vpop.f32.mrf.mxu0
        %v1517 = vadd.f32 0.0, %v1516
        %1518 = vdwg.mxu0
        %v1519 = vadd.f32 %v1490, %v1517
        %v1520 = vld [vmem:[%s1461 + $0x1] sm:$0xff]
        %v1521 = vld [vmem:[%s2 + $0x14] sm:$0xf]
        %v1523 = vsel %vm314, %v1520, 0
        %v1526 = vsel %vm318, %v1521, 0
        %1528 = vmatpush.msra.mxu0 0.0
        %1529 = vmatpush.msra.mxu0 0.0
        %1530 = vmatpush.msra.mxu0 0.0
        %1531 = vmatpush.msra.mxu0 0.0
        %1532 = vmatpush.msra.mxu0 0.0
        %1533 = vmatpush.msra.mxu0 0.0
        %1534 = vmatpush.msra.mxu0 0.0
        %1535 = vmatpush.msra.mxu0 0.0
        %1536 = vmatpush.msra.mxu0 0.0
        %1537 = vmatpush.msra.mxu0 0.0
        %1538 = vmatpush.msra.mxu0 0.0
        %1539 = vmatpush.msra.mxu0 0.0
        %1540 = vmatpush.msra.mxu0 0.0
        %1541 = vmatpush.msra.mxu0 0.0
        %1542 = vmatpush.msra.mxu0 0.0
        %1543 = vmatpush.msra.mxu0 %v1526
        %1544 = vmatmul.f32.gmra.mxu0 %v1523
        %v1545 = vpop.f32.mrf.mxu0
        %v1546 = vadd.f32 0.0, %v1545
        %1547 = vdwg.mxu0
        %v1548 = vadd.f32 %v1519, %v1546
        %s1549 = scalar_lea.vmem %s285, 160
        %v1550 = vld [vmem:[%s1549] sm:$0xff]
        %v1551 = vld [vmem:[%s2 + $0x18] sm:$0xf]
        %v1553 = vsel %vm314, %v1550, 0
        %v1556 = vsel %vm318, %v1551, 0
        %1558 = vmatpush.msra.mxu0 0.0
        %1559 = vmatpush.msra.mxu0 0.0
        %1560 = vmatpush.msra.mxu0 0.0
        %1561 = vmatpush.msra.mxu0 0.0
        %1562 = vmatpush.msra.mxu0 0.0
        %1563 = vmatpush.msra.mxu0 0.0
        %1564 = vmatpush.msra.mxu0 0.0
        %1565 = vmatpush.msra.mxu0 0.0
        %1566 = vmatpush.msra.mxu0 0.0
        %1567 = vmatpush.msra.mxu0 0.0
        %1568 = vmatpush.msra.mxu0 0.0
        %1569 = vmatpush.msra.mxu0 0.0
        %1570 = vmatpush.msra.mxu0 0.0
        %1571 = vmatpush.msra.mxu0 0.0
        %1572 = vmatpush.msra.mxu0 0.0
        %1573 = vmatpush.msra.mxu0 %v1556
        %1574 = vmatmul.f32.gmra.mxu0 %v1553
        %v1575 = vpop.f32.mrf.mxu0
        %v1576 = vadd.f32 0.0, %v1575
        %1577 = vdwg.mxu0
        %v1578 = vadd.f32 %v1548, %v1576
        %v1579 = vld [vmem:[%s2 + $0x1c] sm:$0xf]
        %1580 = vrot.lane.b32.xlu0 %v1550, 124
        %v1581 = vpop.permute.xlu0 %1580
        %v1582 = vsel %vm314, %v1581, 0
        %v1585 = vsel %vm318, %v1579, 0
        %1587 = vmatpush.msra.mxu0 0.0
        %1588 = vmatpush.msra.mxu0 0.0
        %1589 = vmatpush.msra.mxu0 0.0
        %1590 = vmatpush.msra.mxu0 0.0
        %1591 = vmatpush.msra.mxu0 0.0
        %1592 = vmatpush.msra.mxu0 0.0
        %1593 = vmatpush.msra.mxu0 0.0
        %1594 = vmatpush.msra.mxu0 0.0
        %1595 = vmatpush.msra.mxu0 0.0
        %1596 = vmatpush.msra.mxu0 0.0
        %1597 = vmatpush.msra.mxu0 0.0
        %1598 = vmatpush.msra.mxu0 0.0
        %1599 = vmatpush.msra.mxu0 0.0
        %1600 = vmatpush.msra.mxu0 0.0
        %1601 = vmatpush.msra.mxu0 0.0
        %1602 = vmatpush.msra.mxu0 %v1585
        %1603 = vmatmul.f32.gmra.mxu0 %v1582
        %v1604 = vpop.f32.mrf.mxu0
        %v1605 = vadd.f32 0.0, %v1604
        %1606 = vdwg.mxu0
        %v1607 = vadd.f32 %v1578, %v1605
        %v1608 = vld [vmem:[%s1549 + $0x1] sm:$0xff]
        %v1609 = vld [vmem:[%s2 + $0x20] sm:$0xf]
        %v1611 = vsel %vm314, %v1608, 0
        %v1614 = vsel %vm318, %v1609, 0
        %1616 = vmatpush.msra.mxu0 0.0
        %1617 = vmatpush.msra.mxu0 0.0
        %1618 = vmatpush.msra.mxu0 0.0
        %1619 = vmatpush.msra.mxu0 0.0
        %1620 = vmatpush.msra.mxu0 0.0
        %1621 = vmatpush.msra.mxu0 0.0
        %1622 = vmatpush.msra.mxu0 0.0
        %1623 = vmatpush.msra.mxu0 0.0
        %1624 = vmatpush.msra.mxu0 0.0
        %1625 = vmatpush.msra.mxu0 0.0
        %1626 = vmatpush.msra.mxu0 0.0
        %1627 = vmatpush.msra.mxu0 0.0
        %1628 = vmatpush.msra.mxu0 0.0
        %1629 = vmatpush.msra.mxu0 0.0
        %1630 = vmatpush.msra.mxu0 0.0
        %1631 = vmatpush.msra.mxu0 %v1614
        %1632 = vmatmul.f32.gmra.mxu0 %v1611
        %v1633 = vpop.f32.mrf.mxu0
        %v1634 = vadd.f32 0.0, %v1633
        %1635 = vdwg.mxu0
        %v1636 = vadd.f32 %v1607, %v1634
        %s1637 = scalar_lea.vmem %s270, 32 [#allocation2]
        %1638 = vst.msk [vmem:[%s1637] sm:$0xff] %vm577, %v1636
        %v1639 = vld [vmem:[%s1549] sm:$0xff]
        %v1640 = vld [vmem:[%s2] sm:$0xf]
        %v1642 = vsel %vm314, %v1639, 0
        %v1645 = vsel %vm318, %v1640, 0
        %1647 = vmatpush.msra.mxu0 0.0
        %1648 = vmatpush.msra.mxu0 0.0
        %1649 = vmatpush.msra.mxu0 0.0
        %1650 = vmatpush.msra.mxu0 0.0
        %1651 = vmatpush.msra.mxu0 0.0
        %1652 = vmatpush.msra.mxu0 0.0
        %1653 = vmatpush.msra.mxu0 0.0
        %1654 = vmatpush.msra.mxu0 0.0
        %1655 = vmatpush.msra.mxu0 0.0
        %1656 = vmatpush.msra.mxu0 0.0
        %1657 = vmatpush.msra.mxu0 0.0
        %1658 = vmatpush.msra.mxu0 0.0
        %1659 = vmatpush.msra.mxu0 0.0
        %1660 = vmatpush.msra.mxu0 0.0
        %1661 = vmatpush.msra.mxu0 0.0
        %1662 = vmatpush.msra.mxu0 %v1645
        %1663 = vmatmul.f32.gmra.mxu0 %v1642
        %v1664 = vpop.f32.mrf.mxu0
        %v1665 = vadd.f32 0.0, %v1664
        %1666 = vdwg.mxu0
        %v1667 = vadd.f32 %v310, %v1665
        %v1668 = vld [vmem:[%s2 + $0x4] sm:$0xf]
        %1669 = vrot.lane.b32.xlu0 %v1639, 124
        %v1670 = vpop.permute.xlu0 %1669
        %v1671 = vsel %vm314, %v1670, 0
        %v1674 = vsel %vm318, %v1668, 0
        %1676 = vmatpush.msra.mxu0 0.0
        %1677 = vmatpush.msra.mxu0 0.0
        %1678 = vmatpush.msra.mxu0 0.0
        %1679 = vmatpush.msra.mxu0 0.0
        %1680 = vmatpush.msra.mxu0 0.0
        %1681 = vmatpush.msra.mxu0 0.0
        %1682 = vmatpush.msra.mxu0 0.0
        %1683 = vmatpush.msra.mxu0 0.0
        %1684 = vmatpush.msra.mxu0 0.0
        %1685 = vmatpush.msra.mxu0 0.0
        %1686 = vmatpush.msra.mxu0 0.0
        %1687 = vmatpush.msra.mxu0 0.0
        %1688 = vmatpush.msra.mxu0 0.0
        %1689 = vmatpush.msra.mxu0 0.0
        %1690 = vmatpush.msra.mxu0 0.0
        %1691 = vmatpush.msra.mxu0 %v1674
        %1692 = vmatmul.f32.gmra.mxu0 %v1671
        %v1693 = vpop.f32.mrf.mxu0
        %v1694 = vadd.f32 0.0, %v1693
        %1695 = vdwg.mxu0
        %v1696 = vadd.f32 %v1667, %v1694
        %v1697 = vld [vmem:[%s1549 + $0x1] sm:$0xff]
        %v1698 = vld [vmem:[%s2 + $0x8] sm:$0xf]
        %v1700 = vsel %vm314, %v1697, 0
        %v1703 = vsel %vm318, %v1698, 0
        %1705 = vmatpush.msra.mxu0 0.0
        %1706 = vmatpush.msra.mxu0 0.0
        %1707 = vmatpush.msra.mxu0 0.0
        %1708 = vmatpush.msra.mxu0 0.0
        %1709 = vmatpush.msra.mxu0 0.0
        %1710 = vmatpush.msra.mxu0 0.0
        %1711 = vmatpush.msra.mxu0 0.0
        %1712 = vmatpush.msra.mxu0 0.0
        %1713 = vmatpush.msra.mxu0 0.0
        %1714 = vmatpush.msra.mxu0 0.0
        %1715 = vmatpush.msra.mxu0 0.0
        %1716 = vmatpush.msra.mxu0 0.0
        %1717 = vmatpush.msra.mxu0 0.0
        %1718 = vmatpush.msra.mxu0 0.0
        %1719 = vmatpush.msra.mxu0 0.0
        %1720 = vmatpush.msra.mxu0 %v1703
        %1721 = vmatmul.f32.gmra.mxu0 %v1700
        %v1722 = vpop.f32.mrf.mxu0
        %v1723 = vadd.f32 0.0, %v1722
        %1724 = vdwg.mxu0
        %v1725 = vadd.f32 %v1696, %v1723
        %s1726 = scalar_lea.vmem %s285, 176
        %v1727 = vld [vmem:[%s1726] sm:$0xff]
        %v1728 = vld [vmem:[%s2 + $0xc] sm:$0xf]
        %v1730 = vsel %vm314, %v1727, 0
        %v1733 = vsel %vm318, %v1728, 0
        %1735 = vmatpush.msra.mxu0 0.0
        %1736 = vmatpush.msra.mxu0 0.0
        %1737 = vmatpush.msra.mxu0 0.0
        %1738 = vmatpush.msra.mxu0 0.0
        %1739 = vmatpush.msra.mxu0 0.0
        %1740 = vmatpush.msra.mxu0 0.0
        %1741 = vmatpush.msra.mxu0 0.0
        %1742 = vmatpush.msra.mxu0 0.0
        %1743 = vmatpush.msra.mxu0 0.0
        %1744 = vmatpush.msra.mxu0 0.0
        %1745 = vmatpush.msra.mxu0 0.0
        %1746 = vmatpush.msra.mxu0 0.0
        %1747 = vmatpush.msra.mxu0 0.0
        %1748 = vmatpush.msra.mxu0 0.0
        %1749 = vmatpush.msra.mxu0 0.0
        %1750 = vmatpush.msra.mxu0 %v1733
        %1751 = vmatmul.f32.gmra.mxu0 %v1730
        %v1752 = vpop.f32.mrf.mxu0
        %v1753 = vadd.f32 0.0, %v1752
        %1754 = vdwg.mxu0
        %v1755 = vadd.f32 %v1725, %v1753
        %v1756 = vld [vmem:[%s2 + $0x10] sm:$0xf]
        %1757 = vrot.lane.b32.xlu0 %v1727, 124
        %v1758 = vpop.permute.xlu0 %1757
        %v1759 = vsel %vm314, %v1758, 0
        %v1762 = vsel %vm318, %v1756, 0
        %1764 = vmatpush.msra.mxu0 0.0
        %1765 = vmatpush.msra.mxu0 0.0
        %1766 = vmatpush.msra.mxu0 0.0
        %1767 = vmatpush.msra.mxu0 0.0
        %1768 = vmatpush.msra.mxu0 0.0
        %1769 = vmatpush.msra.mxu0 0.0
        %1770 = vmatpush.msra.mxu0 0.0
        %1771 = vmatpush.msra.mxu0 0.0
        %1772 = vmatpush.msra.mxu0 0.0
        %1773 = vmatpush.msra.mxu0 0.0
        %1774 = vmatpush.msra.mxu0 0.0
        %1775 = vmatpush.msra.mxu0 0.0
        %1776 = vmatpush.msra.mxu0 0.0
        %1777 = vmatpush.msra.mxu0 0.0
        %1778 = vmatpush.msra.mxu0 0.0
        %1779 = vmatpush.msra.mxu0 %v1762
        %1780 = vmatmul.f32.gmra.mxu0 %v1759
        %v1781 = vpop.f32.mrf.mxu0
        %v1782 = vadd.f32 0.0, %v1781
        %1783 = vdwg.mxu0
        %v1784 = vadd.f32 %v1755, %v1782
        %v1785 = vld [vmem:[%s1726 + $0x1] sm:$0xff]
        %v1786 = vld [vmem:[%s2 + $0x14] sm:$0xf]
        %v1788 = vsel %vm314, %v1785, 0
        %v1791 = vsel %vm318, %v1786, 0
        %1793 = vmatpush.msra.mxu0 0.0
        %1794 = vmatpush.msra.mxu0 0.0
        %1795 = vmatpush.msra.mxu0 0.0
        %1796 = vmatpush.msra.mxu0 0.0
        %1797 = vmatpush.msra.mxu0 0.0
        %1798 = vmatpush.msra.mxu0 0.0
        %1799 = vmatpush.msra.mxu0 0.0
        %1800 = vmatpush.msra.mxu0 0.0
        %1801 = vmatpush.msra.mxu0 0.0
        %1802 = vmatpush.msra.mxu0 0.0
        %1803 = vmatpush.msra.mxu0 0.0
        %1804 = vmatpush.msra.mxu0 0.0
        %1805 = vmatpush.msra.mxu0 0.0
        %1806 = vmatpush.msra.mxu0 0.0
        %1807 = vmatpush.msra.mxu0 0.0
        %1808 = vmatpush.msra.mxu0 %v1791
        %1809 = vmatmul.f32.gmra.mxu0 %v1788
        %v1810 = vpop.f32.mrf.mxu0
        %v1811 = vadd.f32 0.0, %v1810
        %1812 = vdwg.mxu0
        %v1813 = vadd.f32 %v1784, %v1811
        %s1814 = scalar_lea.vmem %s285, 192
        %v1815 = vld [vmem:[%s1814] sm:$0xff]
        %v1816 = vld [vmem:[%s2 + $0x18] sm:$0xf]
        %v1818 = vsel %vm314, %v1815, 0
        %v1821 = vsel %vm318, %v1816, 0
        %1823 = vmatpush.msra.mxu0 0.0
        %1824 = vmatpush.msra.mxu0 0.0
        %1825 = vmatpush.msra.mxu0 0.0
        %1826 = vmatpush.msra.mxu0 0.0
        %1827 = vmatpush.msra.mxu0 0.0
        %1828 = vmatpush.msra.mxu0 0.0
        %1829 = vmatpush.msra.mxu0 0.0
        %1830 = vmatpush.msra.mxu0 0.0
        %1831 = vmatpush.msra.mxu0 0.0
        %1832 = vmatpush.msra.mxu0 0.0
        %1833 = vmatpush.msra.mxu0 0.0
        %1834 = vmatpush.msra.mxu0 0.0
        %1835 = vmatpush.msra.mxu0 0.0
        %1836 = vmatpush.msra.mxu0 0.0
        %1837 = vmatpush.msra.mxu0 0.0
        %1838 = vmatpush.msra.mxu0 %v1821
        %1839 = vmatmul.f32.gmra.mxu0 %v1818
        %v1840 = vpop.f32.mrf.mxu0
        %v1841 = vadd.f32 0.0, %v1840
        %1842 = vdwg.mxu0
        %v1843 = vadd.f32 %v1813, %v1841
        %v1844 = vld [vmem:[%s2 + $0x1c] sm:$0xf]
        %1845 = vrot.lane.b32.xlu0 %v1815, 124
        %v1846 = vpop.permute.xlu0 %1845
        %v1847 = vsel %vm314, %v1846, 0
        %v1850 = vsel %vm318, %v1844, 0
        %1852 = vmatpush.msra.mxu0 0.0
        %1853 = vmatpush.msra.mxu0 0.0
        %1854 = vmatpush.msra.mxu0 0.0
        %1855 = vmatpush.msra.mxu0 0.0
        %1856 = vmatpush.msra.mxu0 0.0
        %1857 = vmatpush.msra.mxu0 0.0
        %1858 = vmatpush.msra.mxu0 0.0
        %1859 = vmatpush.msra.mxu0 0.0
        %1860 = vmatpush.msra.mxu0 0.0
        %1861 = vmatpush.msra.mxu0 0.0
        %1862 = vmatpush.msra.mxu0 0.0
        %1863 = vmatpush.msra.mxu0 0.0
        %1864 = vmatpush.msra.mxu0 0.0
        %1865 = vmatpush.msra.mxu0 0.0
        %1866 = vmatpush.msra.mxu0 0.0
        %1867 = vmatpush.msra.mxu0 %v1850
        %1868 = vmatmul.f32.gmra.mxu0 %v1847
        %v1869 = vpop.f32.mrf.mxu0
        %v1870 = vadd.f32 0.0, %v1869
        %1871 = vdwg.mxu0
        %v1872 = vadd.f32 %v1843, %v1870
        %v1873 = vld [vmem:[%s1814 + $0x1] sm:$0xff]
        %v1874 = vld [vmem:[%s2 + $0x20] sm:$0xf]
        %v1876 = vsel %vm314, %v1873, 0
        %v1879 = vsel %vm318, %v1874, 0
        %1881 = vmatpush.msra.mxu0 0.0
        %1882 = vmatpush.msra.mxu0 0.0
        %1883 = vmatpush.msra.mxu0 0.0
        %1884 = vmatpush.msra.mxu0 0.0
        %1885 = vmatpush.msra.mxu0 0.0
        %1886 = vmatpush.msra.mxu0 0.0
        %1887 = vmatpush.msra.mxu0 0.0
        %1888 = vmatpush.msra.mxu0 0.0
        %1889 = vmatpush.msra.mxu0 0.0
        %1890 = vmatpush.msra.mxu0 0.0
        %1891 = vmatpush.msra.mxu0 0.0
        %1892 = vmatpush.msra.mxu0 0.0
        %1893 = vmatpush.msra.mxu0 0.0
        %1894 = vmatpush.msra.mxu0 0.0
        %1895 = vmatpush.msra.mxu0 0.0
        %1896 = vmatpush.msra.mxu0 %v1879
        %1897 = vmatmul.f32.gmra.mxu0 %v1876
        %v1898 = vpop.f32.mrf.mxu0
        %v1899 = vadd.f32 0.0, %v1898
        %1900 = vdwg.mxu0
        %v1901 = vadd.f32 %v1872, %v1899
        %s1902 = scalar_lea.vmem %s270, 40 [#allocation2]
        %1903 = vst.msk [vmem:[%s1902] sm:$0xff] %vm577, %v1901
        %v1904 = vld [vmem:[%s1814] sm:$0xff]
        %v1905 = vld [vmem:[%s2] sm:$0xf]
        %v1907 = vsel %vm314, %v1904, 0
        %v1910 = vsel %vm318, %v1905, 0
        %1912 = vmatpush.msra.mxu0 0.0
        %1913 = vmatpush.msra.mxu0 0.0
        %1914 = vmatpush.msra.mxu0 0.0
        %1915 = vmatpush.msra.mxu0 0.0
        %1916 = vmatpush.msra.mxu0 0.0
        %1917 = vmatpush.msra.mxu0 0.0
        %1918 = vmatpush.msra.mxu0 0.0
        %1919 = vmatpush.msra.mxu0 0.0
        %1920 = vmatpush.msra.mxu0 0.0
        %1921 = vmatpush.msra.mxu0 0.0
        %1922 = vmatpush.msra.mxu0 0.0
        %1923 = vmatpush.msra.mxu0 0.0
        %1924 = vmatpush.msra.mxu0 0.0
        %1925 = vmatpush.msra.mxu0 0.0
        %1926 = vmatpush.msra.mxu0 0.0
        %1927 = vmatpush.msra.mxu0 %v1910
        %1928 = vmatmul.f32.gmra.mxu0 %v1907
        %v1929 = vpop.f32.mrf.mxu0
        %v1930 = vadd.f32 0.0, %v1929
        %1931 = vdwg.mxu0
        %v1932 = vadd.f32 %v310, %v1930
        %v1933 = vld [vmem:[%s2 + $0x4] sm:$0xf]
        %1934 = vrot.lane.b32.xlu0 %v1904, 124
        %v1935 = vpop.permute.xlu0 %1934
        %v1936 = vsel %vm314, %v1935, 0
        %v1939 = vsel %vm318, %v1933, 0
        %1941 = vmatpush.msra.mxu0 0.0
        %1942 = vmatpush.msra.mxu0 0.0
        %1943 = vmatpush.msra.mxu0 0.0
        %1944 = vmatpush.msra.mxu0 0.0
        %1945 = vmatpush.msra.mxu0 0.0
        %1946 = vmatpush.msra.mxu0 0.0
        %1947 = vmatpush.msra.mxu0 0.0
        %1948 = vmatpush.msra.mxu0 0.0
        %1949 = vmatpush.msra.mxu0 0.0
        %1950 = vmatpush.msra.mxu0 0.0
        %1951 = vmatpush.msra.mxu0 0.0
        %1952 = vmatpush.msra.mxu0 0.0
        %1953 = vmatpush.msra.mxu0 0.0
        %1954 = vmatpush.msra.mxu0 0.0
        %1955 = vmatpush.msra.mxu0 0.0
        %1956 = vmatpush.msra.mxu0 %v1939
        %1957 = vmatmul.f32.gmra.mxu0 %v1936
        %v1958 = vpop.f32.mrf.mxu0
        %v1959 = vadd.f32 0.0, %v1958
        %1960 = vdwg.mxu0
        %v1961 = vadd.f32 %v1932, %v1959
        %v1962 = vld [vmem:[%s1814 + $0x1] sm:$0xff]
        %v1963 = vld [vmem:[%s2 + $0x8] sm:$0xf]
        %v1965 = vsel %vm314, %v1962, 0
        %v1968 = vsel %vm318, %v1963, 0
        %1970 = vmatpush.msra.mxu0 0.0
        %1971 = vmatpush.msra.mxu0 0.0
        %1972 = vmatpush.msra.mxu0 0.0
        %1973 = vmatpush.msra.mxu0 0.0
        %1974 = vmatpush.msra.mxu0 0.0
        %1975 = vmatpush.msra.mxu0 0.0
        %1976 = vmatpush.msra.mxu0 0.0
        %1977 = vmatpush.msra.mxu0 0.0
        %1978 = vmatpush.msra.mxu0 0.0
        %1979 = vmatpush.msra.mxu0 0.0
        %1980 = vmatpush.msra.mxu0 0.0
        %1981 = vmatpush.msra.mxu0 0.0
        %1982 = vmatpush.msra.mxu0 0.0
        %1983 = vmatpush.msra.mxu0 0.0
        %1984 = vmatpush.msra.mxu0 0.0
        %1985 = vmatpush.msra.mxu0 %v1968
        %1986 = vmatmul.f32.gmra.mxu0 %v1965
        %v1987 = vpop.f32.mrf.mxu0
        %v1988 = vadd.f32 0.0, %v1987
        %1989 = vdwg.mxu0
        %v1990 = vadd.f32 %v1961, %v1988
        %s1991 = scalar_lea.vmem %s285, 208
        %v1992 = vld [vmem:[%s1991] sm:$0xff]
        %v1993 = vld [vmem:[%s2 + $0xc] sm:$0xf]
        %v1995 = vsel %vm314, %v1992, 0
        %v1998 = vsel %vm318, %v1993, 0
        %2000 = vmatpush.msra.mxu0 0.0
        %2001 = vmatpush.msra.mxu0 0.0
        %2002 = vmatpush.msra.mxu0 0.0
        %2003 = vmatpush.msra.mxu0 0.0
        %2004 = vmatpush.msra.mxu0 0.0
        %2005 = vmatpush.msra.mxu0 0.0
        %2006 = vmatpush.msra.mxu0 0.0
        %2007 = vmatpush.msra.mxu0 0.0
        %2008 = vmatpush.msra.mxu0 0.0
        %2009 = vmatpush.msra.mxu0 0.0
        %2010 = vmatpush.msra.mxu0 0.0
        %2011 = vmatpush.msra.mxu0 0.0
        %2012 = vmatpush.msra.mxu0 0.0
        %2013 = vmatpush.msra.mxu0 0.0
        %2014 = vmatpush.msra.mxu0 0.0
        %2015 = vmatpush.msra.mxu0 %v1998
        %2016 = vmatmul.f32.gmra.mxu0 %v1995
        %v2017 = vpop.f32.mrf.mxu0
        %v2018 = vadd.f32 0.0, %v2017
        %2019 = vdwg.mxu0
        %v2020 = vadd.f32 %v1990, %v2018
        %v2021 = vld [vmem:[%s2 + $0x10] sm:$0xf]
        %2022 = vrot.lane.b32.xlu0 %v1992, 124
        %v2023 = vpop.permute.xlu0 %2022
        %v2024 = vsel %vm314, %v2023, 0
        %v2027 = vsel %vm318, %v2021, 0
        %2029 = vmatpush.msra.mxu0 0.0
        %2030 = vmatpush.msra.mxu0 0.0
        %2031 = vmatpush.msra.mxu0 0.0
        %2032 = vmatpush.msra.mxu0 0.0
        %2033 = vmatpush.msra.mxu0 0.0
        %2034 = vmatpush.msra.mxu0 0.0
        %2035 = vmatpush.msra.mxu0 0.0
        %2036 = vmatpush.msra.mxu0 0.0
        %2037 = vmatpush.msra.mxu0 0.0
        %2038 = vmatpush.msra.mxu0 0.0
        %2039 = vmatpush.msra.mxu0 0.0
        %2040 = vmatpush.msra.mxu0 0.0
        %2041 = vmatpush.msra.mxu0 0.0
        %2042 = vmatpush.msra.mxu0 0.0
        %2043 = vmatpush.msra.mxu0 0.0
        %2044 = vmatpush.msra.mxu0 %v2027
        %2045 = vmatmul.f32.gmra.mxu0 %v2024
        %v2046 = vpop.f32.mrf.mxu0
        %v2047 = vadd.f32 0.0, %v2046
        %2048 = vdwg.mxu0
        %v2049 = vadd.f32 %v2020, %v2047
        %v2050 = vld [vmem:[%s1991 + $0x1] sm:$0xff]
        %v2051 = vld [vmem:[%s2 + $0x14] sm:$0xf]
        %v2053 = vsel %vm314, %v2050, 0
        %v2056 = vsel %vm318, %v2051, 0
        %2058 = vmatpush.msra.mxu0 0.0
        %2059 = vmatpush.msra.mxu0 0.0
        %2060 = vmatpush.msra.mxu0 0.0
        %2061 = vmatpush.msra.mxu0 0.0
        %2062 = vmatpush.msra.mxu0 0.0
        %2063 = vmatpush.msra.mxu0 0.0
        %2064 = vmatpush.msra.mxu0 0.0
        %2065 = vmatpush.msra.mxu0 0.0
        %2066 = vmatpush.msra.mxu0 0.0
        %2067 = vmatpush.msra.mxu0 0.0
        %2068 = vmatpush.msra.mxu0 0.0
        %2069 = vmatpush.msra.mxu0 0.0
        %2070 = vmatpush.msra.mxu0 0.0
        %2071 = vmatpush.msra.mxu0 0.0
        %2072 = vmatpush.msra.mxu0 0.0
        %2073 = vmatpush.msra.mxu0 %v2056
        %2074 = vmatmul.f32.gmra.mxu0 %v2053
        %v2075 = vpop.f32.mrf.mxu0
        %v2076 = vadd.f32 0.0, %v2075
        %2077 = vdwg.mxu0
        %v2078 = vadd.f32 %v2049, %v2076
        %s2079 = scalar_lea.vmem %s285, 224
        %v2080 = vld [vmem:[%s2079] sm:$0xff]
        %v2081 = vld [vmem:[%s2 + $0x18] sm:$0xf]
        %v2083 = vsel %vm314, %v2080, 0
        %v2086 = vsel %vm318, %v2081, 0
        %2088 = vmatpush.msra.mxu0 0.0
        %2089 = vmatpush.msra.mxu0 0.0
        %2090 = vmatpush.msra.mxu0 0.0
        %2091 = vmatpush.msra.mxu0 0.0
        %2092 = vmatpush.msra.mxu0 0.0
        %2093 = vmatpush.msra.mxu0 0.0
        %2094 = vmatpush.msra.mxu0 0.0
        %2095 = vmatpush.msra.mxu0 0.0
        %2096 = vmatpush.msra.mxu0 0.0
        %2097 = vmatpush.msra.mxu0 0.0
        %2098 = vmatpush.msra.mxu0 0.0
        %2099 = vmatpush.msra.mxu0 0.0
        %2100 = vmatpush.msra.mxu0 0.0
        %2101 = vmatpush.msra.mxu0 0.0
        %2102 = vmatpush.msra.mxu0 0.0
        %2103 = vmatpush.msra.mxu0 %v2086
        %2104 = vmatmul.f32.gmra.mxu0 %v2083
        %v2105 = vpop.f32.mrf.mxu0
        %v2106 = vadd.f32 0.0, %v2105
        %2107 = vdwg.mxu0
        %v2108 = vadd.f32 %v2078, %v2106
        %v2109 = vld [vmem:[%s2 + $0x1c] sm:$0xf]
        %2110 = vrot.lane.b32.xlu0 %v2080, 124
        %v2111 = vpop.permute.xlu0 %2110
        %v2112 = vsel %vm314, %v2111, 0
        %v2115 = vsel %vm318, %v2109, 0
        %2117 = vmatpush.msra.mxu0 0.0
        %2118 = vmatpush.msra.mxu0 0.0
        %2119 = vmatpush.msra.mxu0 0.0
        %2120 = vmatpush.msra.mxu0 0.0
        %2121 = vmatpush.msra.mxu0 0.0
        %2122 = vmatpush.msra.mxu0 0.0
        %2123 = vmatpush.msra.mxu0 0.0
        %2124 = vmatpush.msra.mxu0 0.0
        %2125 = vmatpush.msra.mxu0 0.0
        %2126 = vmatpush.msra.mxu0 0.0
        %2127 = vmatpush.msra.mxu0 0.0
        %2128 = vmatpush.msra.mxu0 0.0
        %2129 = vmatpush.msra.mxu0 0.0
        %2130 = vmatpush.msra.mxu0 0.0
        %2131 = vmatpush.msra.mxu0 0.0
        %2132 = vmatpush.msra.mxu0 %v2115
        %2133 = vmatmul.f32.gmra.mxu0 %v2112
        %v2134 = vpop.f32.mrf.mxu0
        %v2135 = vadd.f32 0.0, %v2134
        %2136 = vdwg.mxu0
        %v2137 = vadd.f32 %v2108, %v2135
        %v2138 = vld [vmem:[%s2079 + $0x1] sm:$0xff]
        %v2139 = vld [vmem:[%s2 + $0x20] sm:$0xf]
        %v2141 = vsel %vm314, %v2138, 0
        %v2144 = vsel %vm318, %v2139, 0
        %2146 = vmatpush.msra.mxu0 0.0
        %2147 = vmatpush.msra.mxu0 0.0
        %2148 = vmatpush.msra.mxu0 0.0
        %2149 = vmatpush.msra.mxu0 0.0
        %2150 = vmatpush.msra.mxu0 0.0
        %2151 = vmatpush.msra.mxu0 0.0
        %2152 = vmatpush.msra.mxu0 0.0
        %2153 = vmatpush.msra.mxu0 0.0
        %2154 = vmatpush.msra.mxu0 0.0
        %2155 = vmatpush.msra.mxu0 0.0
        %2156 = vmatpush.msra.mxu0 0.0
        %2157 = vmatpush.msra.mxu0 0.0
        %2158 = vmatpush.msra.mxu0 0.0
        %2159 = vmatpush.msra.mxu0 0.0
        %2160 = vmatpush.msra.mxu0 0.0
        %2161 = vmatpush.msra.mxu0 %v2144
        %2162 = vmatmul.f32.gmra.mxu0 %v2141
        %v2163 = vpop.f32.mrf.mxu0
        %v2164 = vadd.f32 0.0, %v2163
        %2165 = vdwg.mxu0
        %v2166 = vadd.f32 %v2137, %v2164
        %s2167 = scalar_lea.vmem %s270, 48 [#allocation2]
        %2168 = vst.msk [vmem:[%s2167] sm:$0xff] %vm577, %v2166
        %v2169 = vld [vmem:[%s2079] sm:$0xff]
        %v2170 = vld [vmem:[%s2] sm:$0xf]
        %v2172 = vsel %vm314, %v2169, 0
        %v2175 = vsel %vm318, %v2170, 0
        %2177 = vmatpush.msra.mxu0 0.0
        %2178 = vmatpush.msra.mxu0 0.0
        %2179 = vmatpush.msra.mxu0 0.0
        %2180 = vmatpush.msra.mxu0 0.0
        %2181 = vmatpush.msra.mxu0 0.0
        %2182 = vmatpush.msra.mxu0 0.0
        %2183 = vmatpush.msra.mxu0 0.0
        %2184 = vmatpush.msra.mxu0 0.0
        %2185 = vmatpush.msra.mxu0 0.0
        %2186 = vmatpush.msra.mxu0 0.0
        %2187 = vmatpush.msra.mxu0 0.0
        %2188 = vmatpush.msra.mxu0 0.0
        %2189 = vmatpush.msra.mxu0 0.0
        %2190 = vmatpush.msra.mxu0 0.0
        %2191 = vmatpush.msra.mxu0 0.0
        %2192 = vmatpush.msra.mxu0 %v2175
        %2193 = vmatmul.f32.gmra.mxu0 %v2172
        %v2194 = vpop.f32.mrf.mxu0
        %v2195 = vadd.f32 0.0, %v2194
        %2196 = vdwg.mxu0
        %v2197 = vadd.f32 %v310, %v2195
        %v2198 = vld [vmem:[%s2 + $0x4] sm:$0xf]
        %2199 = vrot.lane.b32.xlu0 %v2169, 124
        %v2200 = vpop.permute.xlu0 %2199
        %v2201 = vsel %vm314, %v2200, 0
        %v2204 = vsel %vm318, %v2198, 0
        %2206 = vmatpush.msra.mxu0 0.0
        %2207 = vmatpush.msra.mxu0 0.0
        %2208 = vmatpush.msra.mxu0 0.0
        %2209 = vmatpush.msra.mxu0 0.0
        %2210 = vmatpush.msra.mxu0 0.0
        %2211 = vmatpush.msra.mxu0 0.0
        %2212 = vmatpush.msra.mxu0 0.0
        %2213 = vmatpush.msra.mxu0 0.0
        %2214 = vmatpush.msra.mxu0 0.0
        %2215 = vmatpush.msra.mxu0 0.0
        %2216 = vmatpush.msra.mxu0 0.0
        %2217 = vmatpush.msra.mxu0 0.0
        %2218 = vmatpush.msra.mxu0 0.0
        %2219 = vmatpush.msra.mxu0 0.0
        %2220 = vmatpush.msra.mxu0 0.0
        %2221 = vmatpush.msra.mxu0 %v2204
        %2222 = vmatmul.f32.gmra.mxu0 %v2201
        %v2223 = vpop.f32.mrf.mxu0
        %v2224 = vadd.f32 0.0, %v2223
        %2225 = vdwg.mxu0
        %v2226 = vadd.f32 %v2197, %v2224
        %v2227 = vld [vmem:[%s2079 + $0x1] sm:$0xff]
        %v2228 = vld [vmem:[%s2 + $0x8] sm:$0xf]
        %v2230 = vsel %vm314, %v2227, 0
        %v2233 = vsel %vm318, %v2228, 0
        %2235 = vmatpush.msra.mxu0 0.0
        %2236 = vmatpush.msra.mxu0 0.0
        %2237 = vmatpush.msra.mxu0 0.0
        %2238 = vmatpush.msra.mxu0 0.0
        %2239 = vmatpush.msra.mxu0 0.0
        %2240 = vmatpush.msra.mxu0 0.0
        %2241 = vmatpush.msra.mxu0 0.0
        %2242 = vmatpush.msra.mxu0 0.0
        %2243 = vmatpush.msra.mxu0 0.0
        %2244 = vmatpush.msra.mxu0 0.0
        %2245 = vmatpush.msra.mxu0 0.0
        %2246 = vmatpush.msra.mxu0 0.0
        %2247 = vmatpush.msra.mxu0 0.0
        %2248 = vmatpush.msra.mxu0 0.0
        %2249 = vmatpush.msra.mxu0 0.0
        %2250 = vmatpush.msra.mxu0 %v2233
        %2251 = vmatmul.f32.gmra.mxu0 %v2230
        %v2252 = vpop.f32.mrf.mxu0
        %v2253 = vadd.f32 0.0, %v2252
        %2254 = vdwg.mxu0
        %v2255 = vadd.f32 %v2226, %v2253
        %s2256 = scalar_lea.vmem %s285, 240
        %v2257 = vld [vmem:[%s2256] sm:$0xff]
        %v2258 = vld [vmem:[%s2 + $0xc] sm:$0xf]
        %v2260 = vsel %vm314, %v2257, 0
        %v2263 = vsel %vm318, %v2258, 0
        %2265 = vmatpush.msra.mxu0 0.0
        %2266 = vmatpush.msra.mxu0 0.0
        %2267 = vmatpush.msra.mxu0 0.0
        %2268 = vmatpush.msra.mxu0 0.0
        %2269 = vmatpush.msra.mxu0 0.0
        %2270 = vmatpush.msra.mxu0 0.0
        %2271 = vmatpush.msra.mxu0 0.0
        %2272 = vmatpush.msra.mxu0 0.0
        %2273 = vmatpush.msra.mxu0 0.0
        %2274 = vmatpush.msra.mxu0 0.0
        %2275 = vmatpush.msra.mxu0 0.0
        %2276 = vmatpush.msra.mxu0 0.0
        %2277 = vmatpush.msra.mxu0 0.0
        %2278 = vmatpush.msra.mxu0 0.0
        %2279 = vmatpush.msra.mxu0 0.0
        %2280 = vmatpush.msra.mxu0 %v2263
        %2281 = vmatmul.f32.gmra.mxu0 %v2260
        %v2282 = vpop.f32.mrf.mxu0
        %v2283 = vadd.f32 0.0, %v2282
        %2284 = vdwg.mxu0
        %v2285 = vadd.f32 %v2255, %v2283
        %v2286 = vld [vmem:[%s2 + $0x10] sm:$0xf]
        %2287 = vrot.lane.b32.xlu0 %v2257, 124
        %v2288 = vpop.permute.xlu0 %2287
        %v2289 = vsel %vm314, %v2288, 0
        %v2292 = vsel %vm318, %v2286, 0
        %2294 = vmatpush.msra.mxu0 0.0
        %2295 = vmatpush.msra.mxu0 0.0
        %2296 = vmatpush.msra.mxu0 0.0
        %2297 = vmatpush.msra.mxu0 0.0
        %2298 = vmatpush.msra.mxu0 0.0
        %2299 = vmatpush.msra.mxu0 0.0
        %2300 = vmatpush.msra.mxu0 0.0
        %2301 = vmatpush.msra.mxu0 0.0
        %2302 = vmatpush.msra.mxu0 0.0
        %2303 = vmatpush.msra.mxu0 0.0
        %2304 = vmatpush.msra.mxu0 0.0
        %2305 = vmatpush.msra.mxu0 0.0
        %2306 = vmatpush.msra.mxu0 0.0
        %2307 = vmatpush.msra.mxu0 0.0
        %2308 = vmatpush.msra.mxu0 0.0
        %2309 = vmatpush.msra.mxu0 %v2292
        %2310 = vmatmul.f32.gmra.mxu0 %v2289
        %v2311 = vpop.f32.mrf.mxu0
        %v2312 = vadd.f32 0.0, %v2311
        %2313 = vdwg.mxu0
        %v2314 = vadd.f32 %v2285, %v2312
        %v2315 = vld [vmem:[%s2256 + $0x1] sm:$0xff]
        %v2316 = vld [vmem:[%s2 + $0x14] sm:$0xf]
        %v2318 = vsel %vm314, %v2315, 0
        %v2321 = vsel %vm318, %v2316, 0
        %2323 = vmatpush.msra.mxu0 0.0
        %2324 = vmatpush.msra.mxu0 0.0
        %2325 = vmatpush.msra.mxu0 0.0
        %2326 = vmatpush.msra.mxu0 0.0
        %2327 = vmatpush.msra.mxu0 0.0
        %2328 = vmatpush.msra.mxu0 0.0
        %2329 = vmatpush.msra.mxu0 0.0
        %2330 = vmatpush.msra.mxu0 0.0
        %2331 = vmatpush.msra.mxu0 0.0
        %2332 = vmatpush.msra.mxu0 0.0
        %2333 = vmatpush.msra.mxu0 0.0
        %2334 = vmatpush.msra.mxu0 0.0
        %2335 = vmatpush.msra.mxu0 0.0
        %2336 = vmatpush.msra.mxu0 0.0
        %2337 = vmatpush.msra.mxu0 0.0
        %2338 = vmatpush.msra.mxu0 %v2321
        %2339 = vmatmul.f32.gmra.mxu0 %v2318
        %v2340 = vpop.f32.mrf.mxu0
        %v2341 = vadd.f32 0.0, %v2340
        %2342 = vdwg.mxu0
        %v2343 = vadd.f32 %v2314, %v2341
        %v2344 = vld [vmem:[%s303] sm:$0xff]
        %v2345 = vld [vmem:[%s2 + $0x18] sm:$0xf]
        %v2347 = vsel %vm314, %v2344, 0
        %v2350 = vsel %vm318, %v2345, 0
        %2352 = vmatpush.msra.mxu0 0.0
        %2353 = vmatpush.msra.mxu0 0.0
        %2354 = vmatpush.msra.mxu0 0.0
        %2355 = vmatpush.msra.mxu0 0.0
        %2356 = vmatpush.msra.mxu0 0.0
        %2357 = vmatpush.msra.mxu0 0.0
        %2358 = vmatpush.msra.mxu0 0.0
        %2359 = vmatpush.msra.mxu0 0.0
        %2360 = vmatpush.msra.mxu0 0.0
        %2361 = vmatpush.msra.mxu0 0.0
        %2362 = vmatpush.msra.mxu0 0.0
        %2363 = vmatpush.msra.mxu0 0.0
        %2364 = vmatpush.msra.mxu0 0.0
        %2365 = vmatpush.msra.mxu0 0.0
        %2366 = vmatpush.msra.mxu0 0.0
        %2367 = vmatpush.msra.mxu0 %v2350
        %2368 = vmatmul.f32.gmra.mxu0 %v2347
        %v2369 = vpop.f32.mrf.mxu0
        %v2370 = vadd.f32 0.0, %v2369
        %2371 = vdwg.mxu0
        %v2372 = vadd.f32 %v2343, %v2370
        %v2373 = vld [vmem:[%s2 + $0x1c] sm:$0xf]
        %2374 = vrot.lane.b32.xlu0 %v2344, 124
        %v2375 = vpop.permute.xlu0 %2374
        %v2376 = vsel %vm314, %v2375, 0
        %v2379 = vsel %vm318, %v2373, 0
        %2381 = vmatpush.msra.mxu0 0.0
        %2382 = vmatpush.msra.mxu0 0.0
        %2383 = vmatpush.msra.mxu0 0.0
        %2384 = vmatpush.msra.mxu0 0.0
        %2385 = vmatpush.msra.mxu0 0.0
        %2386 = vmatpush.msra.mxu0 0.0
        %2387 = vmatpush.msra.mxu0 0.0
        %2388 = vmatpush.msra.mxu0 0.0
        %2389 = vmatpush.msra.mxu0 0.0
        %2390 = vmatpush.msra.mxu0 0.0
        %2391 = vmatpush.msra.mxu0 0.0
        %2392 = vmatpush.msra.mxu0 0.0
        %2393 = vmatpush.msra.mxu0 0.0
        %2394 = vmatpush.msra.mxu0 0.0
        %2395 = vmatpush.msra.mxu0 0.0
        %2396 = vmatpush.msra.mxu0 %v2379
        %2397 = vmatmul.f32.gmra.mxu0 %v2376
        %v2398 = vpop.f32.mrf.mxu0
        %v2399 = vadd.f32 0.0, %v2398
        %2400 = vdwg.mxu0
        %v2401 = vadd.f32 %v2372, %v2399
        %v2402 = vld [vmem:[%s303 + $0x1] sm:$0xff]
        %v2403 = vld [vmem:[%s2 + $0x20] sm:$0xf]
        %v2405 = vsel %vm314, %v2402, 0
        %v2408 = vsel %vm318, %v2403, 0
        %2410 = vmatpush.msra.mxu0 0.0
        %2411 = vmatpush.msra.mxu0 0.0
        %2412 = vmatpush.msra.mxu0 0.0
        %2413 = vmatpush.msra.mxu0 0.0
        %2414 = vmatpush.msra.mxu0 0.0
        %2415 = vmatpush.msra.mxu0 0.0
        %2416 = vmatpush.msra.mxu0 0.0
        %2417 = vmatpush.msra.mxu0 0.0
        %2418 = vmatpush.msra.mxu0 0.0
        %2419 = vmatpush.msra.mxu0 0.0
        %2420 = vmatpush.msra.mxu0 0.0
        %2421 = vmatpush.msra.mxu0 0.0
        %2422 = vmatpush.msra.mxu0 0.0
        %2423 = vmatpush.msra.mxu0 0.0
        %2424 = vmatpush.msra.mxu0 0.0
        %2425 = vmatpush.msra.mxu0 %v2408
        %2426 = vmatmul.f32.gmra.mxu0 %v2405
        %v2427 = vpop.f32.mrf.mxu0
        %v2428 = vadd.f32 0.0, %v2427
        %2429 = vdwg.mxu0
        %v2430 = vadd.f32 %v2401, %v2428
        %s2431 = scalar_lea.vmem %s270, 56 [#allocation2]
        %2432 = vst.msk [vmem:[%s2431] sm:$0xff] %vm577, %v2430
        %s2433 = sand.u32 %s142, 1
        %s2434 = scalar_lea.sflag [#allocation3], %s2433
        %s2435 = sand.u32 %s142, 1
        %s2436 = smul.addr %s2435, 64
        %s2437 = scalar_lea.vmem [#allocation2], %s2436
        // Predicated region
        $region37: #{tpu_custom_call.1} parent=35 // pred_check
          %p2438 = pneg %p152
        $region38: #{tpu_custom_call.1} parent=35 // pred_check_branch
          %2440 = sbr.rel (%p2438) target = $region40
        $region39: #{tpu_custom_call.1} parent=35 // pred_region
          %s2441 = smul.u32 8, %s23
          %2443 = vsyncadd %s2434, 0
          %s2444 = smul.addr %s22, 8
          %s2445 = sadd.s32 %s2441, %s2444
          %s2446 = smul.addr %s2445, 8
          %s2447 = scalar_lea.hbm %s4, %s2446
          %s2448 = sshll.u32 %s2437, 4
          %s2449 = int_to_ptr.vmem [resolvable:$true] %s2448
          %s2450 = sshll.u32 %s2447, 4
          %s2451 = int_to_ptr.hbm [resolvable:$true] %s2450
          %2456 = dma.vmem_to_hbm [thread:$0]  %s2449, 1024, %s2451, %s2434, 128, 128, 8
        $region40: #{tpu_custom_call.1} parent=35 // pred_fallthru
          _
      $region36: #{tpu_custom_call.1} parent=5 // pred_fallthru
        _
      %p2457 = scmp.le.s32.totalorder 2, %s13
      // Predicated region
      $region41: #{tpu_custom_call.1} parent=5 // pred_check
        %p2458 = pneg %p2457
      $region42: #{tpu_custom_call.1} parent=5 // pred_check_branch
        %2460 = sbr.rel (%p2458) target = $region44
      $region43: #{tpu_custom_call.1} parent=5 // pred_region
        %s2461 = ssub.s32 %s13, 2
        // Predicated region
        $region45: #{tpu_custom_call.1} parent=43 // pred_check
          %p2462 = pneg %p158
        $region46: #{tpu_custom_call.1} parent=43 // pred_check_branch
          %2464 = sbr.rel (%p2462) target = $region48
        $region47: #{tpu_custom_call.1} parent=43 // pred_region
          %s2465 = sand.u32 %s143, 1
          %s2466 = scalar_lea.sflag [#allocation3], %s2465
          %s2467 = sand.u32 %s143, 1
          %s2468 = smul.addr %s2467, 64
          %s2469 = scalar_lea.vmem [#allocation2], %s2468
          %2471 = dma.done %s2466, 1024
        $region48: #{tpu_custom_call.1} parent=43 // pred_fallthru
          _
      $region44: #{tpu_custom_call.1} parent=5 // pred_fallthru
        _
    $region6: #{tpu_custom_call.1} parent=1 // loop_footer
      %s17 = sadd.s32 1, %s13
    $region7: #{tpu_custom_call.1} parent=1 // loop_footer_branch
      %12 = sbr.rel target = $region3
    $region8: #{tpu_custom_call.1} parent=1 // loop_exit
      _
    %2472 = vsyncpa [#allocation3], 1
    %s2473 = scalar_lea.sflag [#allocation3], 1
    %2474 = vsyncpa %s2473, 1

</llo_original>
